<compile_context>
chip_gen: v5e
topology: v5e:2x2
jax: 0.10.0
libtpu: 0.0.40
codegen_flags: <defaults>
</compile_context>

<pallas_src>
import jax
import jax.numpy as jnp
from jax.experimental import pallas as pl
from jax.experimental.pallas import tpu as pltpu

# ---------------- model hyper-params (small, consistent with the module) ----------
IMG_HEIGHT = 16
IMG_WIDTH = 16
CLASSES = 4
BATCH = 2
BN_EPS = 1e-5
CPAD = 128               # all channel axes padded to one lane tile
K3 = 3 * CPAD            # K of one dy-slab of the dx-expanded im2col (384)


# ------------------------------ fused Pallas kernel --------------------------------
def fused_cnn_kernel(
    # -------- inputs (x per image, weights resident via constant index_map) --------
    x_ref,            # (1, 18, 18, 128) f32  spatially padded, lane-broadcast image
    w1_ref,           # (9, 128)   f32  conv1 taps (Cin=1), cout padded to 128
    s1_ref, b1_ref,   # (1, 128)   folded BN1 affine (zero padded)
    w2_ref,           # (1152,128) bf16 conv2 weights, row = dy*384 + dx*128 + cin
    s2_ref, b2_ref,   # (1, 128)
    w3_ref,           # (1152,128) bf16 conv3 weights
    s3_ref, b3_ref,   # (1, 128)
    wl1_ref,          # (512, 256) bf16 linear1, row = (h*2+w)*128 + c
    s4_ref, b4_ref,   # (1, 256)
    wl2_ref,          # (256, 128) f32  linear2, output lanes >= CLASSES are zero
    # -------- output --------
    out_ref,          # (1, 8, 128) f32 softmax probs (row 0, lanes [0, CLASSES))
    # -------- VMEM scratch (per core / per grid step) --------
    r1_ref,           # (128, 128) f32  conv1 H-pooled rows, row = hb*16 + w
    pin2_ref,         # (10, 10, 128) f32 zero-padded conv2 input
    ex2_ref,          # (80, 384) bf16  dx-expanded conv2 patches, row = r*8 + w
    y2_ref,           # (64, 128) f32   conv2 activations, row = h*8 + w
    wp2_ref,          # (32, 128) f32   conv2 W-pooled rows, row = h*4 + wo
    pin3_ref,         # (6, 6, 128) f32 zero-padded conv3 input
    ex3_ref,          # (24, 384) bf16  dx-expanded conv3 patches, row = r*4 + w
    y3_ref,           # (16, 128) f32   conv3 activations, row = h*4 + w
    wp3_ref,          # (8, 128) f32    conv3 W-pooled rows, row = h*2 + wo
    fcp_ref,          # (8, 128) f32    pooled conv3 features, rows 0..3 = positions
):
    f32 = jnp.float32

    # zero the spatially padded buffers (borders); interiors are rewritten below
    pin2_ref[...] = jnp.zeros_like(pin2_ref)
    pin3_ref[...] = jnp.zeros_like(pin3_ref)

    # ---- block 1: conv3x3 (Cin=1) on the VPU, 2-row bands, fused BN/ReLU/H-pool ----
    w1_rows = [w1_ref[pl.ds(t, 1), :] for t in range(9)]
    s1, b1 = s1_ref[...], b1_ref[...]
    for hb in range(IMG_HEIGHT // 2):                      # band = output rows 2hb,2hb+1
        acc = jnp.zeros((2, IMG_WIDTH, CPAD), f32)         # 4 vregs live per band
        for t in range(9):
            dy, dx = divmod(t, 3)
            acc = acc + x_ref[0, pl.ds(2 * hb + dy, 2), pl.ds(dx, IMG_WIDTH), :] * w1_rows[t]
        acc = jnp.maximum(acc * s1 + b1, 0.0)
        r1_ref[pl.ds(hb * IMG_WIDTH, IMG_WIDTH), :] = jnp.maximum(acc[0], acc[1])

    # W-half of the 2x2 pool: whole-image stride-2 sublane reads, one aligned store
    pooled1 = jnp.maximum(r1_ref[pl.ds(0, 64, stride=2), :],
                          r1_ref[pl.ds(1, 64, stride=2), :])          # (64,128), row=h*8+w
    pin2_ref[pl.ds(1, 8), pl.ds(1, 8), :] = pooled1.reshape(8, 8, CPAD)

    # ---- block 2: dx-expanded (3x) bf16 im2col + 3 accumulating MXU matmuls --------
    for r in range(10):
        row = jnp.concatenate(
            [pin2_ref[r, pl.ds(dx, 8), :] for dx in range(3)], axis=-1)
        ex2_ref[pl.ds(r * 8, 8), :] = row.astype(jnp.bfloat16)

    acc2 = jnp.zeros((64, CPAD), f32)
    for dy in range(3):
        acc2 = acc2 + jnp.dot(ex2_ref[pl.ds(dy * 8, 64), :],
                              w2_ref[pl.ds(dy * K3, K3), :],
                              preferred_element_type=f32)
    y2_ref[...] = jnp.maximum(acc2 * s2_ref[...] + b2_ref[...], 0.0)

    # 2x2 max-pool: stride-2 W-pool, then whole (4,128) pooled rows into pin3
    wp2_ref[...] = jnp.maximum(y2_ref[pl.ds(0, 32, stride=2), :],
                               y2_ref[pl.ds(1, 32, stride=2), :])     # row = h*4+wo
    for ho in range(4):
        pin3_ref[1 + ho, pl.ds(1, 4), :] = jnp.maximum(
            wp2_ref[pl.ds(8 * ho, 4), :], wp2_ref[pl.ds(8 * ho + 4, 4), :])

    # ---- block 3: same structure at 4x4 ---------------------------------------------
    for r in range(6):
        row = jnp.concatenate(
            [pin3_ref[r, pl.ds(dx, 4), :] for dx in range(3)], axis=-1)
        ex3_ref[pl.ds(r * 4, 4), :] = row.astype(jnp.bfloat16)

    acc3 = jnp.zeros((16, CPAD), f32)
    for dy in range(3):
        acc3 = acc3 + jnp.dot(ex3_ref[pl.ds(dy * 4, 16), :],
                              w3_ref[pl.ds(dy * K3, K3), :],
                              preferred_element_type=f32)
    y3_ref[...] = jnp.maximum(acc3 * s3_ref[...] + b3_ref[...], 0.0)

    wp3_ref[...] = jnp.maximum(y3_ref[pl.ds(0, 8, stride=2), :],
                               y3_ref[pl.ds(1, 8, stride=2), :])      # row = h*2+wo
    fcp_ref[pl.ds(0, 2), :] = jnp.maximum(wp3_ref[pl.ds(0, 2), :],
                                          wp3_ref[pl.ds(2, 2), :])    # positions 0,1
    fcp_ref[pl.ds(2, 2), :] = jnp.maximum(wp3_ref[pl.ds(4, 2), :],
                                          wp3_ref[pl.ds(6, 2), :])    # positions 2,3

    # ---- classifier head: FC1 (+BN+ReLU), FC2, exact masked softmax ------------------
    # TODO(synk): nn.Dropout(0.3) is identity here (inference semantics only).
    h = jnp.zeros((1, 256), f32)
    for pos in range(4):                                   # 4 accumulating (1,128)x(128,256)
        h = h + jnp.dot(fcp_ref[pl.ds(pos, 1), :].astype(jnp.bfloat16),
                        wl1_ref[pl.ds(pos * CPAD, CPAD), :],
                        preferred_element_type=f32)
    h = jnp.maximum(h * s4_ref[...] + b4_ref[...], 0.0)
    logits = jnp.dot(h, wl2_ref[...], preferred_element_type=f32)     # (1,128)

    lane = jax.lax.broadcasted_iota(jnp.int32, (1, CPAD), 1)
    masked = jnp.where(lane < CLASSES, logits, -1e30)
    e = jnp.exp(masked - jnp.max(masked, axis=1, keepdims=True))      # padded lanes -> 0
    probs = e / jnp.sum(e, axis=1, keepdims=True)
    out_ref[...] = jnp.broadcast_to(probs, (1, 8, CPAD))


# ------------------------------ pallas_call wrapper --------------------------------
def _const_spec(shape):
    return pl.BlockSpec(shape, lambda b: (0,) * len(shape))


def forward(x_nchw, p):
    """x_nchw: (BATCH, 1, 16, 16) -> (BATCH, CLASSES) softmax probabilities."""
    x = jnp.transpose(x_nchw, (0, 2, 3, 1)).astype(jnp.float32)       # NHWC, Cin=1
    x = jnp.pad(x, ((0, 0), (1, 1), (1, 1), (0, 0)))                  # (B,18,18,1)
    # Pre-replicate the single input channel across the 128-lane axis so conv1's
    # tap FMAs are plain full-lane vmuls (no in-kernel lane splat). ~330 KB HBM.
    x = jnp.broadcast_to(x, (BATCH, IMG_HEIGHT + 2, IMG_WIDTH + 2, CPAD))

    weights = (
        p["w1"], p["s1"], p["b1"],
        p["w2"], p["s2"], p["b2"],
        p["w3"], p["s3"], p["b3"],
        p["wl1"], p["s4"], p["b4"],
        p["wl2"],
    )
    out3 = pl.pallas_call(
        fused_cnn_kernel,
        out_shape=jax.ShapeDtypeStruct((BATCH, 8, CPAD), jnp.float32),
        grid=(BATCH,),                                     # one image per grid step
        in_specs=[pl.BlockSpec((1, IMG_HEIGHT + 2, IMG_WIDTH + 2, CPAD),
                               lambda b: (b, 0, 0, 0))]
                 + [_const_spec(w.shape) for w in weights],
        out_specs=pl.BlockSpec((1, 8, CPAD), lambda b: (b, 0, 0)),
        scratch_shapes=[
            pltpu.VMEM((128, CPAD), jnp.float32),          # r1
            pltpu.VMEM((10, 10, CPAD), jnp.float32),       # pin2
            pltpu.VMEM((80, K3), jnp.bfloat16),            # ex2
            pltpu.VMEM((64, CPAD), jnp.float32),           # y2
            pltpu.VMEM((32, CPAD), jnp.float32),           # wp2
            pltpu.VMEM((6, 6, CPAD), jnp.float32),         # pin3
            pltpu.VMEM((24, K3), jnp.bfloat16),            # ex3
            pltpu.VMEM((16, CPAD), jnp.float32),           # y3
            pltpu.VMEM((8, CPAD), jnp.float32),            # wp3
            pltpu.VMEM((8, CPAD), jnp.float32),            # fcp
        ],
        # batch axis parallel: v7x's two TensorCores each take one image;
        # on v5e/v6e it simply pipelines the per-image input DMA behind compute.
        compiler_params=pltpu.CompilerParams(dimension_semantics=("parallel",)),
    )(x, *weights)
    return out3[:, 0, :CLASSES]


# ------------------------------ parameters ------------------------------------------
def _fold_bn(gamma, beta, mean, var):
    scale = gamma / jnp.sqrt(var + BN_EPS)
    shift = beta - mean * scale
    return scale.astype(jnp.float32), shift.astype(jnp.float32)


def init_raw_params(key):
    ks = jax.random.split(key, 10)
    raw = {
        "w1": jax.random.normal(ks[0], (32, 1, 3, 3), jnp.float32) * 0.2,
        "w2": jax.random.normal(ks[1], (64, 32, 3, 3), jnp.float32) * 0.05,
        "w3": jax.random.normal(ks[2], (128, 64, 3, 3), jnp.float32) * 0.05,
    }

    def bn(k, c):
        g = 1.0 + 0.1 * jax.random.normal(jax.random.fold_in(k, 0), (c,))
        b = 0.1 * jax.random.normal(jax.random.fold_in(k, 1), (c,))
        rm = 0.1 * jax.random.normal(jax.random.fold_in(k, 2), (c,))
        rv = 1.0 + 0.1 * jax.random.uniform(jax.random.fold_in(k, 3), (c,))
        return _fold_bn(g, b, rm, rv)

    raw["bn1"], raw["bn2"], raw["bn3"] = bn(ks[3], 32), bn(ks[4], 64), bn(ks[5], 128)
    feat = 128 * (IMG_WIDTH // 8) * (IMG_HEIGHT // 8)                  # 512
    raw["wl1"] = jax.random.normal(ks[6], (256, feat), jnp.float32) * 0.05
    raw["bn4"] = bn(ks[7], 256)
    raw["wl2"] = jax.random.normal(ks[8], (CLASSES, 256), jnp.float32) * 0.05
    return raw


def prepare_kernel_params(raw):
    """PyTorch-layout params -> kernel layout (lane-padded, dy-sliced im2col, bf16 GEMMs)."""
    p = {}

    def pad_row(v):                                     # (1, c) -> (1, CPAD), zero padded
        return jnp.pad(v, ((0, 0), (0, CPAD - v.shape[1]))).astype(jnp.float32)

    # conv1: OIHW (32,1,3,3) -> (dy*3+dx, cout) -> pad cout lanes to 128
    w1 = jnp.transpose(raw["w1"], (2, 3, 1, 0)).reshape(9, 32)
    p["w1"] = jnp.pad(w1, ((0, 0), (0, CPAD - 32))).astype(jnp.float32)
    # conv2: OIHW (64,32,3,3) -> (dy,dx,cin,cout), pad cin/cout to 128 -> (1152,128) bf16
    w2 = jnp.transpose(raw["w2"], (2, 3, 1, 0))
    w2 = jnp.pad(w2, ((0, 0), (0, 0), (0, CPAD - 32), (0, CPAD - 64)))
    p["w2"] = w2.reshape(9 * CPAD, CPAD).astype(jnp.bfloat16)
    # conv3: OIHW (128,64,3,3) -> pad cin to 128 -> (1152,128) bf16
    w3 = jnp.transpose(raw["w3"], (2, 3, 1, 0))
    w3 = jnp.pad(w3, ((0, 0), (0, 0), (0, CPAD - 64), (0, 0)))
    p["w3"] = w3.reshape(9 * CPAD, CPAD).astype(jnp.bfloat16)
    # folded BN affines, zero padded so padded channel lanes stay exactly 0
    for i, c in ((1, 32), (2, 64), (3, 128)):
        s, b = raw[f"bn{i}"]
        p[f"s{i}"] = pad_row(s.reshape(1, c))
        p[f"b{i}"] = pad_row(b.reshape(1, c))
    # linear1: torch (256,512), input idx = c*4 + (h*2+w) -> kernel row (h*2+w)*128 + c
    wl1 = raw["wl1"].T.reshape(CPAD, 4, 256).transpose(1, 0, 2).reshape(4 * CPAD, 256)
    p["wl1"] = wl1.astype(jnp.bfloat16)
    s4, b4 = raw["bn4"]
    p["s4"] = s4.reshape(1, 256)
    p["b4"] = b4.reshape(1, 256)
    # linear2: torch (4,256) -> (256,4) -> zero-pad output lanes to 128
    p["wl2"] = jnp.pad(raw["wl2"].T, ((0, 0), (0, CPAD - CLASSES))).astype(jnp.float32)
    return p


# ------------------------------ pure-JAX reference ----------------------------------
def reference_forward(x_nchw, raw):
    x = jnp.transpose(x_nchw, (0, 2, 3, 1)).astype(jnp.float32)

    def conv_block(x, w_oihw, scale, shift):
        N, H, W, Cin = x.shape
        Cout = w_oihw.shape[0]
        xp = jnp.pad(x, ((0, 0), (1, 1), (1, 1), (0, 0)))
        cols = [xp[:, dy:dy + H, dx:dx + W, :] for dy in range(3) for dx in range(3)]
        pat = jnp.concatenate(cols, axis=-1).reshape(N * H * W, 9 * Cin)
        wmat = jnp.transpose(w_oihw, (2, 3, 1, 0)).reshape(9 * Cin, Cout)
        y = jnp.maximum(pat @ wmat * scale + shift, 0.0).reshape(N, H, W, Cout)
        return jnp.maximum(jnp.maximum(y[:, 0::2, 0::2], y[:, 0::2, 1::2]),
                           jnp.maximum(y[:, 1::2, 0::2], y[:, 1::2, 1::2]))

    x = conv_block(x, raw["w1"], *raw["bn1"])
    x = conv_block(x, raw["w2"], *raw["bn2"])
    x = conv_block(x, raw["w3"], *raw["bn3"])
    x = jnp.transpose(x, (0, 3, 1, 2)).reshape(x.shape[0], -1)        # NCHW flatten order
    x = jnp.maximum(x @ raw["wl1"].T * raw["bn4"][0] + raw["bn4"][1], 0.0)
    return jax.nn.softmax(x @ raw["wl2"].T, axis=1)


# ------------------------------ main -------------------------------------------------
if __name__ == "__main__":
    key = jax.random.PRNGKey(0)
    pkey, xkey = jax.random.split(key)
    raw = init_raw_params(pkey)
    params = prepare_kernel_params(raw)
    x = jax.random.normal(xkey, (BATCH, 1, IMG_HEIGHT, IMG_WIDTH), dtype=jnp.float32)

    out = jax.jit(forward)(x, params)
    out = jax.block_until_ready(out)
    ref = reference_forward(x, raw)

    assert out.shape == (BATCH, CLASSES)
    assert bool(jnp.all(jnp.isfinite(out)))
    assert bool(jnp.allclose(out.sum(axis=1), 1.0, atol=1e-4))
    assert bool(jnp.allclose(out, ref, atol=2e-2))
    print("KERNEL_OK")
</pallas_src>

<mosaic_0001>
module attributes {stable_mosaic.version = 11 : i64} {
  func.func @fused_cnn_kernel(%arg0: i32, %arg1: memref<1x18x18x128xf32, #tpu.memory_space<vmem>>, %arg2: memref<9x128xf32, #tpu.memory_space<vmem>>, %arg3: memref<1x128xf32, #tpu.memory_space<vmem>>, %arg4: memref<1x128xf32, #tpu.memory_space<vmem>>, %arg5: memref<1152x128xbf16, #tpu.memory_space<vmem>>, %arg6: memref<1x128xf32, #tpu.memory_space<vmem>>, %arg7: memref<1x128xf32, #tpu.memory_space<vmem>>, %arg8: memref<1152x128xbf16, #tpu.memory_space<vmem>>, %arg9: memref<1x128xf32, #tpu.memory_space<vmem>>, %arg10: memref<1x128xf32, #tpu.memory_space<vmem>>, %arg11: memref<512x256xbf16, #tpu.memory_space<vmem>>, %arg12: memref<1x256xf32, #tpu.memory_space<vmem>>, %arg13: memref<1x256xf32, #tpu.memory_space<vmem>>, %arg14: memref<256x128xf32, #tpu.memory_space<vmem>>, %arg15: memref<1x8x128xf32, #tpu.memory_space<vmem>>, %arg16: memref<128x128xf32, #tpu.memory_space<vmem>>, %arg17: memref<10x10x128xf32, #tpu.memory_space<vmem>>, %arg18: memref<80x384xbf16, #tpu.memory_space<vmem>>, %arg19: memref<64x128xf32, #tpu.memory_space<vmem>>, %arg20: memref<32x128xf32, #tpu.memory_space<vmem>>, %arg21: memref<6x6x128xf32, #tpu.memory_space<vmem>>, %arg22: memref<24x384xbf16, #tpu.memory_space<vmem>>, %arg23: memref<16x128xf32, #tpu.memory_space<vmem>>, %arg24: memref<8x128xf32, #tpu.memory_space<vmem>>, %arg25: memref<8x128xf32, #tpu.memory_space<vmem>>) attributes {dimension_semantics = [#tpu.dimension_semantics<parallel>], iteration_bounds = array<i64: 2>, scalar_prefetch = 0 : i64, scratch_operands = 10 : i64, tpu.core_type = #tpu.core_type<tc>, window_params = [{transform_indices = @transform_0, window_bounds = array<i64: 1, 18, 18, 128>}, {pipeline_mode = #tpu.pipeline_mode<synchronous>, transform_indices = @transform_1, window_bounds = array<i64: 9, 128>}, {pipeline_mode = #tpu.pipeline_mode<synchronous>, transform_indices = @transform_2, window_bounds = array<i64: 1, 128>}, {pipeline_mode = #tpu.pipeline_mode<synchronous>, transform_indices = @transform_3, window_bounds = array<i64: 1, 128>}, {pipeline_mode = #tpu.pipeline_mode<synchronous>, transform_indices = @transform_4, window_bounds = array<i64: 1152, 128>}, {pipeline_mode = #tpu.pipeline_mode<synchronous>, transform_indices = @transform_5, window_bounds = array<i64: 1, 128>}, {pipeline_mode = #tpu.pipeline_mode<synchronous>, transform_indices = @transform_6, window_bounds = array<i64: 1, 128>}, {pipeline_mode = #tpu.pipeline_mode<synchronous>, transform_indices = @transform_7, window_bounds = array<i64: 1152, 128>}, {pipeline_mode = #tpu.pipeline_mode<synchronous>, transform_indices = @transform_8, window_bounds = array<i64: 1, 128>}, {pipeline_mode = #tpu.pipeline_mode<synchronous>, transform_indices = @transform_9, window_bounds = array<i64: 1, 128>}, {pipeline_mode = #tpu.pipeline_mode<synchronous>, transform_indices = @transform_10, window_bounds = array<i64: 512, 256>}, {pipeline_mode = #tpu.pipeline_mode<synchronous>, transform_indices = @transform_11, window_bounds = array<i64: 1, 256>}, {pipeline_mode = #tpu.pipeline_mode<synchronous>, transform_indices = @transform_12, window_bounds = array<i64: 1, 256>}, {pipeline_mode = #tpu.pipeline_mode<synchronous>, transform_indices = @transform_13, window_bounds = array<i64: 256, 128>}, {transform_indices = @transform_14, window_bounds = array<i64: 1, 8, 128>}]} {
    %cst = arith.constant 0.000000e+00 : f32
    %0 = vector.broadcast %cst : f32 to vector<10x10x128xf32>
    %c0 = arith.constant 0 : index
    %c0_0 = arith.constant 0 : index
    %c0_1 = arith.constant 0 : index
    %1 = vector.load %arg17[%c0, %c0_0, %c0_1] : memref<10x10x128xf32, #tpu.memory_space<vmem>>, vector<10x10x128xf32>
    tpu.vector_store %arg17[%c0, %c0_0, %c0_1], %0 {strides = array<i32>} : memref<10x10x128xf32, #tpu.memory_space<vmem>>, vector<10x10x128xf32>,
    %cst_2 = arith.constant 0.000000e+00 : f32
    %2 = vector.broadcast %cst_2 : f32 to vector<6x6x128xf32>
    %c0_3 = arith.constant 0 : index
    %c0_4 = arith.constant 0 : index
    %c0_5 = arith.constant 0 : index
    %3 = vector.load %arg21[%c0_3, %c0_4, %c0_5] : memref<6x6x128xf32, #tpu.memory_space<vmem>>, vector<6x6x128xf32>
    tpu.vector_store %arg21[%c0_3, %c0_4, %c0_5], %2 {strides = array<i32>} : memref<6x6x128xf32, #tpu.memory_space<vmem>>, vector<6x6x128xf32>,
    %c0_6 = arith.constant 0 : index
    %c0_7 = arith.constant 0 : index
    %4 = vector.load %arg2[%c0_6, %c0_7] : memref<9x128xf32, #tpu.memory_space<vmem>>, vector<1x128xf32>
    %c1 = arith.constant 1 : index
    %c0_8 = arith.constant 0 : index
    %5 = vector.load %arg2[%c1, %c0_8] : memref<9x128xf32, #tpu.memory_space<vmem>>, vector<1x128xf32>
    %c2 = arith.constant 2 : index
    %c0_9 = arith.constant 0 : index
    %6 = vector.load %arg2[%c2, %c0_9] : memref<9x128xf32, #tpu.memory_space<vmem>>, vector<1x128xf32>
    %c3 = arith.constant 3 : index
    %c0_10 = arith.constant 0 : index
    %7 = vector.load %arg2[%c3, %c0_10] : memref<9x128xf32, #tpu.memory_space<vmem>>, vector<1x128xf32>
    %c4 = arith.constant 4 : index
    %c0_11 = arith.constant 0 : index
    %8 = vector.load %arg2[%c4, %c0_11] : memref<9x128xf32, #tpu.memory_space<vmem>>, vector<1x128xf32>
    %c5 = arith.constant 5 : index
    %c0_12 = arith.constant 0 : index
    %9 = vector.load %arg2[%c5, %c0_12] : memref<9x128xf32, #tpu.memory_space<vmem>>, vector<1x128xf32>
    %c6 = arith.constant 6 : index
    %c0_13 = arith.constant 0 : index
    %10 = vector.load %arg2[%c6, %c0_13] : memref<9x128xf32, #tpu.memory_space<vmem>>, vector<1x128xf32>
    %c7 = arith.constant 7 : index
    %c0_14 = arith.constant 0 : index
    %11 = vector.load %arg2[%c7, %c0_14] : memref<9x128xf32, #tpu.memory_space<vmem>>, vector<1x128xf32>
    %c8 = arith.constant 8 : index
    %c0_15 = arith.constant 0 : index
    %12 = vector.load %arg2[%c8, %c0_15] : memref<9x128xf32, #tpu.memory_space<vmem>>, vector<1x128xf32>
    %c0_16 = arith.constant 0 : index
    %c0_17 = arith.constant 0 : index
    %13 = vector.load %arg3[%c0_16, %c0_17] : memref<1x128xf32, #tpu.memory_space<vmem>>, vector<1x128xf32>
    %c0_18 = arith.constant 0 : index
    %c0_19 = arith.constant 0 : index
    %14 = vector.load %arg4[%c0_18, %c0_19] : memref<1x128xf32, #tpu.memory_space<vmem>>, vector<1x128xf32>
    %cst_20 = arith.constant 0.000000e+00 : f32
    %15 = vector.broadcast %cst_20 : f32 to vector<2x16x128xf32>
    %c0_21 = arith.constant 0 : index
    %c0_22 = arith.constant 0 : index
    %c0_23 = arith.constant 0 : index
    %c0_24 = arith.constant 0 : index
    %16 = vector.load %arg1[%c0_21, %c0_22, %c0_23, %c0_24] : memref<1x18x18x128xf32, #tpu.memory_space<vmem>>, vector<1x2x16x128xf32>
    %17 = vector.shape_cast %16 : vector<1x2x16x128xf32> to vector<2x16x128xf32>
    %18 = vector.shape_cast %4 : vector<1x128xf32> to vector<1x1x128xf32>
    %19 = vector.broadcast %18 : vector<1x1x128xf32> to vector<2x16x128xf32>
    %20 = arith.mulf %17, %19 : vector<2x16x128xf32>
    %21 = arith.addf %15, %20 : vector<2x16x128xf32>
    %c0_25 = arith.constant 0 : index
    %c0_26 = arith.constant 0 : index
    %c1_27 = arith.constant 1 : index
    %c0_28 = arith.constant 0 : index
    %22 = vector.load %arg1[%c0_25, %c0_26, %c1_27, %c0_28] : memref<1x18x18x128xf32, #tpu.memory_space<vmem>>, vector<1x2x16x128xf32>
    %23 = vector.shape_cast %22 : vector<1x2x16x128xf32> to vector<2x16x128xf32>
    %24 = vector.shape_cast %5 : vector<1x128xf32> to vector<1x1x128xf32>
    %25 = vector.broadcast %24 : vector<1x1x128xf32> to vector<2x16x128xf32>
    %26 = arith.mulf %23, %25 : vector<2x16x128xf32>
    %27 = arith.addf %21, %26 : vector<2x16x128xf32>
    %c0_29 = arith.constant 0 : index
    %c0_30 = arith.constant 0 : index
    %c2_31 = arith.constant 2 : index
    %c0_32 = arith.constant 0 : index
    %28 = vector.load %arg1[%c0_29, %c0_30, %c2_31, %c0_32] : memref<1x18x18x128xf32, #tpu.memory_space<vmem>>, vector<1x2x16x128xf32>
    %29 = vector.shape_cast %28 : vector<1x2x16x128xf32> to vector<2x16x128xf32>
    %30 = vector.shape_cast %6 : vector<1x128xf32> to vector<1x1x128xf32>
    %31 = vector.broadcast %30 : vector<1x1x128xf32> to vector<2x16x128xf32>
    %32 = arith.mulf %29, %31 : vector<2x16x128xf32>
    %33 = arith.addf %27, %32 : vector<2x16x128xf32>
    %c0_33 = arith.constant 0 : index
    %c1_34 = arith.constant 1 : index
    %c0_35 = arith.constant 0 : index
    %c0_36 = arith.constant 0 : index
    %34 = vector.load %arg1[%c0_33, %c1_34, %c0_35, %c0_36] : memref<1x18x18x128xf32, #tpu.memory_space<vmem>>, vector<1x2x16x128xf32>
    %35 = vector.shape_cast %34 : vector<1x2x16x128xf32> to vector<2x16x128xf32>
    %36 = vector.shape_cast %7 : vector<1x128xf32> to vector<1x1x128xf32>
    %37 = vector.broadcast %36 : vector<1x1x128xf32> to vector<2x16x128xf32>
    %38 = arith.mulf %35, %37 : vector<2x16x128xf32>
    %39 = arith.addf %33, %38 : vector<2x16x128xf32>
    %c0_37 = arith.constant 0 : index
    %c1_38 = arith.constant 1 : index
    %c1_39 = arith.constant 1 : index
    %c0_40 = arith.constant 0 : index
    %40 = vector.load %arg1[%c0_37, %c1_38, %c1_39, %c0_40] : memref<1x18x18x128xf32, #tpu.memory_space<vmem>>, vector<1x2x16x128xf32>
    %41 = vector.shape_cast %40 : vector<1x2x16x128xf32> to vector<2x16x128xf32>
    %42 = vector.shape_cast %8 : vector<1x128xf32> to vector<1x1x128xf32>
    %43 = vector.broadcast %42 : vector<1x1x128xf32> to vector<2x16x128xf32>
    %44 = arith.mulf %41, %43 : vector<2x16x128xf32>
    %45 = arith.addf %39, %44 : vector<2x16x128xf32>
    %c0_41 = arith.constant 0 : index
    %c1_42 = arith.constant 1 : index
    %c2_43 = arith.constant 2 : index
    %c0_44 = arith.constant 0 : index
    %46 = vector.load %arg1[%c0_41, %c1_42, %c2_43, %c0_44] : memref<1x18x18x128xf32, #tpu.memory_space<vmem>>, vector<1x2x16x128xf32>
    %47 = vector.shape_cast %46 : vector<1x2x16x128xf32> to vector<2x16x128xf32>
    %48 = vector.shape_cast %9 : vector<1x128xf32> to vector<1x1x128xf32>
    %49 = vector.broadcast %48 : vector<1x1x128xf32> to vector<2x16x128xf32>
    %50 = arith.mulf %47, %49 : vector<2x16x128xf32>
    %51 = arith.addf %45, %50 : vector<2x16x128xf32>
    %c0_45 = arith.constant 0 : index
    %c2_46 = arith.constant 2 : index
    %c0_47 = arith.constant 0 : index
    %c0_48 = arith.constant 0 : index
    %52 = vector.load %arg1[%c0_45, %c2_46, %c0_47, %c0_48] : memref<1x18x18x128xf32, #tpu.memory_space<vmem>>, vector<1x2x16x128xf32>
    %53 = vector.shape_cast %52 : vector<1x2x16x128xf32> to vector<2x16x128xf32>
    %54 = vector.shape_cast %10 : vector<1x128xf32> to vector<1x1x128xf32>
    %55 = vector.broadcast %54 : vector<1x1x128xf32> to vector<2x16x128xf32>
    %56 = arith.mulf %53, %55 : vector<2x16x128xf32>
    %57 = arith.addf %51, %56 : vector<2x16x128xf32>
    %c0_49 = arith.constant 0 : index
    %c2_50 = arith.constant 2 : index
    %c1_51 = arith.constant 1 : index
    %c0_52 = arith.constant 0 : index
    %58 = vector.load %arg1[%c0_49, %c2_50, %c1_51, %c0_52] : memref<1x18x18x128xf32, #tpu.memory_space<vmem>>, vector<1x2x16x128xf32>
    %59 = vector.shape_cast %58 : vector<1x2x16x128xf32> to vector<2x16x128xf32>
    %60 = vector.shape_cast %11 : vector<1x128xf32> to vector<1x1x128xf32>
    %61 = vector.broadcast %60 : vector<1x1x128xf32> to vector<2x16x128xf32>
    %62 = arith.mulf %59, %61 : vector<2x16x128xf32>
    %63 = arith.addf %57, %62 : vector<2x16x128xf32>
    %c0_53 = arith.constant 0 : index
    %c2_54 = arith.constant 2 : index
    %c2_55 = arith.constant 2 : index
    %c0_56 = arith.constant 0 : index
    %64 = vector.load %arg1[%c0_53, %c2_54, %c2_55, %c0_56] : memref<1x18x18x128xf32, #tpu.memory_space<vmem>>, vector<1x2x16x128xf32>
    %65 = vector.shape_cast %64 : vector<1x2x16x128xf32> to vector<2x16x128xf32>
    %66 = vector.shape_cast %12 : vector<1x128xf32> to vector<1x1x128xf32>
    %67 = vector.broadcast %66 : vector<1x1x128xf32> to vector<2x16x128xf32>
    %68 = arith.mulf %65, %67 : vector<2x16x128xf32>
    %69 = arith.addf %63, %68 : vector<2x16x128xf32>
    %70 = vector.shape_cast %13 : vector<1x128xf32> to vector<1x1x128xf32>
    %71 = vector.broadcast %70 : vector<1x1x128xf32> to vector<2x16x128xf32>
    %72 = arith.mulf %69, %71 : vector<2x16x128xf32>
    %73 = vector.shape_cast %14 : vector<1x128xf32> to vector<1x1x128xf32>
    %74 = vector.broadcast %73 : vector<1x1x128xf32> to vector<2x16x128xf32>
    %75 = arith.addf %72, %74 : vector<2x16x128xf32>
    %cst_57 = arith.constant 0.000000e+00 : f32
    %76 = vector.broadcast %cst_57 : f32 to vector<2x16x128xf32>
    %77 = arith.maximumf %75, %76 : vector<2x16x128xf32>
    %78 = vector.extract_strided_slice %77 {offsets = [0, 0, 0], sizes = [1, 16, 128], strides = [1, 1, 1]} : vector<2x16x128xf32> to vector<1x16x128xf32>
    %79 = vector.shape_cast %78 : vector<1x16x128xf32> to vector<16x128xf32>
    %80 = vector.extract_strided_slice %77 {offsets = [1, 0, 0], sizes = [1, 16, 128], strides = [1, 1, 1]} : vector<2x16x128xf32> to vector<1x16x128xf32>
    %81 = vector.shape_cast %80 : vector<1x16x128xf32> to vector<16x128xf32>
    %82 = arith.maximumf %79, %81 : vector<16x128xf32>
    %c0_58 = arith.constant 0 : index
    %c0_59 = arith.constant 0 : index
    %83 = vector.load %arg16[%c0_58, %c0_59] : memref<128x128xf32, #tpu.memory_space<vmem>>, vector<16x128xf32>
    tpu.vector_store %arg16[%c0_58, %c0_59], %82 {strides = array<i32>} : memref<128x128xf32, #tpu.memory_space<vmem>>, vector<16x128xf32>,
    %cst_60 = arith.constant 0.000000e+00 : f32
    %84 = vector.broadcast %cst_60 : f32 to vector<2x16x128xf32>
    %c0_61 = arith.constant 0 : index
    %c2_62 = arith.constant 2 : index
    %c0_63 = arith.constant 0 : index
    %c0_64 = arith.constant 0 : index
    %85 = vector.load %arg1[%c0_61, %c2_62, %c0_63, %c0_64] : memref<1x18x18x128xf32, #tpu.memory_space<vmem>>, vector<1x2x16x128xf32>
    %86 = vector.shape_cast %85 : vector<1x2x16x128xf32> to vector<2x16x128xf32>
    %87 = vector.shape_cast %4 : vector<1x128xf32> to vector<1x1x128xf32>
    %88 = vector.broadcast %87 : vector<1x1x128xf32> to vector<2x16x128xf32>
    %89 = arith.mulf %86, %88 : vector<2x16x128xf32>
    %90 = arith.addf %84, %89 : vector<2x16x128xf32>
    %c0_65 = arith.constant 0 : index
    %c2_66 = arith.constant 2 : index
    %c1_67 = arith.constant 1 : index
    %c0_68 = arith.constant 0 : index
    %91 = vector.load %arg1[%c0_65, %c2_66, %c1_67, %c0_68] : memref<1x18x18x128xf32, #tpu.memory_space<vmem>>, vector<1x2x16x128xf32>
    %92 = vector.shape_cast %91 : vector<1x2x16x128xf32> to vector<2x16x128xf32>
    %93 = vector.shape_cast %5 : vector<1x128xf32> to vector<1x1x128xf32>
    %94 = vector.broadcast %93 : vector<1x1x128xf32> to vector<2x16x128xf32>
    %95 = arith.mulf %92, %94 : vector<2x16x128xf32>
    %96 = arith.addf %90, %95 : vector<2x16x128xf32>
    %c0_69 = arith.constant 0 : index
    %c2_70 = arith.constant 2 : index
    %c2_71 = arith.constant 2 : index
    %c0_72 = arith.constant 0 : index
    %97 = vector.load %arg1[%c0_69, %c2_70, %c2_71, %c0_72] : memref<1x18x18x128xf32, #tpu.memory_space<vmem>>, vector<1x2x16x128xf32>
    %98 = vector.shape_cast %97 : vector<1x2x16x128xf32> to vector<2x16x128xf32>
    %99 = vector.shape_cast %6 : vector<1x128xf32> to vector<1x1x128xf32>
    %100 = vector.broadcast %99 : vector<1x1x128xf32> to vector<2x16x128xf32>
    %101 = arith.mulf %98, %100 : vector<2x16x128xf32>
    %102 = arith.addf %96, %101 : vector<2x16x128xf32>
    %c0_73 = arith.constant 0 : index
    %c3_74 = arith.constant 3 : index
    %c0_75 = arith.constant 0 : index
    %c0_76 = arith.constant 0 : index
    %103 = vector.load %arg1[%c0_73, %c3_74, %c0_75, %c0_76] : memref<1x18x18x128xf32, #tpu.memory_space<vmem>>, vector<1x2x16x128xf32>
    %104 = vector.shape_cast %103 : vector<1x2x16x128xf32> to vector<2x16x128xf32>
    %105 = vector.shape_cast %7 : vector<1x128xf32> to vector<1x1x128xf32>
    %106 = vector.broadcast %105 : vector<1x1x128xf32> to vector<2x16x128xf32>
    %107 = arith.mulf %104, %106 : vector<2x16x128xf32>
    %108 = arith.addf %102, %107 : vector<2x16x128xf32>
    %c0_77 = arith.constant 0 : index
    %c3_78 = arith.constant 3 : index
    %c1_79 = arith.constant 1 : index
    %c0_80 = arith.constant 0 : index
    %109 = vector.load %arg1[%c0_77, %c3_78, %c1_79, %c0_80] : memref<1x18x18x128xf32, #tpu.memory_space<vmem>>, vector<1x2x16x128xf32>
    %110 = vector.shape_cast %109 : vector<1x2x16x128xf32> to vector<2x16x128xf32>
    %111 = vector.shape_cast %8 : vector<1x128xf32> to vector<1x1x128xf32>
    %112 = vector.broadcast %111 : vector<1x1x128xf32> to vector<2x16x128xf32>
    %113 = arith.mulf %110, %112 : vector<2x16x128xf32>
    %114 = arith.addf %108, %113 : vector<2x16x128xf32>
    %c0_81 = arith.constant 0 : index
    %c3_82 = arith.constant 3 : index
    %c2_83 = arith.constant 2 : index
    %c0_84 = arith.constant 0 : index
    %115 = vector.load %arg1[%c0_81, %c3_82, %c2_83, %c0_84] : memref<1x18x18x128xf32, #tpu.memory_space<vmem>>, vector<1x2x16x128xf32>
    %116 = vector.shape_cast %115 : vector<1x2x16x128xf32> to vector<2x16x128xf32>
    %117 = vector.shape_cast %9 : vector<1x128xf32> to vector<1x1x128xf32>
    %118 = vector.broadcast %117 : vector<1x1x128xf32> to vector<2x16x128xf32>
    %119 = arith.mulf %116, %118 : vector<2x16x128xf32>
    %120 = arith.addf %114, %119 : vector<2x16x128xf32>
    %c0_85 = arith.constant 0 : index
    %c4_86 = arith.constant 4 : index
    %c0_87 = arith.constant 0 : index
    %c0_88 = arith.constant 0 : index
    %121 = vector.load %arg1[%c0_85, %c4_86, %c0_87, %c0_88] : memref<1x18x18x128xf32, #tpu.memory_space<vmem>>, vector<1x2x16x128xf32>
    %122 = vector.shape_cast %121 : vector<1x2x16x128xf32> to vector<2x16x128xf32>
    %123 = vector.shape_cast %10 : vector<1x128xf32> to vector<1x1x128xf32>
    %124 = vector.broadcast %123 : vector<1x1x128xf32> to vector<2x16x128xf32>
    %125 = arith.mulf %122, %124 : vector<2x16x128xf32>
    %126 = arith.addf %120, %125 : vector<2x16x128xf32>
    %c0_89 = arith.constant 0 : index
    %c4_90 = arith.constant 4 : index
    %c1_91 = arith.constant 1 : index
    %c0_92 = arith.constant 0 : index
    %127 = vector.load %arg1[%c0_89, %c4_90, %c1_91, %c0_92] : memref<1x18x18x128xf32, #tpu.memory_space<vmem>>, vector<1x2x16x128xf32>
    %128 = vector.shape_cast %127 : vector<1x2x16x128xf32> to vector<2x16x128xf32>
    %129 = vector.shape_cast %11 : vector<1x128xf32> to vector<1x1x128xf32>
    %130 = vector.broadcast %129 : vector<1x1x128xf32> to vector<2x16x128xf32>
    %131 = arith.mulf %128, %130 : vector<2x16x128xf32>
    %132 = arith.addf %126, %131 : vector<2x16x128xf32>
    %c0_93 = arith.constant 0 : index
    %c4_94 = arith.constant 4 : index
    %c2_95 = arith.constant 2 : index
    %c0_96 = arith.constant 0 : index
    %133 = vector.load %arg1[%c0_93, %c4_94, %c2_95, %c0_96] : memref<1x18x18x128xf32, #tpu.memory_space<vmem>>, vector<1x2x16x128xf32>
    %134 = vector.shape_cast %133 : vector<1x2x16x128xf32> to vector<2x16x128xf32>
    %135 = vector.shape_cast %12 : vector<1x128xf32> to vector<1x1x128xf32>
    %136 = vector.broadcast %135 : vector<1x1x128xf32> to vector<2x16x128xf32>
    %137 = arith.mulf %134, %136 : vector<2x16x128xf32>
    %138 = arith.addf %132, %137 : vector<2x16x128xf32>
    %139 = vector.shape_cast %13 : vector<1x128xf32> to vector<1x1x128xf32>
    %140 = vector.broadcast %139 : vector<1x1x128xf32> to vector<2x16x128xf32>
    %141 = arith.mulf %138, %140 : vector<2x16x128xf32>
    %142 = vector.shape_cast %14 : vector<1x128xf32> to vector<1x1x128xf32>
    %143 = vector.broadcast %142 : vector<1x1x128xf32> to vector<2x16x128xf32>
    %144 = arith.addf %141, %143 : vector<2x16x128xf32>
    %cst_97 = arith.constant 0.000000e+00 : f32
    %145 = vector.broadcast %cst_97 : f32 to vector<2x16x128xf32>
    %146 = arith.maximumf %144, %145 : vector<2x16x128xf32>
    %147 = vector.extract_strided_slice %146 {offsets = [0, 0, 0], sizes = [1, 16, 128], strides = [1, 1, 1]} : vector<2x16x128xf32> to vector<1x16x128xf32>
    %148 = vector.shape_cast %147 : vector<1x16x128xf32> to vector<16x128xf32>
    %149 = vector.extract_strided_slice %146 {offsets = [1, 0, 0], sizes = [1, 16, 128], strides = [1, 1, 1]} : vector<2x16x128xf32> to vector<1x16x128xf32>
    %150 = vector.shape_cast %149 : vector<1x16x128xf32> to vector<16x128xf32>
    %151 = arith.maximumf %148, %150 : vector<16x128xf32>
    %c16 = arith.constant 16 : index
    %c0_98 = arith.constant 0 : index
    %152 = vector.load %arg16[%c16, %c0_98] : memref<128x128xf32, #tpu.memory_space<vmem>>, vector<16x128xf32>
    tpu.vector_store %arg16[%c16, %c0_98], %151 {strides = array<i32>} : memref<128x128xf32, #tpu.memory_space<vmem>>, vector<16x128xf32>,
    %cst_99 = arith.constant 0.000000e+00 : f32
    %153 = vector.broadcast %cst_99 : f32 to vector<2x16x128xf32>
    %c0_100 = arith.constant 0 : index
    %c4_101 = arith.constant 4 : index
    %c0_102 = arith.constant 0 : index
    %c0_103 = arith.constant 0 : index
    %154 = vector.load %arg1[%c0_100, %c4_101, %c0_102, %c0_103] : memref<1x18x18x128xf32, #tpu.memory_space<vmem>>, vector<1x2x16x128xf32>
    %155 = vector.shape_cast %154 : vector<1x2x16x128xf32> to vector<2x16x128xf32>
    %156 = vector.shape_cast %4 : vector<1x128xf32> to vector<1x1x128xf32>
    %157 = vector.broadcast %156 : vector<1x1x128xf32> to vector<2x16x128xf32>
    %158 = arith.mulf %155, %157 : vector<2x16x128xf32>
    %159 = arith.addf %153, %158 : vector<2x16x128xf32>
    %c0_104 = arith.constant 0 : index
    %c4_105 = arith.constant 4 : index
    %c1_106 = arith.constant 1 : index
    %c0_107 = arith.constant 0 : index
    %160 = vector.load %arg1[%c0_104, %c4_105, %c1_106, %c0_107] : memref<1x18x18x128xf32, #tpu.memory_space<vmem>>, vector<1x2x16x128xf32>
    %161 = vector.shape_cast %160 : vector<1x2x16x128xf32> to vector<2x16x128xf32>
    %162 = vector.shape_cast %5 : vector<1x128xf32> to vector<1x1x128xf32>
    %163 = vector.broadcast %162 : vector<1x1x128xf32> to vector<2x16x128xf32>
    %164 = arith.mulf %161, %163 : vector<2x16x128xf32>
    %165 = arith.addf %159, %164 : vector<2x16x128xf32>
    %c0_108 = arith.constant 0 : index
    %c4_109 = arith.constant 4 : index
    %c2_110 = arith.constant 2 : index
    %c0_111 = arith.constant 0 : index
    %166 = vector.load %arg1[%c0_108, %c4_109, %c2_110, %c0_111] : memref<1x18x18x128xf32, #tpu.memory_space<vmem>>, vector<1x2x16x128xf32>
    %167 = vector.shape_cast %166 : vector<1x2x16x128xf32> to vector<2x16x128xf32>
    %168 = vector.shape_cast %6 : vector<1x128xf32> to vector<1x1x128xf32>
    %169 = vector.broadcast %168 : vector<1x1x128xf32> to vector<2x16x128xf32>
    %170 = arith.mulf %167, %169 : vector<2x16x128xf32>
    %171 = arith.addf %165, %170 : vector<2x16x128xf32>
    %c0_112 = arith.constant 0 : index
    %c5_113 = arith.constant 5 : index
    %c0_114 = arith.constant 0 : index
    %c0_115 = arith.constant 0 : index
    %172 = vector.load %arg1[%c0_112, %c5_113, %c0_114, %c0_115] : memref<1x18x18x128xf32, #tpu.memory_space<vmem>>, vector<1x2x16x128xf32>
    %173 = vector.shape_cast %172 : vector<1x2x16x128xf32> to vector<2x16x128xf32>
    %174 = vector.shape_cast %7 : vector<1x128xf32> to vector<1x1x128xf32>
    %175 = vector.broadcast %174 : vector<1x1x128xf32> to vector<2x16x128xf32>
    %176 = arith.mulf %173, %175 : vector<2x16x128xf32>
    %177 = arith.addf %171, %176 : vector<2x16x128xf32>
    %c0_116 = arith.constant 0 : index
    %c5_117 = arith.constant 5 : index
    %c1_118 = arith.constant 1 : index
    %c0_119 = arith.constant 0 : index
    %178 = vector.load %arg1[%c0_116, %c5_117, %c1_118, %c0_119] : memref<1x18x18x128xf32, #tpu.memory_space<vmem>>, vector<1x2x16x128xf32>
    %179 = vector.shape_cast %178 : vector<1x2x16x128xf32> to vector<2x16x128xf32>
    %180 = vector.shape_cast %8 : vector<1x128xf32> to vector<1x1x128xf32>
    %181 = vector.broadcast %180 : vector<1x1x128xf32> to vector<2x16x128xf32>
    %182 = arith.mulf %179, %181 : vector<2x16x128xf32>
    %183 = arith.addf %177, %182 : vector<2x16x128xf32>
    %c0_120 = arith.constant 0 : index
    %c5_121 = arith.constant 5 : index
    %c2_122 = arith.constant 2 : index
    %c0_123 = arith.constant 0 : index
    %184 = vector.load %arg1[%c0_120, %c5_121, %c2_122, %c0_123] : memref<1x18x18x128xf32, #tpu.memory_space<vmem>>, vector<1x2x16x128xf32>
    %185 = vector.shape_cast %184 : vector<1x2x16x128xf32> to vector<2x16x128xf32>
    %186 = vector.shape_cast %9 : vector<1x128xf32> to vector<1x1x128xf32>
    %187 = vector.broadcast %186 : vector<1x1x128xf32> to vector<2x16x128xf32>
    %188 = arith.mulf %185, %187 : vector<2x16x128xf32>
    %189 = arith.addf %183, %188 : vector<2x16x128xf32>
    %c0_124 = arith.constant 0 : index
    %c6_125 = arith.constant 6 : index
    %c0_126 = arith.constant 0 : index
    %c0_127 = arith.constant 0 : index
    %190 = vector.load %arg1[%c0_124, %c6_125, %c0_126, %c0_127] : memref<1x18x18x128xf32, #tpu.memory_space<vmem>>, vector<1x2x16x128xf32>
    %191 = vector.shape_cast %190 : vector<1x2x16x128xf32> to vector<2x16x128xf32>
    %192 = vector.shape_cast %10 : vector<1x128xf32> to vector<1x1x128xf32>
    %193 = vector.broadcast %192 : vector<1x1x128xf32> to vector<2x16x128xf32>
    %194 = arith.mulf %191, %193 : vector<2x16x128xf32>
    %195 = arith.addf %189, %194 : vector<2x16x128xf32>
    %c0_128 = arith.constant 0 : index
    %c6_129 = arith.constant 6 : index
    %c1_130 = arith.constant 1 : index
    %c0_131 = arith.constant 0 : index
    %196 = vector.load %arg1[%c0_128, %c6_129, %c1_130, %c0_131] : memref<1x18x18x128xf32, #tpu.memory_space<vmem>>, vector<1x2x16x128xf32>
    %197 = vector.shape_cast %196 : vector<1x2x16x128xf32> to vector<2x16x128xf32>
    %198 = vector.shape_cast %11 : vector<1x128xf32> to vector<1x1x128xf32>
    %199 = vector.broadcast %198 : vector<1x1x128xf32> to vector<2x16x128xf32>
    %200 = arith.mulf %197, %199 : vector<2x16x128xf32>
    %201 = arith.addf %195, %200 : vector<2x16x128xf32>
    %c0_132 = arith.constant 0 : index
    %c6_133 = arith.constant 6 : index
    %c2_134 = arith.constant 2 : index
    %c0_135 = arith.constant 0 : index
    %202 = vector.load %arg1[%c0_132, %c6_133, %c2_134, %c0_135] : memref<1x18x18x128xf32, #tpu.memory_space<vmem>>, vector<1x2x16x128xf32>
    %203 = vector.shape_cast %202 : vector<1x2x16x128xf32> to vector<2x16x128xf32>
    %204 = vector.shape_cast %12 : vector<1x128xf32> to vector<1x1x128xf32>
    %205 = vector.broadcast %204 : vector<1x1x128xf32> to vector<2x16x128xf32>
    %206 = arith.mulf %203, %205 : vector<2x16x128xf32>
    %207 = arith.addf %201, %206 : vector<2x16x128xf32>
    %208 = vector.shape_cast %13 : vector<1x128xf32> to vector<1x1x128xf32>
    %209 = vector.broadcast %208 : vector<1x1x128xf32> to vector<2x16x128xf32>
    %210 = arith.mulf %207, %209 : vector<2x16x128xf32>
    %211 = vector.shape_cast %14 : vector<1x128xf32> to vector<1x1x128xf32>
    %212 = vector.broadcast %211 : vector<1x1x128xf32> to vector<2x16x128xf32>
    %213 = arith.addf %210, %212 : vector<2x16x128xf32>
    %cst_136 = arith.constant 0.000000e+00 : f32
    %214 = vector.broadcast %cst_136 : f32 to vector<2x16x128xf32>
    %215 = arith.maximumf %213, %214 : vector<2x16x128xf32>
    %216 = vector.extract_strided_slice %215 {offsets = [0, 0, 0], sizes = [1, 16, 128], strides = [1, 1, 1]} : vector<2x16x128xf32> to vector<1x16x128xf32>
    %217 = vector.shape_cast %216 : vector<1x16x128xf32> to vector<16x128xf32>
    %218 = vector.extract_strided_slice %215 {offsets = [1, 0, 0], sizes = [1, 16, 128], strides = [1, 1, 1]} : vector<2x16x128xf32> to vector<1x16x128xf32>
    %219 = vector.shape_cast %218 : vector<1x16x128xf32> to vector<16x128xf32>
    %220 = arith.maximumf %217, %219 : vector<16x128xf32>
    %c32 = arith.constant 32 : index
    %c0_137 = arith.constant 0 : index
    %221 = vector.load %arg16[%c32, %c0_137] : memref<128x128xf32, #tpu.memory_space<vmem>>, vector<16x128xf32>
    tpu.vector_store %arg16[%c32, %c0_137], %220 {strides = array<i32>} : memref<128x128xf32, #tpu.memory_space<vmem>>, vector<16x128xf32>,
    %cst_138 = arith.constant 0.000000e+00 : f32
    %222 = vector.broadcast %cst_138 : f32 to vector<2x16x128xf32>
    %c0_139 = arith.constant 0 : index
    %c6_140 = arith.constant 6 : index
    %c0_141 = arith.constant 0 : index
    %c0_142 = arith.constant 0 : index
    %223 = vector.load %arg1[%c0_139, %c6_140, %c0_141, %c0_142] : memref<1x18x18x128xf32, #tpu.memory_space<vmem>>, vector<1x2x16x128xf32>
    %224 = vector.shape_cast %223 : vector<1x2x16x128xf32> to vector<2x16x128xf32>
    %225 = vector.shape_cast %4 : vector<1x128xf32> to vector<1x1x128xf32>
    %226 = vector.broadcast %225 : vector<1x1x128xf32> to vector<2x16x128xf32>
    %227 = arith.mulf %224, %226 : vector<2x16x128xf32>
    %228 = arith.addf %222, %227 : vector<2x16x128xf32>
    %c0_143 = arith.constant 0 : index
    %c6_144 = arith.constant 6 : index
    %c1_145 = arith.constant 1 : index
    %c0_146 = arith.constant 0 : index
    %229 = vector.load %arg1[%c0_143, %c6_144, %c1_145, %c0_146] : memref<1x18x18x128xf32, #tpu.memory_space<vmem>>, vector<1x2x16x128xf32>
    %230 = vector.shape_cast %229 : vector<1x2x16x128xf32> to vector<2x16x128xf32>
    %231 = vector.shape_cast %5 : vector<1x128xf32> to vector<1x1x128xf32>
    %232 = vector.broadcast %231 : vector<1x1x128xf32> to vector<2x16x128xf32>
    %233 = arith.mulf %230, %232 : vector<2x16x128xf32>
    %234 = arith.addf %228, %233 : vector<2x16x128xf32>
    %c0_147 = arith.constant 0 : index
    %c6_148 = arith.constant 6 : index
    %c2_149 = arith.constant 2 : index
    %c0_150 = arith.constant 0 : index
    %235 = vector.load %arg1[%c0_147, %c6_148, %c2_149, %c0_150] : memref<1x18x18x128xf32, #tpu.memory_space<vmem>>, vector<1x2x16x128xf32>
    %236 = vector.shape_cast %235 : vector<1x2x16x128xf32> to vector<2x16x128xf32>
    %237 = vector.shape_cast %6 : vector<1x128xf32> to vector<1x1x128xf32>
    %238 = vector.broadcast %237 : vector<1x1x128xf32> to vector<2x16x128xf32>
    %239 = arith.mulf %236, %238 : vector<2x16x128xf32>
    %240 = arith.addf %234, %239 : vector<2x16x128xf32>
    %c0_151 = arith.constant 0 : index
    %c7_152 = arith.constant 7 : index
    %c0_153 = arith.constant 0 : index
    %c0_154 = arith.constant 0 : index
    %241 = vector.load %arg1[%c0_151, %c7_152, %c0_153, %c0_154] : memref<1x18x18x128xf32, #tpu.memory_space<vmem>>, vector<1x2x16x128xf32>
    %242 = vector.shape_cast %241 : vector<1x2x16x128xf32> to vector<2x16x128xf32>
    %243 = vector.shape_cast %7 : vector<1x128xf32> to vector<1x1x128xf32>
    %244 = vector.broadcast %243 : vector<1x1x128xf32> to vector<2x16x128xf32>
    %245 = arith.mulf %242, %244 : vector<2x16x128xf32>
    %246 = arith.addf %240, %245 : vector<2x16x128xf32>
    %c0_155 = arith.constant 0 : index
    %c7_156 = arith.constant 7 : index
    %c1_157 = arith.constant 1 : index
    %c0_158 = arith.constant 0 : index
    %247 = vector.load %arg1[%c0_155, %c7_156, %c1_157, %c0_158] : memref<1x18x18x128xf32, #tpu.memory_space<vmem>>, vector<1x2x16x128xf32>
    %248 = vector.shape_cast %247 : vector<1x2x16x128xf32> to vector<2x16x128xf32>
    %249 = vector.shape_cast %8 : vector<1x128xf32> to vector<1x1x128xf32>
    %250 = vector.broadcast %249 : vector<1x1x128xf32> to vector<2x16x128xf32>
    %251 = arith.mulf %248, %250 : vector<2x16x128xf32>
    %252 = arith.addf %246, %251 : vector<2x16x128xf32>
    %c0_159 = arith.constant 0 : index
    %c7_160 = arith.constant 7 : index
    %c2_161 = arith.constant 2 : index
    %c0_162 = arith.constant 0 : index
    %253 = vector.load %arg1[%c0_159, %c7_160, %c2_161, %c0_162] : memref<1x18x18x128xf32, #tpu.memory_space<vmem>>, vector<1x2x16x128xf32>
    %254 = vector.shape_cast %253 : vector<1x2x16x128xf32> to vector<2x16x128xf32>
    %255 = vector.shape_cast %9 : vector<1x128xf32> to vector<1x1x128xf32>
    %256 = vector.broadcast %255 : vector<1x1x128xf32> to vector<2x16x128xf32>
    %257 = arith.mulf %254, %256 : vector<2x16x128xf32>
    %258 = arith.addf %252, %257 : vector<2x16x128xf32>
    %c0_163 = arith.constant 0 : index
    %c8_164 = arith.constant 8 : index
    %c0_165 = arith.constant 0 : index
    %c0_166 = arith.constant 0 : index
    %259 = vector.load %arg1[%c0_163, %c8_164, %c0_165, %c0_166] : memref<1x18x18x128xf32, #tpu.memory_space<vmem>>, vector<1x2x16x128xf32>
    %260 = vector.shape_cast %259 : vector<1x2x16x128xf32> to vector<2x16x128xf32>
    %261 = vector.shape_cast %10 : vector<1x128xf32> to vector<1x1x128xf32>
    %262 = vector.broadcast %261 : vector<1x1x128xf32> to vector<2x16x128xf32>
    %263 = arith.mulf %260, %262 : vector<2x16x128xf32>
    %264 = arith.addf %258, %263 : vector<2x16x128xf32>
    %c0_167 = arith.constant 0 : index
    %c8_168 = arith.constant 8 : index
    %c1_169 = arith.constant 1 : index
    %c0_170 = arith.constant 0 : index
    %265 = vector.load %arg1[%c0_167, %c8_168, %c1_169, %c0_170] : memref<1x18x18x128xf32, #tpu.memory_space<vmem>>, vector<1x2x16x128xf32>
    %266 = vector.shape_cast %265 : vector<1x2x16x128xf32> to vector<2x16x128xf32>
    %267 = vector.shape_cast %11 : vector<1x128xf32> to vector<1x1x128xf32>
    %268 = vector.broadcast %267 : vector<1x1x128xf32> to vector<2x16x128xf32>
    %269 = arith.mulf %266, %268 : vector<2x16x128xf32>
    %270 = arith.addf %264, %269 : vector<2x16x128xf32>
    %c0_171 = arith.constant 0 : index
    %c8_172 = arith.constant 8 : index
    %c2_173 = arith.constant 2 : index
    %c0_174 = arith.constant 0 : index
    %271 = vector.load %arg1[%c0_171, %c8_172, %c2_173, %c0_174] : memref<1x18x18x128xf32, #tpu.memory_space<vmem>>, vector<1x2x16x128xf32>
    %272 = vector.shape_cast %271 : vector<1x2x16x128xf32> to vector<2x16x128xf32>
    %273 = vector.shape_cast %12 : vector<1x128xf32> to vector<1x1x128xf32>
    %274 = vector.broadcast %273 : vector<1x1x128xf32> to vector<2x16x128xf32>
    %275 = arith.mulf %272, %274 : vector<2x16x128xf32>
    %276 = arith.addf %270, %275 : vector<2x16x128xf32>
    %277 = vector.shape_cast %13 : vector<1x128xf32> to vector<1x1x128xf32>
    %278 = vector.broadcast %277 : vector<1x1x128xf32> to vector<2x16x128xf32>
    %279 = arith.mulf %276, %278 : vector<2x16x128xf32>
    %280 = vector.shape_cast %14 : vector<1x128xf32> to vector<1x1x128xf32>
    %281 = vector.broadcast %280 : vector<1x1x128xf32> to vector<2x16x128xf32>
    %282 = arith.addf %279, %281 : vector<2x16x128xf32>
    %cst_175 = arith.constant 0.000000e+00 : f32
    %283 = vector.broadcast %cst_175 : f32 to vector<2x16x128xf32>
    %284 = arith.maximumf %282, %283 : vector<2x16x128xf32>
    %285 = vector.extract_strided_slice %284 {offsets = [0, 0, 0], sizes = [1, 16, 128], strides = [1, 1, 1]} : vector<2x16x128xf32> to vector<1x16x128xf32>
    %286 = vector.shape_cast %285 : vector<1x16x128xf32> to vector<16x128xf32>
    %287 = vector.extract_strided_slice %284 {offsets = [1, 0, 0], sizes = [1, 16, 128], strides = [1, 1, 1]} : vector<2x16x128xf32> to vector<1x16x128xf32>
    %288 = vector.shape_cast %287 : vector<1x16x128xf32> to vector<16x128xf32>
    %289 = arith.maximumf %286, %288 : vector<16x128xf32>
    %c48 = arith.constant 48 : index
    %c0_176 = arith.constant 0 : index
    %290 = vector.load %arg16[%c48, %c0_176] : memref<128x128xf32, #tpu.memory_space<vmem>>, vector<16x128xf32>
    tpu.vector_store %arg16[%c48, %c0_176], %289 {strides = array<i32>} : memref<128x128xf32, #tpu.memory_space<vmem>>, vector<16x128xf32>,
    %cst_177 = arith.constant 0.000000e+00 : f32
    %291 = vector.broadcast %cst_177 : f32 to vector<2x16x128xf32>
    %c0_178 = arith.constant 0 : index
    %c8_179 = arith.constant 8 : index
    %c0_180 = arith.constant 0 : index
    %c0_181 = arith.constant 0 : index
    %292 = vector.load %arg1[%c0_178, %c8_179, %c0_180, %c0_181] : memref<1x18x18x128xf32, #tpu.memory_space<vmem>>, vector<1x2x16x128xf32>
    %293 = vector.shape_cast %292 : vector<1x2x16x128xf32> to vector<2x16x128xf32>
    %294 = vector.shape_cast %4 : vector<1x128xf32> to vector<1x1x128xf32>
    %295 = vector.broadcast %294 : vector<1x1x128xf32> to vector<2x16x128xf32>
    %296 = arith.mulf %293, %295 : vector<2x16x128xf32>
    %297 = arith.addf %291, %296 : vector<2x16x128xf32>
    %c0_182 = arith.constant 0 : index
    %c8_183 = arith.constant 8 : index
    %c1_184 = arith.constant 1 : index
    %c0_185 = arith.constant 0 : index
    %298 = vector.load %arg1[%c0_182, %c8_183, %c1_184, %c0_185] : memref<1x18x18x128xf32, #tpu.memory_space<vmem>>, vector<1x2x16x128xf32>
    %299 = vector.shape_cast %298 : vector<1x2x16x128xf32> to vector<2x16x128xf32>
    %300 = vector.shape_cast %5 : vector<1x128xf32> to vector<1x1x128xf32>
    %301 = vector.broadcast %300 : vector<1x1x128xf32> to vector<2x16x128xf32>
    %302 = arith.mulf %299, %301 : vector<2x16x128xf32>
    %303 = arith.addf %297, %302 : vector<2x16x128xf32>
    %c0_186 = arith.constant 0 : index
    %c8_187 = arith.constant 8 : index
    %c2_188 = arith.constant 2 : index
    %c0_189 = arith.constant 0 : index
    %304 = vector.load %arg1[%c0_186, %c8_187, %c2_188, %c0_189] : memref<1x18x18x128xf32, #tpu.memory_space<vmem>>, vector<1x2x16x128xf32>
    %305 = vector.shape_cast %304 : vector<1x2x16x128xf32> to vector<2x16x128xf32>
    %306 = vector.shape_cast %6 : vector<1x128xf32> to vector<1x1x128xf32>
    %307 = vector.broadcast %306 : vector<1x1x128xf32> to vector<2x16x128xf32>
    %308 = arith.mulf %305, %307 : vector<2x16x128xf32>
    %309 = arith.addf %303, %308 : vector<2x16x128xf32>
    %c0_190 = arith.constant 0 : index
    %c9 = arith.constant 9 : index
    %c0_191 = arith.constant 0 : index
    %c0_192 = arith.constant 0 : index
    %310 = vector.load %arg1[%c0_190, %c9, %c0_191, %c0_192] : memref<1x18x18x128xf32, #tpu.memory_space<vmem>>, vector<1x2x16x128xf32>
    %311 = vector.shape_cast %310 : vector<1x2x16x128xf32> to vector<2x16x128xf32>
    %312 = vector.shape_cast %7 : vector<1x128xf32> to vector<1x1x128xf32>
    %313 = vector.broadcast %312 : vector<1x1x128xf32> to vector<2x16x128xf32>
    %314 = arith.mulf %311, %313 : vector<2x16x128xf32>
    %315 = arith.addf %309, %314 : vector<2x16x128xf32>
    %c0_193 = arith.constant 0 : index
    %c9_194 = arith.constant 9 : index
    %c1_195 = arith.constant 1 : index
    %c0_196 = arith.constant 0 : index
    %316 = vector.load %arg1[%c0_193, %c9_194, %c1_195, %c0_196] : memref<1x18x18x128xf32, #tpu.memory_space<vmem>>, vector<1x2x16x128xf32>
    %317 = vector.shape_cast %316 : vector<1x2x16x128xf32> to vector<2x16x128xf32>
    %318 = vector.shape_cast %8 : vector<1x128xf32> to vector<1x1x128xf32>
    %319 = vector.broadcast %318 : vector<1x1x128xf32> to vector<2x16x128xf32>
    %320 = arith.mulf %317, %319 : vector<2x16x128xf32>
    %321 = arith.addf %315, %320 : vector<2x16x128xf32>
    %c0_197 = arith.constant 0 : index
    %c9_198 = arith.constant 9 : index
    %c2_199 = arith.constant 2 : index
    %c0_200 = arith.constant 0 : index
    %322 = vector.load %arg1[%c0_197, %c9_198, %c2_199, %c0_200] : memref<1x18x18x128xf32, #tpu.memory_space<vmem>>, vector<1x2x16x128xf32>
    %323 = vector.shape_cast %322 : vector<1x2x16x128xf32> to vector<2x16x128xf32>
    %324 = vector.shape_cast %9 : vector<1x128xf32> to vector<1x1x128xf32>
    %325 = vector.broadcast %324 : vector<1x1x128xf32> to vector<2x16x128xf32>
    %326 = arith.mulf %323, %325 : vector<2x16x128xf32>
    %327 = arith.addf %321, %326 : vector<2x16x128xf32>
    %c0_201 = arith.constant 0 : index
    %c10 = arith.constant 10 : index
    %c0_202 = arith.constant 0 : index
    %c0_203 = arith.constant 0 : index
    %328 = vector.load %arg1[%c0_201, %c10, %c0_202, %c0_203] : memref<1x18x18x128xf32, #tpu.memory_space<vmem>>, vector<1x2x16x128xf32>
    %329 = vector.shape_cast %328 : vector<1x2x16x128xf32> to vector<2x16x128xf32>
    %330 = vector.shape_cast %10 : vector<1x128xf32> to vector<1x1x128xf32>
    %331 = vector.broadcast %330 : vector<1x1x128xf32> to vector<2x16x128xf32>
    %332 = arith.mulf %329, %331 : vector<2x16x128xf32>
    %333 = arith.addf %327, %332 : vector<2x16x128xf32>
    %c0_204 = arith.constant 0 : index
    %c10_205 = arith.constant 10 : index
    %c1_206 = arith.constant 1 : index
    %c0_207 = arith.constant 0 : index
    %334 = vector.load %arg1[%c0_204, %c10_205, %c1_206, %c0_207] : memref<1x18x18x128xf32, #tpu.memory_space<vmem>>, vector<1x2x16x128xf32>
    %335 = vector.shape_cast %334 : vector<1x2x16x128xf32> to vector<2x16x128xf32>
    %336 = vector.shape_cast %11 : vector<1x128xf32> to vector<1x1x128xf32>
    %337 = vector.broadcast %336 : vector<1x1x128xf32> to vector<2x16x128xf32>
    %338 = arith.mulf %335, %337 : vector<2x16x128xf32>
    %339 = arith.addf %333, %338 : vector<2x16x128xf32>
    %c0_208 = arith.constant 0 : index
    %c10_209 = arith.constant 10 : index
    %c2_210 = arith.constant 2 : index
    %c0_211 = arith.constant 0 : index
    %340 = vector.load %arg1[%c0_208, %c10_209, %c2_210, %c0_211] : memref<1x18x18x128xf32, #tpu.memory_space<vmem>>, vector<1x2x16x128xf32>
    %341 = vector.shape_cast %340 : vector<1x2x16x128xf32> to vector<2x16x128xf32>
    %342 = vector.shape_cast %12 : vector<1x128xf32> to vector<1x1x128xf32>
    %343 = vector.broadcast %342 : vector<1x1x128xf32> to vector<2x16x128xf32>
    %344 = arith.mulf %341, %343 : vector<2x16x128xf32>
    %345 = arith.addf %339, %344 : vector<2x16x128xf32>
    %346 = vector.shape_cast %13 : vector<1x128xf32> to vector<1x1x128xf32>
    %347 = vector.broadcast %346 : vector<1x1x128xf32> to vector<2x16x128xf32>
    %348 = arith.mulf %345, %347 : vector<2x16x128xf32>
    %349 = vector.shape_cast %14 : vector<1x128xf32> to vector<1x1x128xf32>
    %350 = vector.broadcast %349 : vector<1x1x128xf32> to vector<2x16x128xf32>
    %351 = arith.addf %348, %350 : vector<2x16x128xf32>
    %cst_212 = arith.constant 0.000000e+00 : f32
    %352 = vector.broadcast %cst_212 : f32 to vector<2x16x128xf32>
    %353 = arith.maximumf %351, %352 : vector<2x16x128xf32>
    %354 = vector.extract_strided_slice %353 {offsets = [0, 0, 0], sizes = [1, 16, 128], strides = [1, 1, 1]} : vector<2x16x128xf32> to vector<1x16x128xf32>
    %355 = vector.shape_cast %354 : vector<1x16x128xf32> to vector<16x128xf32>
    %356 = vector.extract_strided_slice %353 {offsets = [1, 0, 0], sizes = [1, 16, 128], strides = [1, 1, 1]} : vector<2x16x128xf32> to vector<1x16x128xf32>
    %357 = vector.shape_cast %356 : vector<1x16x128xf32> to vector<16x128xf32>
    %358 = arith.maximumf %355, %357 : vector<16x128xf32>
    %c64 = arith.constant 64 : index
    %c0_213 = arith.constant 0 : index
    %359 = vector.load %arg16[%c64, %c0_213] : memref<128x128xf32, #tpu.memory_space<vmem>>, vector<16x128xf32>
    tpu.vector_store %arg16[%c64, %c0_213], %358 {strides = array<i32>} : memref<128x128xf32, #tpu.memory_space<vmem>>, vector<16x128xf32>,
    %cst_214 = arith.constant 0.000000e+00 : f32
    %360 = vector.broadcast %cst_214 : f32 to vector<2x16x128xf32>
    %c0_215 = arith.constant 0 : index
    %c10_216 = arith.constant 10 : index
    %c0_217 = arith.constant 0 : index
    %c0_218 = arith.constant 0 : index
    %361 = vector.load %arg1[%c0_215, %c10_216, %c0_217, %c0_218] : memref<1x18x18x128xf32, #tpu.memory_space<vmem>>, vector<1x2x16x128xf32>
    %362 = vector.shape_cast %361 : vector<1x2x16x128xf32> to vector<2x16x128xf32>
    %363 = vector.shape_cast %4 : vector<1x128xf32> to vector<1x1x128xf32>
    %364 = vector.broadcast %363 : vector<1x1x128xf32> to vector<2x16x128xf32>
    %365 = arith.mulf %362, %364 : vector<2x16x128xf32>
    %366 = arith.addf %360, %365 : vector<2x16x128xf32>
    %c0_219 = arith.constant 0 : index
    %c10_220 = arith.constant 10 : index
    %c1_221 = arith.constant 1 : index
    %c0_222 = arith.constant 0 : index
    %367 = vector.load %arg1[%c0_219, %c10_220, %c1_221, %c0_222] : memref<1x18x18x128xf32, #tpu.memory_space<vmem>>, vector<1x2x16x128xf32>
    %368 = vector.shape_cast %367 : vector<1x2x16x128xf32> to vector<2x16x128xf32>
    %369 = vector.shape_cast %5 : vector<1x128xf32> to vector<1x1x128xf32>
    %370 = vector.broadcast %369 : vector<1x1x128xf32> to vector<2x16x128xf32>
    %371 = arith.mulf %368, %370 : vector<2x16x128xf32>
    %372 = arith.addf %366, %371 : vector<2x16x128xf32>
    %c0_223 = arith.constant 0 : index
    %c10_224 = arith.constant 10 : index
    %c2_225 = arith.constant 2 : index
    %c0_226 = arith.constant 0 : index
    %373 = vector.load %arg1[%c0_223, %c10_224, %c2_225, %c0_226] : memref<1x18x18x128xf32, #tpu.memory_space<vmem>>, vector<1x2x16x128xf32>
    %374 = vector.shape_cast %373 : vector<1x2x16x128xf32> to vector<2x16x128xf32>
    %375 = vector.shape_cast %6 : vector<1x128xf32> to vector<1x1x128xf32>
    %376 = vector.broadcast %375 : vector<1x1x128xf32> to vector<2x16x128xf32>
    %377 = arith.mulf %374, %376 : vector<2x16x128xf32>
    %378 = arith.addf %372, %377 : vector<2x16x128xf32>
    %c0_227 = arith.constant 0 : index
    %c11 = arith.constant 11 : index
    %c0_228 = arith.constant 0 : index
    %c0_229 = arith.constant 0 : index
    %379 = vector.load %arg1[%c0_227, %c11, %c0_228, %c0_229] : memref<1x18x18x128xf32, #tpu.memory_space<vmem>>, vector<1x2x16x128xf32>
    %380 = vector.shape_cast %379 : vector<1x2x16x128xf32> to vector<2x16x128xf32>
    %381 = vector.shape_cast %7 : vector<1x128xf32> to vector<1x1x128xf32>
    %382 = vector.broadcast %381 : vector<1x1x128xf32> to vector<2x16x128xf32>
    %383 = arith.mulf %380, %382 : vector<2x16x128xf32>
    %384 = arith.addf %378, %383 : vector<2x16x128xf32>
    %c0_230 = arith.constant 0 : index
    %c11_231 = arith.constant 11 : index
    %c1_232 = arith.constant 1 : index
    %c0_233 = arith.constant 0 : index
    %385 = vector.load %arg1[%c0_230, %c11_231, %c1_232, %c0_233] : memref<1x18x18x128xf32, #tpu.memory_space<vmem>>, vector<1x2x16x128xf32>
    %386 = vector.shape_cast %385 : vector<1x2x16x128xf32> to vector<2x16x128xf32>
    %387 = vector.shape_cast %8 : vector<1x128xf32> to vector<1x1x128xf32>
    %388 = vector.broadcast %387 : vector<1x1x128xf32> to vector<2x16x128xf32>
    %389 = arith.mulf %386, %388 : vector<2x16x128xf32>
    %390 = arith.addf %384, %389 : vector<2x16x128xf32>
    %c0_234 = arith.constant 0 : index
    %c11_235 = arith.constant 11 : index
    %c2_236 = arith.constant 2 : index
    %c0_237 = arith.constant 0 : index
    %391 = vector.load %arg1[%c0_234, %c11_235, %c2_236, %c0_237] : memref<1x18x18x128xf32, #tpu.memory_space<vmem>>, vector<1x2x16x128xf32>
    %392 = vector.shape_cast %391 : vector<1x2x16x128xf32> to vector<2x16x128xf32>
    %393 = vector.shape_cast %9 : vector<1x128xf32> to vector<1x1x128xf32>
    %394 = vector.broadcast %393 : vector<1x1x128xf32> to vector<2x16x128xf32>
    %395 = arith.mulf %392, %394 : vector<2x16x128xf32>
    %396 = arith.addf %390, %395 : vector<2x16x128xf32>
    %c0_238 = arith.constant 0 : index
    %c12 = arith.constant 12 : index
    %c0_239 = arith.constant 0 : index
    %c0_240 = arith.constant 0 : index
    %397 = vector.load %arg1[%c0_238, %c12, %c0_239, %c0_240] : memref<1x18x18x128xf32, #tpu.memory_space<vmem>>, vector<1x2x16x128xf32>
    %398 = vector.shape_cast %397 : vector<1x2x16x128xf32> to vector<2x16x128xf32>
    %399 = vector.shape_cast %10 : vector<1x128xf32> to vector<1x1x128xf32>
    %400 = vector.broadcast %399 : vector<1x1x128xf32> to vector<2x16x128xf32>
    %401 = arith.mulf %398, %400 : vector<2x16x128xf32>
    %402 = arith.addf %396, %401 : vector<2x16x128xf32>
    %c0_241 = arith.constant 0 : index
    %c12_242 = arith.constant 12 : index
    %c1_243 = arith.constant 1 : index
    %c0_244 = arith.constant 0 : index
    %403 = vector.load %arg1[%c0_241, %c12_242, %c1_243, %c0_244] : memref<1x18x18x128xf32, #tpu.memory_space<vmem>>, vector<1x2x16x128xf32>
    %404 = vector.shape_cast %403 : vector<1x2x16x128xf32> to vector<2x16x128xf32>
    %405 = vector.shape_cast %11 : vector<1x128xf32> to vector<1x1x128xf32>
    %406 = vector.broadcast %405 : vector<1x1x128xf32> to vector<2x16x128xf32>
    %407 = arith.mulf %404, %406 : vector<2x16x128xf32>
    %408 = arith.addf %402, %407 : vector<2x16x128xf32>
    %c0_245 = arith.constant 0 : index
    %c12_246 = arith.constant 12 : index
    %c2_247 = arith.constant 2 : index
    %c0_248 = arith.constant 0 : index
    %409 = vector.load %arg1[%c0_245, %c12_246, %c2_247, %c0_248] : memref<1x18x18x128xf32, #tpu.memory_space<vmem>>, vector<1x2x16x128xf32>
    %410 = vector.shape_cast %409 : vector<1x2x16x128xf32> to vector<2x16x128xf32>
    %411 = vector.shape_cast %12 : vector<1x128xf32> to vector<1x1x128xf32>
    %412 = vector.broadcast %411 : vector<1x1x128xf32> to vector<2x16x128xf32>
    %413 = arith.mulf %410, %412 : vector<2x16x128xf32>
    %414 = arith.addf %408, %413 : vector<2x16x128xf32>
    %415 = vector.shape_cast %13 : vector<1x128xf32> to vector<1x1x128xf32>
    %416 = vector.broadcast %415 : vector<1x1x128xf32> to vector<2x16x128xf32>
    %417 = arith.mulf %414, %416 : vector<2x16x128xf32>
    %418 = vector.shape_cast %14 : vector<1x128xf32> to vector<1x1x128xf32>
    %419 = vector.broadcast %418 : vector<1x1x128xf32> to vector<2x16x128xf32>
    %420 = arith.addf %417, %419 : vector<2x16x128xf32>
    %cst_249 = arith.constant 0.000000e+00 : f32
    %421 = vector.broadcast %cst_249 : f32 to vector<2x16x128xf32>
    %422 = arith.maximumf %420, %421 : vector<2x16x128xf32>
    %423 = vector.extract_strided_slice %422 {offsets = [0, 0, 0], sizes = [1, 16, 128], strides = [1, 1, 1]} : vector<2x16x128xf32> to vector<1x16x128xf32>
    %424 = vector.shape_cast %423 : vector<1x16x128xf32> to vector<16x128xf32>
    %425 = vector.extract_strided_slice %422 {offsets = [1, 0, 0], sizes = [1, 16, 128], strides = [1, 1, 1]} : vector<2x16x128xf32> to vector<1x16x128xf32>
    %426 = vector.shape_cast %425 : vector<1x16x128xf32> to vector<16x128xf32>
    %427 = arith.maximumf %424, %426 : vector<16x128xf32>
    %c80 = arith.constant 80 : index
    %c0_250 = arith.constant 0 : index
    %428 = vector.load %arg16[%c80, %c0_250] : memref<128x128xf32, #tpu.memory_space<vmem>>, vector<16x128xf32>
    tpu.vector_store %arg16[%c80, %c0_250], %427 {strides = array<i32>} : memref<128x128xf32, #tpu.memory_space<vmem>>, vector<16x128xf32>,
    %cst_251 = arith.constant 0.000000e+00 : f32
    %429 = vector.broadcast %cst_251 : f32 to vector<2x16x128xf32>
    %c0_252 = arith.constant 0 : index
    %c12_253 = arith.constant 12 : index
    %c0_254 = arith.constant 0 : index
    %c0_255 = arith.constant 0 : index
    %430 = vector.load %arg1[%c0_252, %c12_253, %c0_254, %c0_255] : memref<1x18x18x128xf32, #tpu.memory_space<vmem>>, vector<1x2x16x128xf32>
    %431 = vector.shape_cast %430 : vector<1x2x16x128xf32> to vector<2x16x128xf32>
    %432 = vector.shape_cast %4 : vector<1x128xf32> to vector<1x1x128xf32>
    %433 = vector.broadcast %432 : vector<1x1x128xf32> to vector<2x16x128xf32>
    %434 = arith.mulf %431, %433 : vector<2x16x128xf32>
    %435 = arith.addf %429, %434 : vector<2x16x128xf32>
    %c0_256 = arith.constant 0 : index
    %c12_257 = arith.constant 12 : index
    %c1_258 = arith.constant 1 : index
    %c0_259 = arith.constant 0 : index
    %436 = vector.load %arg1[%c0_256, %c12_257, %c1_258, %c0_259] : memref<1x18x18x128xf32, #tpu.memory_space<vmem>>, vector<1x2x16x128xf32>
    %437 = vector.shape_cast %436 : vector<1x2x16x128xf32> to vector<2x16x128xf32>
    %438 = vector.shape_cast %5 : vector<1x128xf32> to vector<1x1x128xf32>
    %439 = vector.broadcast %438 : vector<1x1x128xf32> to vector<2x16x128xf32>
    %440 = arith.mulf %437, %439 : vector<2x16x128xf32>
    %441 = arith.addf %435, %440 : vector<2x16x128xf32>
    %c0_260 = arith.constant 0 : index
    %c12_261 = arith.constant 12 : index
    %c2_262 = arith.constant 2 : index
    %c0_263 = arith.constant 0 : index
    %442 = vector.load %arg1[%c0_260, %c12_261, %c2_262, %c0_263] : memref<1x18x18x128xf32, #tpu.memory_space<vmem>>, vector<1x2x16x128xf32>
    %443 = vector.shape_cast %442 : vector<1x2x16x128xf32> to vector<2x16x128xf32>
    %444 = vector.shape_cast %6 : vector<1x128xf32> to vector<1x1x128xf32>
    %445 = vector.broadcast %444 : vector<1x1x128xf32> to vector<2x16x128xf32>
    %446 = arith.mulf %443, %445 : vector<2x16x128xf32>
    %447 = arith.addf %441, %446 : vector<2x16x128xf32>
    %c0_264 = arith.constant 0 : index
    %c13 = arith.constant 13 : index
    %c0_265 = arith.constant 0 : index
    %c0_266 = arith.constant 0 : index
    %448 = vector.load %arg1[%c0_264, %c13, %c0_265, %c0_266] : memref<1x18x18x128xf32, #tpu.memory_space<vmem>>, vector<1x2x16x128xf32>
    %449 = vector.shape_cast %448 : vector<1x2x16x128xf32> to vector<2x16x128xf32>
    %450 = vector.shape_cast %7 : vector<1x128xf32> to vector<1x1x128xf32>
    %451 = vector.broadcast %450 : vector<1x1x128xf32> to vector<2x16x128xf32>
    %452 = arith.mulf %449, %451 : vector<2x16x128xf32>
    %453 = arith.addf %447, %452 : vector<2x16x128xf32>
    %c0_267 = arith.constant 0 : index
    %c13_268 = arith.constant 13 : index
    %c1_269 = arith.constant 1 : index
    %c0_270 = arith.constant 0 : index
    %454 = vector.load %arg1[%c0_267, %c13_268, %c1_269, %c0_270] : memref<1x18x18x128xf32, #tpu.memory_space<vmem>>, vector<1x2x16x128xf32>
    %455 = vector.shape_cast %454 : vector<1x2x16x128xf32> to vector<2x16x128xf32>
    %456 = vector.shape_cast %8 : vector<1x128xf32> to vector<1x1x128xf32>
    %457 = vector.broadcast %456 : vector<1x1x128xf32> to vector<2x16x128xf32>
    %458 = arith.mulf %455, %457 : vector<2x16x128xf32>
    %459 = arith.addf %453, %458 : vector<2x16x128xf32>
    %c0_271 = arith.constant 0 : index
    %c13_272 = arith.constant 13 : index
    %c2_273 = arith.constant 2 : index
    %c0_274 = arith.constant 0 : index
    %460 = vector.load %arg1[%c0_271, %c13_272, %c2_273, %c0_274] : memref<1x18x18x128xf32, #tpu.memory_space<vmem>>, vector<1x2x16x128xf32>
    %461 = vector.shape_cast %460 : vector<1x2x16x128xf32> to vector<2x16x128xf32>
    %462 = vector.shape_cast %9 : vector<1x128xf32> to vector<1x1x128xf32>
    %463 = vector.broadcast %462 : vector<1x1x128xf32> to vector<2x16x128xf32>
    %464 = arith.mulf %461, %463 : vector<2x16x128xf32>
    %465 = arith.addf %459, %464 : vector<2x16x128xf32>
    %c0_275 = arith.constant 0 : index
    %c14 = arith.constant 14 : index
    %c0_276 = arith.constant 0 : index
    %c0_277 = arith.constant 0 : index
    %466 = vector.load %arg1[%c0_275, %c14, %c0_276, %c0_277] : memref<1x18x18x128xf32, #tpu.memory_space<vmem>>, vector<1x2x16x128xf32>
    %467 = vector.shape_cast %466 : vector<1x2x16x128xf32> to vector<2x16x128xf32>
    %468 = vector.shape_cast %10 : vector<1x128xf32> to vector<1x1x128xf32>
    %469 = vector.broadcast %468 : vector<1x1x128xf32> to vector<2x16x128xf32>
    %470 = arith.mulf %467, %469 : vector<2x16x128xf32>
    %471 = arith.addf %465, %470 : vector<2x16x128xf32>
    %c0_278 = arith.constant 0 : index
    %c14_279 = arith.constant 14 : index
    %c1_280 = arith.constant 1 : index
    %c0_281 = arith.constant 0 : index
    %472 = vector.load %arg1[%c0_278, %c14_279, %c1_280, %c0_281] : memref<1x18x18x128xf32, #tpu.memory_space<vmem>>, vector<1x2x16x128xf32>
    %473 = vector.shape_cast %472 : vector<1x2x16x128xf32> to vector<2x16x128xf32>
    %474 = vector.shape_cast %11 : vector<1x128xf32> to vector<1x1x128xf32>
    %475 = vector.broadcast %474 : vector<1x1x128xf32> to vector<2x16x128xf32>
    %476 = arith.mulf %473, %475 : vector<2x16x128xf32>
    %477 = arith.addf %471, %476 : vector<2x16x128xf32>
    %c0_282 = arith.constant 0 : index
    %c14_283 = arith.constant 14 : index
    %c2_284 = arith.constant 2 : index
    %c0_285 = arith.constant 0 : index
    %478 = vector.load %arg1[%c0_282, %c14_283, %c2_284, %c0_285] : memref<1x18x18x128xf32, #tpu.memory_space<vmem>>, vector<1x2x16x128xf32>
    %479 = vector.shape_cast %478 : vector<1x2x16x128xf32> to vector<2x16x128xf32>
    %480 = vector.shape_cast %12 : vector<1x128xf32> to vector<1x1x128xf32>
    %481 = vector.broadcast %480 : vector<1x1x128xf32> to vector<2x16x128xf32>
    %482 = arith.mulf %479, %481 : vector<2x16x128xf32>
    %483 = arith.addf %477, %482 : vector<2x16x128xf32>
    %484 = vector.shape_cast %13 : vector<1x128xf32> to vector<1x1x128xf32>
    %485 = vector.broadcast %484 : vector<1x1x128xf32> to vector<2x16x128xf32>
    %486 = arith.mulf %483, %485 : vector<2x16x128xf32>
    %487 = vector.shape_cast %14 : vector<1x128xf32> to vector<1x1x128xf32>
    %488 = vector.broadcast %487 : vector<1x1x128xf32> to vector<2x16x128xf32>
    %489 = arith.addf %486, %488 : vector<2x16x128xf32>
    %cst_286 = arith.constant 0.000000e+00 : f32
    %490 = vector.broadcast %cst_286 : f32 to vector<2x16x128xf32>
    %491 = arith.maximumf %489, %490 : vector<2x16x128xf32>
    %492 = vector.extract_strided_slice %491 {offsets = [0, 0, 0], sizes = [1, 16, 128], strides = [1, 1, 1]} : vector<2x16x128xf32> to vector<1x16x128xf32>
    %493 = vector.shape_cast %492 : vector<1x16x128xf32> to vector<16x128xf32>
    %494 = vector.extract_strided_slice %491 {offsets = [1, 0, 0], sizes = [1, 16, 128], strides = [1, 1, 1]} : vector<2x16x128xf32> to vector<1x16x128xf32>
    %495 = vector.shape_cast %494 : vector<1x16x128xf32> to vector<16x128xf32>
    %496 = arith.maximumf %493, %495 : vector<16x128xf32>
    %c96 = arith.constant 96 : index
    %c0_287 = arith.constant 0 : index
    %497 = vector.load %arg16[%c96, %c0_287] : memref<128x128xf32, #tpu.memory_space<vmem>>, vector<16x128xf32>
    tpu.vector_store %arg16[%c96, %c0_287], %496 {strides = array<i32>} : memref<128x128xf32, #tpu.memory_space<vmem>>, vector<16x128xf32>,
    %cst_288 = arith.constant 0.000000e+00 : f32
    %498 = vector.broadcast %cst_288 : f32 to vector<2x16x128xf32>
    %c0_289 = arith.constant 0 : index
    %c14_290 = arith.constant 14 : index
    %c0_291 = arith.constant 0 : index
    %c0_292 = arith.constant 0 : index
    %499 = vector.load %arg1[%c0_289, %c14_290, %c0_291, %c0_292] : memref<1x18x18x128xf32, #tpu.memory_space<vmem>>, vector<1x2x16x128xf32>
    %500 = vector.shape_cast %499 : vector<1x2x16x128xf32> to vector<2x16x128xf32>
    %501 = vector.shape_cast %4 : vector<1x128xf32> to vector<1x1x128xf32>
    %502 = vector.broadcast %501 : vector<1x1x128xf32> to vector<2x16x128xf32>
    %503 = arith.mulf %500, %502 : vector<2x16x128xf32>
    %504 = arith.addf %498, %503 : vector<2x16x128xf32>
    %c0_293 = arith.constant 0 : index
    %c14_294 = arith.constant 14 : index
    %c1_295 = arith.constant 1 : index
    %c0_296 = arith.constant 0 : index
    %505 = vector.load %arg1[%c0_293, %c14_294, %c1_295, %c0_296] : memref<1x18x18x128xf32, #tpu.memory_space<vmem>>, vector<1x2x16x128xf32>
    %506 = vector.shape_cast %505 : vector<1x2x16x128xf32> to vector<2x16x128xf32>
    %507 = vector.shape_cast %5 : vector<1x128xf32> to vector<1x1x128xf32>
    %508 = vector.broadcast %507 : vector<1x1x128xf32> to vector<2x16x128xf32>
    %509 = arith.mulf %506, %508 : vector<2x16x128xf32>
    %510 = arith.addf %504, %509 : vector<2x16x128xf32>
    %c0_297 = arith.constant 0 : index
    %c14_298 = arith.constant 14 : index
    %c2_299 = arith.constant 2 : index
    %c0_300 = arith.constant 0 : index
    %511 = vector.load %arg1[%c0_297, %c14_298, %c2_299, %c0_300] : memref<1x18x18x128xf32, #tpu.memory_space<vmem>>, vector<1x2x16x128xf32>
    %512 = vector.shape_cast %511 : vector<1x2x16x128xf32> to vector<2x16x128xf32>
    %513 = vector.shape_cast %6 : vector<1x128xf32> to vector<1x1x128xf32>
    %514 = vector.broadcast %513 : vector<1x1x128xf32> to vector<2x16x128xf32>
    %515 = arith.mulf %512, %514 : vector<2x16x128xf32>
    %516 = arith.addf %510, %515 : vector<2x16x128xf32>
    %c0_301 = arith.constant 0 : index
    %c15 = arith.constant 15 : index
    %c0_302 = arith.constant 0 : index
    %c0_303 = arith.constant 0 : index
    %517 = vector.load %arg1[%c0_301, %c15, %c0_302, %c0_303] : memref<1x18x18x128xf32, #tpu.memory_space<vmem>>, vector<1x2x16x128xf32>
    %518 = vector.shape_cast %517 : vector<1x2x16x128xf32> to vector<2x16x128xf32>
    %519 = vector.shape_cast %7 : vector<1x128xf32> to vector<1x1x128xf32>
    %520 = vector.broadcast %519 : vector<1x1x128xf32> to vector<2x16x128xf32>
    %521 = arith.mulf %518, %520 : vector<2x16x128xf32>
    %522 = arith.addf %516, %521 : vector<2x16x128xf32>
    %c0_304 = arith.constant 0 : index
    %c15_305 = arith.constant 15 : index
    %c1_306 = arith.constant 1 : index
    %c0_307 = arith.constant 0 : index
    %523 = vector.load %arg1[%c0_304, %c15_305, %c1_306, %c0_307] : memref<1x18x18x128xf32, #tpu.memory_space<vmem>>, vector<1x2x16x128xf32>
    %524 = vector.shape_cast %523 : vector<1x2x16x128xf32> to vector<2x16x128xf32>
    %525 = vector.shape_cast %8 : vector<1x128xf32> to vector<1x1x128xf32>
    %526 = vector.broadcast %525 : vector<1x1x128xf32> to vector<2x16x128xf32>
    %527 = arith.mulf %524, %526 : vector<2x16x128xf32>
    %528 = arith.addf %522, %527 : vector<2x16x128xf32>
    %c0_308 = arith.constant 0 : index
    %c15_309 = arith.constant 15 : index
    %c2_310 = arith.constant 2 : index
    %c0_311 = arith.constant 0 : index
    %529 = vector.load %arg1[%c0_308, %c15_309, %c2_310, %c0_311] : memref<1x18x18x128xf32, #tpu.memory_space<vmem>>, vector<1x2x16x128xf32>
    %530 = vector.shape_cast %529 : vector<1x2x16x128xf32> to vector<2x16x128xf32>
    %531 = vector.shape_cast %9 : vector<1x128xf32> to vector<1x1x128xf32>
    %532 = vector.broadcast %531 : vector<1x1x128xf32> to vector<2x16x128xf32>
    %533 = arith.mulf %530, %532 : vector<2x16x128xf32>
    %534 = arith.addf %528, %533 : vector<2x16x128xf32>
    %c0_312 = arith.constant 0 : index
    %c16_313 = arith.constant 16 : index
    %c0_314 = arith.constant 0 : index
    %c0_315 = arith.constant 0 : index
    %535 = vector.load %arg1[%c0_312, %c16_313, %c0_314, %c0_315] : memref<1x18x18x128xf32, #tpu.memory_space<vmem>>, vector<1x2x16x128xf32>
    %536 = vector.shape_cast %535 : vector<1x2x16x128xf32> to vector<2x16x128xf32>
    %537 = vector.shape_cast %10 : vector<1x128xf32> to vector<1x1x128xf32>
    %538 = vector.broadcast %537 : vector<1x1x128xf32> to vector<2x16x128xf32>
    %539 = arith.mulf %536, %538 : vector<2x16x128xf32>
    %540 = arith.addf %534, %539 : vector<2x16x128xf32>
    %c0_316 = arith.constant 0 : index
    %c16_317 = arith.constant 16 : index
    %c1_318 = arith.constant 1 : index
    %c0_319 = arith.constant 0 : index
    %541 = vector.load %arg1[%c0_316, %c16_317, %c1_318, %c0_319] : memref<1x18x18x128xf32, #tpu.memory_space<vmem>>, vector<1x2x16x128xf32>
    %542 = vector.shape_cast %541 : vector<1x2x16x128xf32> to vector<2x16x128xf32>
    %543 = vector.shape_cast %11 : vector<1x128xf32> to vector<1x1x128xf32>
    %544 = vector.broadcast %543 : vector<1x1x128xf32> to vector<2x16x128xf32>
    %545 = arith.mulf %542, %544 : vector<2x16x128xf32>
    %546 = arith.addf %540, %545 : vector<2x16x128xf32>
    %c0_320 = arith.constant 0 : index
    %c16_321 = arith.constant 16 : index
    %c2_322 = arith.constant 2 : index
    %c0_323 = arith.constant 0 : index
    %547 = vector.load %arg1[%c0_320, %c16_321, %c2_322, %c0_323] : memref<1x18x18x128xf32, #tpu.memory_space<vmem>>, vector<1x2x16x128xf32>
    %548 = vector.shape_cast %547 : vector<1x2x16x128xf32> to vector<2x16x128xf32>
    %549 = vector.shape_cast %12 : vector<1x128xf32> to vector<1x1x128xf32>
    %550 = vector.broadcast %549 : vector<1x1x128xf32> to vector<2x16x128xf32>
    %551 = arith.mulf %548, %550 : vector<2x16x128xf32>
    %552 = arith.addf %546, %551 : vector<2x16x128xf32>
    %553 = vector.shape_cast %13 : vector<1x128xf32> to vector<1x1x128xf32>
    %554 = vector.broadcast %553 : vector<1x1x128xf32> to vector<2x16x128xf32>
    %555 = arith.mulf %552, %554 : vector<2x16x128xf32>
    %556 = vector.shape_cast %14 : vector<1x128xf32> to vector<1x1x128xf32>
    %557 = vector.broadcast %556 : vector<1x1x128xf32> to vector<2x16x128xf32>
    %558 = arith.addf %555, %557 : vector<2x16x128xf32>
    %cst_324 = arith.constant 0.000000e+00 : f32
    %559 = vector.broadcast %cst_324 : f32 to vector<2x16x128xf32>
    %560 = arith.maximumf %558, %559 : vector<2x16x128xf32>
    %561 = vector.extract_strided_slice %560 {offsets = [0, 0, 0], sizes = [1, 16, 128], strides = [1, 1, 1]} : vector<2x16x128xf32> to vector<1x16x128xf32>
    %562 = vector.shape_cast %561 : vector<1x16x128xf32> to vector<16x128xf32>
    %563 = vector.extract_strided_slice %560 {offsets = [1, 0, 0], sizes = [1, 16, 128], strides = [1, 1, 1]} : vector<2x16x128xf32> to vector<1x16x128xf32>
    %564 = vector.shape_cast %563 : vector<1x16x128xf32> to vector<16x128xf32>
    %565 = arith.maximumf %562, %564 : vector<16x128xf32>
    %c112 = arith.constant 112 : index
    %c0_325 = arith.constant 0 : index
    %566 = vector.load %arg16[%c112, %c0_325] : memref<128x128xf32, #tpu.memory_space<vmem>>, vector<16x128xf32>
    tpu.vector_store %arg16[%c112, %c0_325], %565 {strides = array<i32>} : memref<128x128xf32, #tpu.memory_space<vmem>>, vector<16x128xf32>,
    %c0_326 = arith.constant 0 : index
    %c0_327 = arith.constant 0 : index
    %567 = tpu.strided_load %arg16[%c0_326, %c0_327] {strides = array<i32: 2, 1>} : memref<128x128xf32, #tpu.memory_space<vmem>>, vector<64x128xf32>
    %c1_328 = arith.constant 1 : index
    %c0_329 = arith.constant 0 : index
    %568 = tpu.strided_load %arg16[%c1_328, %c0_329] {strides = array<i32: 2, 1>} : memref<128x128xf32, #tpu.memory_space<vmem>>, vector<64x128xf32>
    %569 = arith.maximumf %567, %568 : vector<64x128xf32>
    %570 = vector.shape_cast %569 : vector<64x128xf32> to vector<8x8x128xf32>
    %c1_330 = arith.constant 1 : index
    %c1_331 = arith.constant 1 : index
    %c0_332 = arith.constant 0 : index
    %571 = vector.load %arg17[%c1_330, %c1_331, %c0_332] : memref<10x10x128xf32, #tpu.memory_space<vmem>>, vector<8x8x128xf32>
    tpu.vector_store %arg17[%c1_330, %c1_331, %c0_332], %570 {strides = array<i32>} : memref<10x10x128xf32, #tpu.memory_space<vmem>>, vector<8x8x128xf32>,
    %c0_333 = arith.constant 0 : index
    %c0_334 = arith.constant 0 : index
    %c0_335 = arith.constant 0 : index
    %572 = vector.load %arg17[%c0_333, %c0_334, %c0_335] : memref<10x10x128xf32, #tpu.memory_space<vmem>>, vector<1x8x128xf32>
    %573 = vector.shape_cast %572 : vector<1x8x128xf32> to vector<8x128xf32>
    %c0_336 = arith.constant 0 : index
    %c1_337 = arith.constant 1 : index
    %c0_338 = arith.constant 0 : index
    %574 = vector.load %arg17[%c0_336, %c1_337, %c0_338] : memref<10x10x128xf32, #tpu.memory_space<vmem>>, vector<1x8x128xf32>
    %575 = vector.shape_cast %574 : vector<1x8x128xf32> to vector<8x128xf32>
    %c0_339 = arith.constant 0 : index
    %c2_340 = arith.constant 2 : index
    %c0_341 = arith.constant 0 : index
    %576 = vector.load %arg17[%c0_339, %c2_340, %c0_341] : memref<10x10x128xf32, #tpu.memory_space<vmem>>, vector<1x8x128xf32>
    %577 = vector.shape_cast %576 : vector<1x8x128xf32> to vector<8x128xf32>
    %578 = tpu.concatenate %573, %575, %577 in 1 : vector<8x128xf32>, vector<8x128xf32>, vector<8x128xf32> -> vector<8x384xf32>
    %579 = arith.truncf %578 : vector<8x384xf32> to vector<8x384xbf16>
    %c0_342 = arith.constant 0 : index
    %c0_343 = arith.constant 0 : index
    %580 = vector.load %arg18[%c0_342, %c0_343] : memref<80x384xbf16, #tpu.memory_space<vmem>>, vector<8x384xbf16>
    tpu.vector_store %arg18[%c0_342, %c0_343], %579 {strides = array<i32>} : memref<80x384xbf16, #tpu.memory_space<vmem>>, vector<8x384xbf16>,
    %c1_344 = arith.constant 1 : index
    %c0_345 = arith.constant 0 : index
    %c0_346 = arith.constant 0 : index
    %581 = vector.load %arg17[%c1_344, %c0_345, %c0_346] : memref<10x10x128xf32, #tpu.memory_space<vmem>>, vector<1x8x128xf32>
    %582 = vector.shape_cast %581 : vector<1x8x128xf32> to vector<8x128xf32>
    %c1_347 = arith.constant 1 : index
    %c1_348 = arith.constant 1 : index
    %c0_349 = arith.constant 0 : index
    %583 = vector.load %arg17[%c1_347, %c1_348, %c0_349] : memref<10x10x128xf32, #tpu.memory_space<vmem>>, vector<1x8x128xf32>
    %584 = vector.shape_cast %583 : vector<1x8x128xf32> to vector<8x128xf32>
    %c1_350 = arith.constant 1 : index
    %c2_351 = arith.constant 2 : index
    %c0_352 = arith.constant 0 : index
    %585 = vector.load %arg17[%c1_350, %c2_351, %c0_352] : memref<10x10x128xf32, #tpu.memory_space<vmem>>, vector<1x8x128xf32>
    %586 = vector.shape_cast %585 : vector<1x8x128xf32> to vector<8x128xf32>
    %587 = tpu.concatenate %582, %584, %586 in 1 : vector<8x128xf32>, vector<8x128xf32>, vector<8x128xf32> -> vector<8x384xf32>
    %588 = arith.truncf %587 : vector<8x384xf32> to vector<8x384xbf16>
    %c8_353 = arith.constant 8 : index
    %c0_354 = arith.constant 0 : index
    %589 = vector.load %arg18[%c8_353, %c0_354] : memref<80x384xbf16, #tpu.memory_space<vmem>>, vector<8x384xbf16>
    tpu.vector_store %arg18[%c8_353, %c0_354], %588 {strides = array<i32>} : memref<80x384xbf16, #tpu.memory_space<vmem>>, vector<8x384xbf16>,
    %c2_355 = arith.constant 2 : index
    %c0_356 = arith.constant 0 : index
    %c0_357 = arith.constant 0 : index
    %590 = vector.load %arg17[%c2_355, %c0_356, %c0_357] : memref<10x10x128xf32, #tpu.memory_space<vmem>>, vector<1x8x128xf32>
    %591 = vector.shape_cast %590 : vector<1x8x128xf32> to vector<8x128xf32>
    %c2_358 = arith.constant 2 : index
    %c1_359 = arith.constant 1 : index
    %c0_360 = arith.constant 0 : index
    %592 = vector.load %arg17[%c2_358, %c1_359, %c0_360] : memref<10x10x128xf32, #tpu.memory_space<vmem>>, vector<1x8x128xf32>
    %593 = vector.shape_cast %592 : vector<1x8x128xf32> to vector<8x128xf32>
    %c2_361 = arith.constant 2 : index
    %c2_362 = arith.constant 2 : index
    %c0_363 = arith.constant 0 : index
    %594 = vector.load %arg17[%c2_361, %c2_362, %c0_363] : memref<10x10x128xf32, #tpu.memory_space<vmem>>, vector<1x8x128xf32>
    %595 = vector.shape_cast %594 : vector<1x8x128xf32> to vector<8x128xf32>
    %596 = tpu.concatenate %591, %593, %595 in 1 : vector<8x128xf32>, vector<8x128xf32>, vector<8x128xf32> -> vector<8x384xf32>
    %597 = arith.truncf %596 : vector<8x384xf32> to vector<8x384xbf16>
    %c16_364 = arith.constant 16 : index
    %c0_365 = arith.constant 0 : index
    %598 = vector.load %arg18[%c16_364, %c0_365] : memref<80x384xbf16, #tpu.memory_space<vmem>>, vector<8x384xbf16>
    tpu.vector_store %arg18[%c16_364, %c0_365], %597 {strides = array<i32>} : memref<80x384xbf16, #tpu.memory_space<vmem>>, vector<8x384xbf16>,
    %c3_366 = arith.constant 3 : index
    %c0_367 = arith.constant 0 : index
    %c0_368 = arith.constant 0 : index
    %599 = vector.load %arg17[%c3_366, %c0_367, %c0_368] : memref<10x10x128xf32, #tpu.memory_space<vmem>>, vector<1x8x128xf32>
    %600 = vector.shape_cast %599 : vector<1x8x128xf32> to vector<8x128xf32>
    %c3_369 = arith.constant 3 : index
    %c1_370 = arith.constant 1 : index
    %c0_371 = arith.constant 0 : index
    %601 = vector.load %arg17[%c3_369, %c1_370, %c0_371] : memref<10x10x128xf32, #tpu.memory_space<vmem>>, vector<1x8x128xf32>
    %602 = vector.shape_cast %601 : vector<1x8x128xf32> to vector<8x128xf32>
    %c3_372 = arith.constant 3 : index
    %c2_373 = arith.constant 2 : index
    %c0_374 = arith.constant 0 : index
    %603 = vector.load %arg17[%c3_372, %c2_373, %c0_374] : memref<10x10x128xf32, #tpu.memory_space<vmem>>, vector<1x8x128xf32>
    %604 = vector.shape_cast %603 : vector<1x8x128xf32> to vector<8x128xf32>
    %605 = tpu.concatenate %600, %602, %604 in 1 : vector<8x128xf32>, vector<8x128xf32>, vector<8x128xf32> -> vector<8x384xf32>
    %606 = arith.truncf %605 : vector<8x384xf32> to vector<8x384xbf16>
    %c24 = arith.constant 24 : index
    %c0_375 = arith.constant 0 : index
    %607 = vector.load %arg18[%c24, %c0_375] : memref<80x384xbf16, #tpu.memory_space<vmem>>, vector<8x384xbf16>
    tpu.vector_store %arg18[%c24, %c0_375], %606 {strides = array<i32>} : memref<80x384xbf16, #tpu.memory_space<vmem>>, vector<8x384xbf16>,
    %c4_376 = arith.constant 4 : index
    %c0_377 = arith.constant 0 : index
    %c0_378 = arith.constant 0 : index
    %608 = vector.load %arg17[%c4_376, %c0_377, %c0_378] : memref<10x10x128xf32, #tpu.memory_space<vmem>>, vector<1x8x128xf32>
    %609 = vector.shape_cast %608 : vector<1x8x128xf32> to vector<8x128xf32>
    %c4_379 = arith.constant 4 : index
    %c1_380 = arith.constant 1 : index
    %c0_381 = arith.constant 0 : index
    %610 = vector.load %arg17[%c4_379, %c1_380, %c0_381] : memref<10x10x128xf32, #tpu.memory_space<vmem>>, vector<1x8x128xf32>
    %611 = vector.shape_cast %610 : vector<1x8x128xf32> to vector<8x128xf32>
    %c4_382 = arith.constant 4 : index
    %c2_383 = arith.constant 2 : index
    %c0_384 = arith.constant 0 : index
    %612 = vector.load %arg17[%c4_382, %c2_383, %c0_384] : memref<10x10x128xf32, #tpu.memory_space<vmem>>, vector<1x8x128xf32>
    %613 = vector.shape_cast %612 : vector<1x8x128xf32> to vector<8x128xf32>
    %614 = tpu.concatenate %609, %611, %613 in 1 : vector<8x128xf32>, vector<8x128xf32>, vector<8x128xf32> -> vector<8x384xf32>
    %615 = arith.truncf %614 : vector<8x384xf32> to vector<8x384xbf16>
    %c32_385 = arith.constant 32 : index
    %c0_386 = arith.constant 0 : index
    %616 = vector.load %arg18[%c32_385, %c0_386] : memref<80x384xbf16, #tpu.memory_space<vmem>>, vector<8x384xbf16>
    tpu.vector_store %arg18[%c32_385, %c0_386], %615 {strides = array<i32>} : memref<80x384xbf16, #tpu.memory_space<vmem>>, vector<8x384xbf16>,
    %c5_387 = arith.constant 5 : index
    %c0_388 = arith.constant 0 : index
    %c0_389 = arith.constant 0 : index
    %617 = vector.load %arg17[%c5_387, %c0_388, %c0_389] : memref<10x10x128xf32, #tpu.memory_space<vmem>>, vector<1x8x128xf32>
    %618 = vector.shape_cast %617 : vector<1x8x128xf32> to vector<8x128xf32>
    %c5_390 = arith.constant 5 : index
    %c1_391 = arith.constant 1 : index
    %c0_392 = arith.constant 0 : index
    %619 = vector.load %arg17[%c5_390, %c1_391, %c0_392] : memref<10x10x128xf32, #tpu.memory_space<vmem>>, vector<1x8x128xf32>
    %620 = vector.shape_cast %619 : vector<1x8x128xf32> to vector<8x128xf32>
    %c5_393 = arith.constant 5 : index
    %c2_394 = arith.constant 2 : index
    %c0_395 = arith.constant 0 : index
    %621 = vector.load %arg17[%c5_393, %c2_394, %c0_395] : memref<10x10x128xf32, #tpu.memory_space<vmem>>, vector<1x8x128xf32>
    %622 = vector.shape_cast %621 : vector<1x8x128xf32> to vector<8x128xf32>
    %623 = tpu.concatenate %618, %620, %622 in 1 : vector<8x128xf32>, vector<8x128xf32>, vector<8x128xf32> -> vector<8x384xf32>
    %624 = arith.truncf %623 : vector<8x384xf32> to vector<8x384xbf16>
    %c40 = arith.constant 40 : index
    %c0_396 = arith.constant 0 : index
    %625 = vector.load %arg18[%c40, %c0_396] : memref<80x384xbf16, #tpu.memory_space<vmem>>, vector<8x384xbf16>
    tpu.vector_store %arg18[%c40, %c0_396], %624 {strides = array<i32>} : memref<80x384xbf16, #tpu.memory_space<vmem>>, vector<8x384xbf16>,
    %c6_397 = arith.constant 6 : index
    %c0_398 = arith.constant 0 : index
    %c0_399 = arith.constant 0 : index
    %626 = vector.load %arg17[%c6_397, %c0_398, %c0_399] : memref<10x10x128xf32, #tpu.memory_space<vmem>>, vector<1x8x128xf32>
    %627 = vector.shape_cast %626 : vector<1x8x128xf32> to vector<8x128xf32>
    %c6_400 = arith.constant 6 : index
    %c1_401 = arith.constant 1 : index
    %c0_402 = arith.constant 0 : index
    %628 = vector.load %arg17[%c6_400, %c1_401, %c0_402] : memref<10x10x128xf32, #tpu.memory_space<vmem>>, vector<1x8x128xf32>
    %629 = vector.shape_cast %628 : vector<1x8x128xf32> to vector<8x128xf32>
    %c6_403 = arith.constant 6 : index
    %c2_404 = arith.constant 2 : index
    %c0_405 = arith.constant 0 : index
    %630 = vector.load %arg17[%c6_403, %c2_404, %c0_405] : memref<10x10x128xf32, #tpu.memory_space<vmem>>, vector<1x8x128xf32>
    %631 = vector.shape_cast %630 : vector<1x8x128xf32> to vector<8x128xf32>
    %632 = tpu.concatenate %627, %629, %631 in 1 : vector<8x128xf32>, vector<8x128xf32>, vector<8x128xf32> -> vector<8x384xf32>
    %633 = arith.truncf %632 : vector<8x384xf32> to vector<8x384xbf16>
    %c48_406 = arith.constant 48 : index
    %c0_407 = arith.constant 0 : index
    %634 = vector.load %arg18[%c48_406, %c0_407] : memref<80x384xbf16, #tpu.memory_space<vmem>>, vector<8x384xbf16>
    tpu.vector_store %arg18[%c48_406, %c0_407], %633 {strides = array<i32>} : memref<80x384xbf16, #tpu.memory_space<vmem>>, vector<8x384xbf16>,
    %c7_408 = arith.constant 7 : index
    %c0_409 = arith.constant 0 : index
    %c0_410 = arith.constant 0 : index
    %635 = vector.load %arg17[%c7_408, %c0_409, %c0_410] : memref<10x10x128xf32, #tpu.memory_space<vmem>>, vector<1x8x128xf32>
    %636 = vector.shape_cast %635 : vector<1x8x128xf32> to vector<8x128xf32>
    %c7_411 = arith.constant 7 : index
    %c1_412 = arith.constant 1 : index
    %c0_413 = arith.constant 0 : index
    %637 = vector.load %arg17[%c7_411, %c1_412, %c0_413] : memref<10x10x128xf32, #tpu.memory_space<vmem>>, vector<1x8x128xf32>
    %638 = vector.shape_cast %637 : vector<1x8x128xf32> to vector<8x128xf32>
    %c7_414 = arith.constant 7 : index
    %c2_415 = arith.constant 2 : index
    %c0_416 = arith.constant 0 : index
    %639 = vector.load %arg17[%c7_414, %c2_415, %c0_416] : memref<10x10x128xf32, #tpu.memory_space<vmem>>, vector<1x8x128xf32>
    %640 = vector.shape_cast %639 : vector<1x8x128xf32> to vector<8x128xf32>
    %641 = tpu.concatenate %636, %638, %640 in 1 : vector<8x128xf32>, vector<8x128xf32>, vector<8x128xf32> -> vector<8x384xf32>
    %642 = arith.truncf %641 : vector<8x384xf32> to vector<8x384xbf16>
    %c56 = arith.constant 56 : index
    %c0_417 = arith.constant 0 : index
    %643 = vector.load %arg18[%c56, %c0_417] : memref<80x384xbf16, #tpu.memory_space<vmem>>, vector<8x384xbf16>
    tpu.vector_store %arg18[%c56, %c0_417], %642 {strides = array<i32>} : memref<80x384xbf16, #tpu.memory_space<vmem>>, vector<8x384xbf16>,
    %c8_418 = arith.constant 8 : index
    %c0_419 = arith.constant 0 : index
    %c0_420 = arith.constant 0 : index
    %644 = vector.load %arg17[%c8_418, %c0_419, %c0_420] : memref<10x10x128xf32, #tpu.memory_space<vmem>>, vector<1x8x128xf32>
    %645 = vector.shape_cast %644 : vector<1x8x128xf32> to vector<8x128xf32>
    %c8_421 = arith.constant 8 : index
    %c1_422 = arith.constant 1 : index
    %c0_423 = arith.constant 0 : index
    %646 = vector.load %arg17[%c8_421, %c1_422, %c0_423] : memref<10x10x128xf32, #tpu.memory_space<vmem>>, vector<1x8x128xf32>
    %647 = vector.shape_cast %646 : vector<1x8x128xf32> to vector<8x128xf32>
    %c8_424 = arith.constant 8 : index
    %c2_425 = arith.constant 2 : index
    %c0_426 = arith.constant 0 : index
    %648 = vector.load %arg17[%c8_424, %c2_425, %c0_426] : memref<10x10x128xf32, #tpu.memory_space<vmem>>, vector<1x8x128xf32>
    %649 = vector.shape_cast %648 : vector<1x8x128xf32> to vector<8x128xf32>
    %650 = tpu.concatenate %645, %647, %649 in 1 : vector<8x128xf32>, vector<8x128xf32>, vector<8x128xf32> -> vector<8x384xf32>
    %651 = arith.truncf %650 : vector<8x384xf32> to vector<8x384xbf16>
    %c64_427 = arith.constant 64 : index
    %c0_428 = arith.constant 0 : index
    %652 = vector.load %arg18[%c64_427, %c0_428] : memref<80x384xbf16, #tpu.memory_space<vmem>>, vector<8x384xbf16>
    tpu.vector_store %arg18[%c64_427, %c0_428], %651 {strides = array<i32>} : memref<80x384xbf16, #tpu.memory_space<vmem>>, vector<8x384xbf16>,
    %c9_429 = arith.constant 9 : index
    %c0_430 = arith.constant 0 : index
    %c0_431 = arith.constant 0 : index
    %653 = vector.load %arg17[%c9_429, %c0_430, %c0_431] : memref<10x10x128xf32, #tpu.memory_space<vmem>>, vector<1x8x128xf32>
    %654 = vector.shape_cast %653 : vector<1x8x128xf32> to vector<8x128xf32>
    %c9_432 = arith.constant 9 : index
    %c1_433 = arith.constant 1 : index
    %c0_434 = arith.constant 0 : index
    %655 = vector.load %arg17[%c9_432, %c1_433, %c0_434] : memref<10x10x128xf32, #tpu.memory_space<vmem>>, vector<1x8x128xf32>
    %656 = vector.shape_cast %655 : vector<1x8x128xf32> to vector<8x128xf32>
    %c9_435 = arith.constant 9 : index
    %c2_436 = arith.constant 2 : index
    %c0_437 = arith.constant 0 : index
    %657 = vector.load %arg17[%c9_435, %c2_436, %c0_437] : memref<10x10x128xf32, #tpu.memory_space<vmem>>, vector<1x8x128xf32>
    %658 = vector.shape_cast %657 : vector<1x8x128xf32> to vector<8x128xf32>
    %659 = tpu.concatenate %654, %656, %658 in 1 : vector<8x128xf32>, vector<8x128xf32>, vector<8x128xf32> -> vector<8x384xf32>
    %660 = arith.truncf %659 : vector<8x384xf32> to vector<8x384xbf16>
    %c72 = arith.constant 72 : index
    %c0_438 = arith.constant 0 : index
    %661 = vector.load %arg18[%c72, %c0_438] : memref<80x384xbf16, #tpu.memory_space<vmem>>, vector<8x384xbf16>
    tpu.vector_store %arg18[%c72, %c0_438], %660 {strides = array<i32>} : memref<80x384xbf16, #tpu.memory_space<vmem>>, vector<8x384xbf16>,
    %cst_439 = arith.constant 0.000000e+00 : f32
    %662 = vector.broadcast %cst_439 : f32 to vector<64x128xf32>
    %c0_440 = arith.constant 0 : index
    %c0_441 = arith.constant 0 : index
    %663 = vector.load %arg18[%c0_440, %c0_441] : memref<80x384xbf16, #tpu.memory_space<vmem>>, vector<64x384xbf16>
    %c0_442 = arith.constant 0 : index
    %c0_443 = arith.constant 0 : index
    %664 = vector.load %arg5[%c0_442, %c0_443] : memref<1152x128xbf16, #tpu.memory_space<vmem>>, vector<384x128xbf16>
    %cst_444 = arith.constant dense<0.000000e+00> : vector<64x128xf32>
    %665 = tpu.matmul %663, %664, %cst_444 {dimension_numbers = #tpu.dot_dimension_numbers<[1], [0], [0], [1], [0, 0, 1, 1], [], []>} : vector<64x384xbf16>, vector<384x128xbf16>, vector<64x128xf32> -> vector<64x128xf32>
    %666 = arith.addf %662, %665 : vector<64x128xf32>
    %c8_445 = arith.constant 8 : index
    %c0_446 = arith.constant 0 : index
    %667 = vector.load %arg18[%c8_445, %c0_446] : memref<80x384xbf16, #tpu.memory_space<vmem>>, vector<64x384xbf16>
    %c384 = arith.constant 384 : index
    %c0_447 = arith.constant 0 : index
    %668 = vector.load %arg5[%c384, %c0_447] : memref<1152x128xbf16, #tpu.memory_space<vmem>>, vector<384x128xbf16>
    %cst_448 = arith.constant dense<0.000000e+00> : vector<64x128xf32>
    %669 = tpu.matmul %667, %668, %cst_448 {dimension_numbers = #tpu.dot_dimension_numbers<[1], [0], [0], [1], [0, 0, 1, 1], [], []>} : vector<64x384xbf16>, vector<384x128xbf16>, vector<64x128xf32> -> vector<64x128xf32>
    %670 = arith.addf %666, %669 : vector<64x128xf32>
    %c16_449 = arith.constant 16 : index
    %c0_450 = arith.constant 0 : index
    %671 = vector.load %arg18[%c16_449, %c0_450] : memref<80x384xbf16, #tpu.memory_space<vmem>>, vector<64x384xbf16>
    %c768 = arith.constant 768 : index
    %c0_451 = arith.constant 0 : index
    %672 = vector.load %arg5[%c768, %c0_451] : memref<1152x128xbf16, #tpu.memory_space<vmem>>, vector<384x128xbf16>
    %cst_452 = arith.constant dense<0.000000e+00> : vector<64x128xf32>
    %673 = tpu.matmul %671, %672, %cst_452 {dimension_numbers = #tpu.dot_dimension_numbers<[1], [0], [0], [1], [0, 0, 1, 1], [], []>} : vector<64x384xbf16>, vector<384x128xbf16>, vector<64x128xf32> -> vector<64x128xf32>
    %674 = arith.addf %670, %673 : vector<64x128xf32>
    %c0_453 = arith.constant 0 : index
    %c0_454 = arith.constant 0 : index
    %675 = vector.load %arg6[%c0_453, %c0_454] : memref<1x128xf32, #tpu.memory_space<vmem>>, vector<1x128xf32>
    %676 = vector.broadcast %675 : vector<1x128xf32> to vector<64x128xf32>
    %677 = arith.mulf %674, %676 : vector<64x128xf32>
    %c0_455 = arith.constant 0 : index
    %c0_456 = arith.constant 0 : index
    %678 = vector.load %arg7[%c0_455, %c0_456] : memref<1x128xf32, #tpu.memory_space<vmem>>, vector<1x128xf32>
    %679 = vector.broadcast %678 : vector<1x128xf32> to vector<64x128xf32>
    %680 = arith.addf %677, %679 : vector<64x128xf32>
    %cst_457 = arith.constant 0.000000e+00 : f32
    %681 = vector.broadcast %cst_457 : f32 to vector<64x128xf32>
    %682 = arith.maximumf %680, %681 : vector<64x128xf32>
    %c0_458 = arith.constant 0 : index
    %c0_459 = arith.constant 0 : index
    %683 = vector.load %arg19[%c0_458, %c0_459] : memref<64x128xf32, #tpu.memory_space<vmem>>, vector<64x128xf32>
    tpu.vector_store %arg19[%c0_458, %c0_459], %682 {strides = array<i32>} : memref<64x128xf32, #tpu.memory_space<vmem>>, vector<64x128xf32>,
    %c0_460 = arith.constant 0 : index
    %c0_461 = arith.constant 0 : index
    %684 = tpu.strided_load %arg19[%c0_460, %c0_461] {strides = array<i32: 2, 1>} : memref<64x128xf32, #tpu.memory_space<vmem>>, vector<32x128xf32>
    %c1_462 = arith.constant 1 : index
    %c0_463 = arith.constant 0 : index
    %685 = tpu.strided_load %arg19[%c1_462, %c0_463] {strides = array<i32: 2, 1>} : memref<64x128xf32, #tpu.memory_space<vmem>>, vector<32x128xf32>
    %686 = arith.maximumf %684, %685 : vector<32x128xf32>
    %c0_464 = arith.constant 0 : index
    %c0_465 = arith.constant 0 : index
    %687 = vector.load %arg20[%c0_464, %c0_465] : memref<32x128xf32, #tpu.memory_space<vmem>>, vector<32x128xf32>
    tpu.vector_store %arg20[%c0_464, %c0_465], %686 {strides = array<i32>} : memref<32x128xf32, #tpu.memory_space<vmem>>, vector<32x128xf32>,
    %c0_466 = arith.constant 0 : index
    %c0_467 = arith.constant 0 : index
    %688 = vector.load %arg20[%c0_466, %c0_467] : memref<32x128xf32, #tpu.memory_space<vmem>>, vector<4x128xf32>
    %c4_468 = arith.constant 4 : index
    %c0_469 = arith.constant 0 : index
    %689 = vector.load %arg20[%c4_468, %c0_469] : memref<32x128xf32, #tpu.memory_space<vmem>>, vector<4x128xf32>
    %690 = arith.maximumf %688, %689 : vector<4x128xf32>
    %c1_470 = arith.constant 1 : index
    %c1_471 = arith.constant 1 : index
    %c0_472 = arith.constant 0 : index
    %691 = vector.load %arg21[%c1_470, %c1_471, %c0_472] : memref<6x6x128xf32, #tpu.memory_space<vmem>>, vector<1x4x128xf32>
    %692 = vector.shape_cast %691 : vector<1x4x128xf32> to vector<4x128xf32>
    %693 = vector.shape_cast %690 : vector<4x128xf32> to vector<1x4x128xf32>
    tpu.vector_store %arg21[%c1_470, %c1_471, %c0_472], %693 {strides = array<i32>} : memref<6x6x128xf32, #tpu.memory_space<vmem>>, vector<1x4x128xf32>,
    %c8_473 = arith.constant 8 : index
    %c0_474 = arith.constant 0 : index
    %694 = vector.load %arg20[%c8_473, %c0_474] : memref<32x128xf32, #tpu.memory_space<vmem>>, vector<4x128xf32>
    %c12_475 = arith.constant 12 : index
    %c0_476 = arith.constant 0 : index
    %695 = vector.load %arg20[%c12_475, %c0_476] : memref<32x128xf32, #tpu.memory_space<vmem>>, vector<4x128xf32>
    %696 = arith.maximumf %694, %695 : vector<4x128xf32>
    %c2_477 = arith.constant 2 : index
    %c1_478 = arith.constant 1 : index
    %c0_479 = arith.constant 0 : index
    %697 = vector.load %arg21[%c2_477, %c1_478, %c0_479] : memref<6x6x128xf32, #tpu.memory_space<vmem>>, vector<1x4x128xf32>
    %698 = vector.shape_cast %697 : vector<1x4x128xf32> to vector<4x128xf32>
    %699 = vector.shape_cast %696 : vector<4x128xf32> to vector<1x4x128xf32>
    tpu.vector_store %arg21[%c2_477, %c1_478, %c0_479], %699 {strides = array<i32>} : memref<6x6x128xf32, #tpu.memory_space<vmem>>, vector<1x4x128xf32>,
    %c16_480 = arith.constant 16 : index
    %c0_481 = arith.constant 0 : index
    %700 = vector.load %arg20[%c16_480, %c0_481] : memref<32x128xf32, #tpu.memory_space<vmem>>, vector<4x128xf32>
    %c20 = arith.constant 20 : index
    %c0_482 = arith.constant 0 : index
    %701 = vector.load %arg20[%c20, %c0_482] : memref<32x128xf32, #tpu.memory_space<vmem>>, vector<4x128xf32>
    %702 = arith.maximumf %700, %701 : vector<4x128xf32>
    %c3_483 = arith.constant 3 : index
    %c1_484 = arith.constant 1 : index
    %c0_485 = arith.constant 0 : index
    %703 = vector.load %arg21[%c3_483, %c1_484, %c0_485] : memref<6x6x128xf32, #tpu.memory_space<vmem>>, vector<1x4x128xf32>
    %704 = vector.shape_cast %703 : vector<1x4x128xf32> to vector<4x128xf32>
    %705 = vector.shape_cast %702 : vector<4x128xf32> to vector<1x4x128xf32>
    tpu.vector_store %arg21[%c3_483, %c1_484, %c0_485], %705 {strides = array<i32>} : memref<6x6x128xf32, #tpu.memory_space<vmem>>, vector<1x4x128xf32>,
    %c24_486 = arith.constant 24 : index
    %c0_487 = arith.constant 0 : index
    %706 = vector.load %arg20[%c24_486, %c0_487] : memref<32x128xf32, #tpu.memory_space<vmem>>, vector<4x128xf32>
    %c28 = arith.constant 28 : index
    %c0_488 = arith.constant 0 : index
    %707 = vector.load %arg20[%c28, %c0_488] : memref<32x128xf32, #tpu.memory_space<vmem>>, vector<4x128xf32>
    %708 = arith.maximumf %706, %707 : vector<4x128xf32>
    %c4_489 = arith.constant 4 : index
    %c1_490 = arith.constant 1 : index
    %c0_491 = arith.constant 0 : index
    %709 = vector.load %arg21[%c4_489, %c1_490, %c0_491] : memref<6x6x128xf32, #tpu.memory_space<vmem>>, vector<1x4x128xf32>
    %710 = vector.shape_cast %709 : vector<1x4x128xf32> to vector<4x128xf32>
    %711 = vector.shape_cast %708 : vector<4x128xf32> to vector<1x4x128xf32>
    tpu.vector_store %arg21[%c4_489, %c1_490, %c0_491], %711 {strides = array<i32>} : memref<6x6x128xf32, #tpu.memory_space<vmem>>, vector<1x4x128xf32>,
    %c0_492 = arith.constant 0 : index
    %c0_493 = arith.constant 0 : index
    %c0_494 = arith.constant 0 : index
    %712 = vector.load %arg21[%c0_492, %c0_493, %c0_494] : memref<6x6x128xf32, #tpu.memory_space<vmem>>, vector<1x4x128xf32>
    %713 = vector.shape_cast %712 : vector<1x4x128xf32> to vector<4x128xf32>
    %c0_495 = arith.constant 0 : index
    %c1_496 = arith.constant 1 : index
    %c0_497 = arith.constant 0 : index
    %714 = vector.load %arg21[%c0_495, %c1_496, %c0_497] : memref<6x6x128xf32, #tpu.memory_space<vmem>>, vector<1x4x128xf32>
    %715 = vector.shape_cast %714 : vector<1x4x128xf32> to vector<4x128xf32>
    %c0_498 = arith.constant 0 : index
    %c2_499 = arith.constant 2 : index
    %c0_500 = arith.constant 0 : index
    %716 = vector.load %arg21[%c0_498, %c2_499, %c0_500] : memref<6x6x128xf32, #tpu.memory_space<vmem>>, vector<1x4x128xf32>
    %717 = vector.shape_cast %716 : vector<1x4x128xf32> to vector<4x128xf32>
    %718 = tpu.concatenate %713, %715, %717 in 1 : vector<4x128xf32>, vector<4x128xf32>, vector<4x128xf32> -> vector<4x384xf32>
    %719 = arith.truncf %718 : vector<4x384xf32> to vector<4x384xbf16>
    %c0_501 = arith.constant 0 : index
    %c0_502 = arith.constant 0 : index
    %720 = vector.load %arg22[%c0_501, %c0_502] : memref<24x384xbf16, #tpu.memory_space<vmem>>, vector<4x384xbf16>
    tpu.vector_store %arg22[%c0_501, %c0_502], %719 {strides = array<i32>} : memref<24x384xbf16, #tpu.memory_space<vmem>>, vector<4x384xbf16>,
    %c1_503 = arith.constant 1 : index
    %c0_504 = arith.constant 0 : index
    %c0_505 = arith.constant 0 : index
    %721 = vector.load %arg21[%c1_503, %c0_504, %c0_505] : memref<6x6x128xf32, #tpu.memory_space<vmem>>, vector<1x4x128xf32>
    %722 = vector.shape_cast %721 : vector<1x4x128xf32> to vector<4x128xf32>
    %c1_506 = arith.constant 1 : index
    %c1_507 = arith.constant 1 : index
    %c0_508 = arith.constant 0 : index
    %723 = vector.load %arg21[%c1_506, %c1_507, %c0_508] : memref<6x6x128xf32, #tpu.memory_space<vmem>>, vector<1x4x128xf32>
    %724 = vector.shape_cast %723 : vector<1x4x128xf32> to vector<4x128xf32>
    %c1_509 = arith.constant 1 : index
    %c2_510 = arith.constant 2 : index
    %c0_511 = arith.constant 0 : index
    %725 = vector.load %arg21[%c1_509, %c2_510, %c0_511] : memref<6x6x128xf32, #tpu.memory_space<vmem>>, vector<1x4x128xf32>
    %726 = vector.shape_cast %725 : vector<1x4x128xf32> to vector<4x128xf32>
    %727 = tpu.concatenate %722, %724, %726 in 1 : vector<4x128xf32>, vector<4x128xf32>, vector<4x128xf32> -> vector<4x384xf32>
    %728 = arith.truncf %727 : vector<4x384xf32> to vector<4x384xbf16>
    %c4_512 = arith.constant 4 : index
    %c0_513 = arith.constant 0 : index
    %729 = vector.load %arg22[%c4_512, %c0_513] : memref<24x384xbf16, #tpu.memory_space<vmem>>, vector<4x384xbf16>
    tpu.vector_store %arg22[%c4_512, %c0_513], %728 {strides = array<i32>} : memref<24x384xbf16, #tpu.memory_space<vmem>>, vector<4x384xbf16>,
    %c2_514 = arith.constant 2 : index
    %c0_515 = arith.constant 0 : index
    %c0_516 = arith.constant 0 : index
    %730 = vector.load %arg21[%c2_514, %c0_515, %c0_516] : memref<6x6x128xf32, #tpu.memory_space<vmem>>, vector<1x4x128xf32>
    %731 = vector.shape_cast %730 : vector<1x4x128xf32> to vector<4x128xf32>
    %c2_517 = arith.constant 2 : index
    %c1_518 = arith.constant 1 : index
    %c0_519 = arith.constant 0 : index
    %732 = vector.load %arg21[%c2_517, %c1_518, %c0_519] : memref<6x6x128xf32, #tpu.memory_space<vmem>>, vector<1x4x128xf32>
    %733 = vector.shape_cast %732 : vector<1x4x128xf32> to vector<4x128xf32>
    %c2_520 = arith.constant 2 : index
    %c2_521 = arith.constant 2 : index
    %c0_522 = arith.constant 0 : index
    %734 = vector.load %arg21[%c2_520, %c2_521, %c0_522] : memref<6x6x128xf32, #tpu.memory_space<vmem>>, vector<1x4x128xf32>
    %735 = vector.shape_cast %734 : vector<1x4x128xf32> to vector<4x128xf32>
    %736 = tpu.concatenate %731, %733, %735 in 1 : vector<4x128xf32>, vector<4x128xf32>, vector<4x128xf32> -> vector<4x384xf32>
    %737 = arith.truncf %736 : vector<4x384xf32> to vector<4x384xbf16>
    %c8_523 = arith.constant 8 : index
    %c0_524 = arith.constant 0 : index
    %738 = vector.load %arg22[%c8_523, %c0_524] : memref<24x384xbf16, #tpu.memory_space<vmem>>, vector<4x384xbf16>
    tpu.vector_store %arg22[%c8_523, %c0_524], %737 {strides = array<i32>} : memref<24x384xbf16, #tpu.memory_space<vmem>>, vector<4x384xbf16>,
    %c3_525 = arith.constant 3 : index
    %c0_526 = arith.constant 0 : index
    %c0_527 = arith.constant 0 : index
    %739 = vector.load %arg21[%c3_525, %c0_526, %c0_527] : memref<6x6x128xf32, #tpu.memory_space<vmem>>, vector<1x4x128xf32>
    %740 = vector.shape_cast %739 : vector<1x4x128xf32> to vector<4x128xf32>
    %c3_528 = arith.constant 3 : index
    %c1_529 = arith.constant 1 : index
    %c0_530 = arith.constant 0 : index
    %741 = vector.load %arg21[%c3_528, %c1_529, %c0_530] : memref<6x6x128xf32, #tpu.memory_space<vmem>>, vector<1x4x128xf32>
    %742 = vector.shape_cast %741 : vector<1x4x128xf32> to vector<4x128xf32>
    %c3_531 = arith.constant 3 : index
    %c2_532 = arith.constant 2 : index
    %c0_533 = arith.constant 0 : index
    %743 = vector.load %arg21[%c3_531, %c2_532, %c0_533] : memref<6x6x128xf32, #tpu.memory_space<vmem>>, vector<1x4x128xf32>
    %744 = vector.shape_cast %743 : vector<1x4x128xf32> to vector<4x128xf32>
    %745 = tpu.concatenate %740, %742, %744 in 1 : vector<4x128xf32>, vector<4x128xf32>, vector<4x128xf32> -> vector<4x384xf32>
    %746 = arith.truncf %745 : vector<4x384xf32> to vector<4x384xbf16>
    %c12_534 = arith.constant 12 : index
    %c0_535 = arith.constant 0 : index
    %747 = vector.load %arg22[%c12_534, %c0_535] : memref<24x384xbf16, #tpu.memory_space<vmem>>, vector<4x384xbf16>
    tpu.vector_store %arg22[%c12_534, %c0_535], %746 {strides = array<i32>} : memref<24x384xbf16, #tpu.memory_space<vmem>>, vector<4x384xbf16>,
    %c4_536 = arith.constant 4 : index
    %c0_537 = arith.constant 0 : index
    %c0_538 = arith.constant 0 : index
    %748 = vector.load %arg21[%c4_536, %c0_537, %c0_538] : memref<6x6x128xf32, #tpu.memory_space<vmem>>, vector<1x4x128xf32>
    %749 = vector.shape_cast %748 : vector<1x4x128xf32> to vector<4x128xf32>
    %c4_539 = arith.constant 4 : index
    %c1_540 = arith.constant 1 : index
    %c0_541 = arith.constant 0 : index
    %750 = vector.load %arg21[%c4_539, %c1_540, %c0_541] : memref<6x6x128xf32, #tpu.memory_space<vmem>>, vector<1x4x128xf32>
    %751 = vector.shape_cast %750 : vector<1x4x128xf32> to vector<4x128xf32>
    %c4_542 = arith.constant 4 : index
    %c2_543 = arith.constant 2 : index
    %c0_544 = arith.constant 0 : index
    %752 = vector.load %arg21[%c4_542, %c2_543, %c0_544] : memref<6x6x128xf32, #tpu.memory_space<vmem>>, vector<1x4x128xf32>
    %753 = vector.shape_cast %752 : vector<1x4x128xf32> to vector<4x128xf32>
    %754 = tpu.concatenate %749, %751, %753 in 1 : vector<4x128xf32>, vector<4x128xf32>, vector<4x128xf32> -> vector<4x384xf32>
    %755 = arith.truncf %754 : vector<4x384xf32> to vector<4x384xbf16>
    %c16_545 = arith.constant 16 : index
    %c0_546 = arith.constant 0 : index
    %756 = vector.load %arg22[%c16_545, %c0_546] : memref<24x384xbf16, #tpu.memory_space<vmem>>, vector<4x384xbf16>
    tpu.vector_store %arg22[%c16_545, %c0_546], %755 {strides = array<i32>} : memref<24x384xbf16, #tpu.memory_space<vmem>>, vector<4x384xbf16>,
    %c5_547 = arith.constant 5 : index
    %c0_548 = arith.constant 0 : index
    %c0_549 = arith.constant 0 : index
    %757 = vector.load %arg21[%c5_547, %c0_548, %c0_549] : memref<6x6x128xf32, #tpu.memory_space<vmem>>, vector<1x4x128xf32>
    %758 = vector.shape_cast %757 : vector<1x4x128xf32> to vector<4x128xf32>
    %c5_550 = arith.constant 5 : index
    %c1_551 = arith.constant 1 : index
    %c0_552 = arith.constant 0 : index
    %759 = vector.load %arg21[%c5_550, %c1_551, %c0_552] : memref<6x6x128xf32, #tpu.memory_space<vmem>>, vector<1x4x128xf32>
    %760 = vector.shape_cast %759 : vector<1x4x128xf32> to vector<4x128xf32>
    %c5_553 = arith.constant 5 : index
    %c2_554 = arith.constant 2 : index
    %c0_555 = arith.constant 0 : index
    %761 = vector.load %arg21[%c5_553, %c2_554, %c0_555] : memref<6x6x128xf32, #tpu.memory_space<vmem>>, vector<1x4x128xf32>
    %762 = vector.shape_cast %761 : vector<1x4x128xf32> to vector<4x128xf32>
    %763 = tpu.concatenate %758, %760, %762 in 1 : vector<4x128xf32>, vector<4x128xf32>, vector<4x128xf32> -> vector<4x384xf32>
    %764 = arith.truncf %763 : vector<4x384xf32> to vector<4x384xbf16>
    %c20_556 = arith.constant 20 : index
    %c0_557 = arith.constant 0 : index
    %765 = vector.load %arg22[%c20_556, %c0_557] : memref<24x384xbf16, #tpu.memory_space<vmem>>, vector<4x384xbf16>
    tpu.vector_store %arg22[%c20_556, %c0_557], %764 {strides = array<i32>} : memref<24x384xbf16, #tpu.memory_space<vmem>>, vector<4x384xbf16>,
    %cst_558 = arith.constant 0.000000e+00 : f32
    %766 = vector.broadcast %cst_558 : f32 to vector<16x128xf32>
    %c0_559 = arith.constant 0 : index
    %c0_560 = arith.constant 0 : index
    %767 = vector.load %arg22[%c0_559, %c0_560] : memref<24x384xbf16, #tpu.memory_space<vmem>>, vector<16x384xbf16>
    %c0_561 = arith.constant 0 : index
    %c0_562 = arith.constant 0 : index
    %768 = vector.load %arg8[%c0_561, %c0_562] : memref<1152x128xbf16, #tpu.memory_space<vmem>>, vector<384x128xbf16>
    %cst_563 = arith.constant dense<0.000000e+00> : vector<16x128xf32>
    %769 = tpu.matmul %767, %768, %cst_563 {dimension_numbers = #tpu.dot_dimension_numbers<[1], [0], [0], [1], [0, 0, 1, 1], [], []>} : vector<16x384xbf16>, vector<384x128xbf16>, vector<16x128xf32> -> vector<16x128xf32>
    %770 = arith.addf %766, %769 : vector<16x128xf32>
    %c4_564 = arith.constant 4 : index
    %c0_565 = arith.constant 0 : index
    %771 = vector.load %arg22[%c4_564, %c0_565] : memref<24x384xbf16, #tpu.memory_space<vmem>>, vector<16x384xbf16>
    %c384_566 = arith.constant 384 : index
    %c0_567 = arith.constant 0 : index
    %772 = vector.load %arg8[%c384_566, %c0_567] : memref<1152x128xbf16, #tpu.memory_space<vmem>>, vector<384x128xbf16>
    %cst_568 = arith.constant dense<0.000000e+00> : vector<16x128xf32>
    %773 = tpu.matmul %771, %772, %cst_568 {dimension_numbers = #tpu.dot_dimension_numbers<[1], [0], [0], [1], [0, 0, 1, 1], [], []>} : vector<16x384xbf16>, vector<384x128xbf16>, vector<16x128xf32> -> vector<16x128xf32>
    %774 = arith.addf %770, %773 : vector<16x128xf32>
    %c8_569 = arith.constant 8 : index
    %c0_570 = arith.constant 0 : index
    %775 = vector.load %arg22[%c8_569, %c0_570] : memref<24x384xbf16, #tpu.memory_space<vmem>>, vector<16x384xbf16>
    %c768_571 = arith.constant 768 : index
    %c0_572 = arith.constant 0 : index
    %776 = vector.load %arg8[%c768_571, %c0_572] : memref<1152x128xbf16, #tpu.memory_space<vmem>>, vector<384x128xbf16>
    %cst_573 = arith.constant dense<0.000000e+00> : vector<16x128xf32>
    %777 = tpu.matmul %775, %776, %cst_573 {dimension_numbers = #tpu.dot_dimension_numbers<[1], [0], [0], [1], [0, 0, 1, 1], [], []>} : vector<16x384xbf16>, vector<384x128xbf16>, vector<16x128xf32> -> vector<16x128xf32>
    %778 = arith.addf %774, %777 : vector<16x128xf32>
    %c0_574 = arith.constant 0 : index
    %c0_575 = arith.constant 0 : index
    %779 = vector.load %arg9[%c0_574, %c0_575] : memref<1x128xf32, #tpu.memory_space<vmem>>, vector<1x128xf32>
    %780 = vector.broadcast %779 : vector<1x128xf32> to vector<16x128xf32>
    %781 = arith.mulf %778, %780 : vector<16x128xf32>
    %c0_576 = arith.constant 0 : index
    %c0_577 = arith.constant 0 : index
    %782 = vector.load %arg10[%c0_576, %c0_577] : memref<1x128xf32, #tpu.memory_space<vmem>>, vector<1x128xf32>
    %783 = vector.broadcast %782 : vector<1x128xf32> to vector<16x128xf32>
    %784 = arith.addf %781, %783 : vector<16x128xf32>
    %cst_578 = arith.constant 0.000000e+00 : f32
    %785 = vector.broadcast %cst_578 : f32 to vector<16x128xf32>
    %786 = arith.maximumf %784, %785 : vector<16x128xf32>
    %c0_579 = arith.constant 0 : index
    %c0_580 = arith.constant 0 : index
    %787 = vector.load %arg23[%c0_579, %c0_580] : memref<16x128xf32, #tpu.memory_space<vmem>>, vector<16x128xf32>
    tpu.vector_store %arg23[%c0_579, %c0_580], %786 {strides = array<i32>} : memref<16x128xf32, #tpu.memory_space<vmem>>, vector<16x128xf32>,
    %c0_581 = arith.constant 0 : index
    %c0_582 = arith.constant 0 : index
    %788 = tpu.strided_load %arg23[%c0_581, %c0_582] {strides = array<i32: 2, 1>} : memref<16x128xf32, #tpu.memory_space<vmem>>, vector<8x128xf32>
    %c1_583 = arith.constant 1 : index
    %c0_584 = arith.constant 0 : index
    %789 = tpu.strided_load %arg23[%c1_583, %c0_584] {strides = array<i32: 2, 1>} : memref<16x128xf32, #tpu.memory_space<vmem>>, vector<8x128xf32>
    %790 = arith.maximumf %788, %789 : vector<8x128xf32>
    %c0_585 = arith.constant 0 : index
    %c0_586 = arith.constant 0 : index
    %791 = vector.load %arg24[%c0_585, %c0_586] : memref<8x128xf32, #tpu.memory_space<vmem>>, vector<8x128xf32>
    tpu.vector_store %arg24[%c0_585, %c0_586], %790 {strides = array<i32>} : memref<8x128xf32, #tpu.memory_space<vmem>>, vector<8x128xf32>,
    %c0_587 = arith.constant 0 : index
    %c0_588 = arith.constant 0 : index
    %792 = vector.load %arg24[%c0_587, %c0_588] : memref<8x128xf32, #tpu.memory_space<vmem>>, vector<2x128xf32>
    %c2_589 = arith.constant 2 : index
    %c0_590 = arith.constant 0 : index
    %793 = vector.load %arg24[%c2_589, %c0_590] : memref<8x128xf32, #tpu.memory_space<vmem>>, vector<2x128xf32>
    %794 = arith.maximumf %792, %793 : vector<2x128xf32>
    %c0_591 = arith.constant 0 : index
    %c0_592 = arith.constant 0 : index
    %795 = vector.load %arg25[%c0_591, %c0_592] : memref<8x128xf32, #tpu.memory_space<vmem>>, vector<2x128xf32>
    tpu.vector_store %arg25[%c0_591, %c0_592], %794 {strides = array<i32>} : memref<8x128xf32, #tpu.memory_space<vmem>>, vector<2x128xf32>,
    %c4_593 = arith.constant 4 : index
    %c0_594 = arith.constant 0 : index
    %796 = vector.load %arg24[%c4_593, %c0_594] : memref<8x128xf32, #tpu.memory_space<vmem>>, vector<2x128xf32>
    %c6_595 = arith.constant 6 : index
    %c0_596 = arith.constant 0 : index
    %797 = vector.load %arg24[%c6_595, %c0_596] : memref<8x128xf32, #tpu.memory_space<vmem>>, vector<2x128xf32>
    %798 = arith.maximumf %796, %797 : vector<2x128xf32>
    %c2_597 = arith.constant 2 : index
    %c0_598 = arith.constant 0 : index
    %799 = vector.load %arg25[%c2_597, %c0_598] : memref<8x128xf32, #tpu.memory_space<vmem>>, vector<2x128xf32>
    tpu.vector_store %arg25[%c2_597, %c0_598], %798 {strides = array<i32>} : memref<8x128xf32, #tpu.memory_space<vmem>>, vector<2x128xf32>,
    %cst_599 = arith.constant 0.000000e+00 : f32
    %800 = vector.broadcast %cst_599 : f32 to vector<1x256xf32>
    %c0_600 = arith.constant 0 : index
    %c0_601 = arith.constant 0 : index
    %801 = vector.load %arg25[%c0_600, %c0_601] : memref<8x128xf32, #tpu.memory_space<vmem>>, vector<1x128xf32>
    %802 = arith.truncf %801 : vector<1x128xf32> to vector<1x128xbf16>
    %c0_602 = arith.constant 0 : index
    %c0_603 = arith.constant 0 : index
    %803 = vector.load %arg11[%c0_602, %c0_603] : memref<512x256xbf16, #tpu.memory_space<vmem>>, vector<128x256xbf16>
    %cst_604 = arith.constant dense<0.000000e+00> : vector<1x256xf32>
    %804 = tpu.matmul %802, %803, %cst_604 {dimension_numbers = #tpu.dot_dimension_numbers<[1], [0], [0], [1], [0, 0, 1, 1], [], []>} : vector<1x128xbf16>, vector<128x256xbf16>, vector<1x256xf32> -> vector<1x256xf32>
    %805 = arith.addf %800, %804 : vector<1x256xf32>
    %c1_605 = arith.constant 1 : index
    %c0_606 = arith.constant 0 : index
    %806 = vector.load %arg25[%c1_605, %c0_606] : memref<8x128xf32, #tpu.memory_space<vmem>>, vector<1x128xf32>
    %807 = arith.truncf %806 : vector<1x128xf32> to vector<1x128xbf16>
    %c128 = arith.constant 128 : index
    %c0_607 = arith.constant 0 : index
    %808 = vector.load %arg11[%c128, %c0_607] : memref<512x256xbf16, #tpu.memory_space<vmem>>, vector<128x256xbf16>
    %cst_608 = arith.constant dense<0.000000e+00> : vector<1x256xf32>
    %809 = tpu.matmul %807, %808, %cst_608 {dimension_numbers = #tpu.dot_dimension_numbers<[1], [0], [0], [1], [0, 0, 1, 1], [], []>} : vector<1x128xbf16>, vector<128x256xbf16>, vector<1x256xf32> -> vector<1x256xf32>
    %810 = arith.addf %805, %809 : vector<1x256xf32>
    %c2_609 = arith.constant 2 : index
    %c0_610 = arith.constant 0 : index
    %811 = vector.load %arg25[%c2_609, %c0_610] : memref<8x128xf32, #tpu.memory_space<vmem>>, vector<1x128xf32>
    %812 = arith.truncf %811 : vector<1x128xf32> to vector<1x128xbf16>
    %c256 = arith.constant 256 : index
    %c0_611 = arith.constant 0 : index
    %813 = vector.load %arg11[%c256, %c0_611] : memref<512x256xbf16, #tpu.memory_space<vmem>>, vector<128x256xbf16>
    %cst_612 = arith.constant dense<0.000000e+00> : vector<1x256xf32>
    %814 = tpu.matmul %812, %813, %cst_612 {dimension_numbers = #tpu.dot_dimension_numbers<[1], [0], [0], [1], [0, 0, 1, 1], [], []>} : vector<1x128xbf16>, vector<128x256xbf16>, vector<1x256xf32> -> vector<1x256xf32>
    %815 = arith.addf %810, %814 : vector<1x256xf32>
    %c3_613 = arith.constant 3 : index
    %c0_614 = arith.constant 0 : index
    %816 = vector.load %arg25[%c3_613, %c0_614] : memref<8x128xf32, #tpu.memory_space<vmem>>, vector<1x128xf32>
    %817 = arith.truncf %816 : vector<1x128xf32> to vector<1x128xbf16>
    %c384_615 = arith.constant 384 : index
    %c0_616 = arith.constant 0 : index
    %818 = vector.load %arg11[%c384_615, %c0_616] : memref<512x256xbf16, #tpu.memory_space<vmem>>, vector<128x256xbf16>
    %cst_617 = arith.constant dense<0.000000e+00> : vector<1x256xf32>
    %819 = tpu.matmul %817, %818, %cst_617 {dimension_numbers = #tpu.dot_dimension_numbers<[1], [0], [0], [1], [0, 0, 1, 1], [], []>} : vector<1x128xbf16>, vector<128x256xbf16>, vector<1x256xf32> -> vector<1x256xf32>
    %820 = arith.addf %815, %819 : vector<1x256xf32>
    %c0_618 = arith.constant 0 : index
    %c0_619 = arith.constant 0 : index
    %821 = vector.load %arg12[%c0_618, %c0_619] : memref<1x256xf32, #tpu.memory_space<vmem>>, vector<1x256xf32>
    %822 = arith.mulf %820, %821 : vector<1x256xf32>
    %c0_620 = arith.constant 0 : index
    %c0_621 = arith.constant 0 : index
    %823 = vector.load %arg13[%c0_620, %c0_621] : memref<1x256xf32, #tpu.memory_space<vmem>>, vector<1x256xf32>
    %824 = arith.addf %822, %823 : vector<1x256xf32>
    %cst_622 = arith.constant 0.000000e+00 : f32
    %825 = vector.broadcast %cst_622 : f32 to vector<1x256xf32>
    %826 = arith.maximumf %824, %825 : vector<1x256xf32>
    %c0_623 = arith.constant 0 : index
    %c0_624 = arith.constant 0 : index
    %827 = vector.load %arg14[%c0_623, %c0_624] : memref<256x128xf32, #tpu.memory_space<vmem>>, vector<256x128xf32>
    %cst_625 = arith.constant dense<0.000000e+00> : vector<1x128xf32>
    %828 = tpu.matmul %826, %827, %cst_625 {dimension_numbers = #tpu.dot_dimension_numbers<[1], [0], [0], [1], [0, 0, 1, 1], [], []>} : vector<1x256xf32>, vector<256x128xf32>, vector<1x128xf32> -> vector<1x128xf32>
    %829 = tpu.iota {dimensions = array<i32: 1>} : vector<1x128xi32>
    %c4_i32 = arith.constant 4 : i32
    %830 = vector.broadcast %c4_i32 : i32 to vector<1x128xi32>
    %831 = arith.cmpi slt, %829, %830 : vector<1x128xi32>
    %cst_626 = arith.constant -1.000000e+30 : f32
    %832 = vector.broadcast %cst_626 : f32 to vector<1x128xf32>
    %833 = arith.select %831, %828, %832 : vector<1x128xi1>, vector<1x128xf32>
    %cst_627 = arith.constant dense<0xFF800000> : vector<1xf32>
    %834 = vector.multi_reduction <maximumf>, %833, %cst_627 [1] : vector<1x128xf32> to vector<1xf32>
    %835 = vector.shape_cast %834 : vector<1xf32> to vector<1x1xf32>
    %836 = vector.broadcast %835 : vector<1x1xf32> to vector<1x128xf32>
    %837 = arith.subf %833, %836 : vector<1x128xf32>
    %838 = math.exp %837 : vector<1x128xf32>
    %cst_628 = arith.constant dense<0.000000e+00> : vector<1xf32>
    %839 = vector.multi_reduction <add>, %838, %cst_628 [1] : vector<1x128xf32> to vector<1xf32>
    %840 = vector.shape_cast %839 : vector<1xf32> to vector<1x1xf32>
    %841 = vector.broadcast %840 : vector<1x1xf32> to vector<1x128xf32>
    %842 = arith.divf %838, %841 : vector<1x128xf32>
    %843 = vector.shape_cast %842 : vector<1x128xf32> to vector<1x1x128xf32>
    %844 = vector.broadcast %843 : vector<1x1x128xf32> to vector<1x8x128xf32>
    %c0_629 = arith.constant 0 : index
    %c0_630 = arith.constant 0 : index
    %c0_631 = arith.constant 0 : index
    %845 = vector.load %arg15[%c0_629, %c0_630, %c0_631] : memref<1x8x128xf32, #tpu.memory_space<vmem>>, vector<1x8x128xf32>
    tpu.vector_store %arg15[%c0_629, %c0_630, %c0_631], %844 {strides = array<i32>} : memref<1x8x128xf32, #tpu.memory_space<vmem>>, vector<1x8x128xf32>,
    return
  }
  func.func @transform_0(%arg0: i32) -> (i32, i32, i32, i32) {
    %c0_i32 = arith.constant 0 : i32
    %c0_i32_0 = arith.constant 0 : i32
    %c0_i32_1 = arith.constant 0 : i32
    %c0_i32_2 = arith.constant 0 : i32
    return %arg0, %c0_i32, %c0_i32_0, %c0_i32_1 : i32, i32, i32, i32
  }
  func.func @transform_1(%arg0: i32) -> (i32, i32) {
    %c0_i32 = arith.constant 0 : i32
    %c0_i32_0 = arith.constant 0 : i32
    %c0_i32_1 = arith.constant 0 : i32
    return %c0_i32, %c0_i32_0 : i32, i32
  }
  func.func @transform_2(%arg0: i32) -> (i32, i32) {
    %c0_i32 = arith.constant 0 : i32
    %c0_i32_0 = arith.constant 0 : i32
    %c0_i32_1 = arith.constant 0 : i32
    return %c0_i32, %c0_i32_0 : i32, i32
  }
  func.func @transform_3(%arg0: i32) -> (i32, i32) {
    %c0_i32 = arith.constant 0 : i32
    %c0_i32_0 = arith.constant 0 : i32
    %c0_i32_1 = arith.constant 0 : i32
    return %c0_i32, %c0_i32_0 : i32, i32
  }
  func.func @transform_4(%arg0: i32) -> (i32, i32) {
    %c0_i32 = arith.constant 0 : i32
    %c0_i32_0 = arith.constant 0 : i32
    %c0_i32_1 = arith.constant 0 : i32
    return %c0_i32, %c0_i32_0 : i32, i32
  }
  func.func @transform_5(%arg0: i32) -> (i32, i32) {
    %c0_i32 = arith.constant 0 : i32
    %c0_i32_0 = arith.constant 0 : i32
    %c0_i32_1 = arith.constant 0 : i32
    return %c0_i32, %c0_i32_0 : i32, i32
  }
  func.func @transform_6(%arg0: i32) -> (i32, i32) {
    %c0_i32 = arith.constant 0 : i32
    %c0_i32_0 = arith.constant 0 : i32
    %c0_i32_1 = arith.constant 0 : i32
    return %c0_i32, %c0_i32_0 : i32, i32
  }
  func.func @transform_7(%arg0: i32) -> (i32, i32) {
    %c0_i32 = arith.constant 0 : i32
    %c0_i32_0 = arith.constant 0 : i32
    %c0_i32_1 = arith.constant 0 : i32
    return %c0_i32, %c0_i32_0 : i32, i32
  }
  func.func @transform_8(%arg0: i32) -> (i32, i32) {
    %c0_i32 = arith.constant 0 : i32
    %c0_i32_0 = arith.constant 0 : i32
    %c0_i32_1 = arith.constant 0 : i32
    return %c0_i32, %c0_i32_0 : i32, i32
  }
  func.func @transform_9(%arg0: i32) -> (i32, i32) {
    %c0_i32 = arith.constant 0 : i32
    %c0_i32_0 = arith.constant 0 : i32
    %c0_i32_1 = arith.constant 0 : i32
    return %c0_i32, %c0_i32_0 : i32, i32
  }
  func.func @transform_10(%arg0: i32) -> (i32, i32) {
    %c0_i32 = arith.constant 0 : i32
    %c0_i32_0 = arith.constant 0 : i32
    %c0_i32_1 = arith.constant 0 : i32
    return %c0_i32, %c0_i32_0 : i32, i32
  }
  func.func @transform_11(%arg0: i32) -> (i32, i32) {
    %c0_i32 = arith.constant 0 : i32
    %c0_i32_0 = arith.constant 0 : i32
    %c0_i32_1 = arith.constant 0 : i32
    return %c0_i32, %c0_i32_0 : i32, i32
  }
  func.func @transform_12(%arg0: i32) -> (i32, i32) {
    %c0_i32 = arith.constant 0 : i32
    %c0_i32_0 = arith.constant 0 : i32
    %c0_i32_1 = arith.constant 0 : i32
    return %c0_i32, %c0_i32_0 : i32, i32
  }
  func.func @transform_13(%arg0: i32) -> (i32, i32) {
    %c0_i32 = arith.constant 0 : i32
    %c0_i32_0 = arith.constant 0 : i32
    %c0_i32_1 = arith.constant 0 : i32
    return %c0_i32, %c0_i32_0 : i32, i32
  }
  func.func @transform_14(%arg0: i32) -> (i32, i32, i32) {
    %c0_i32 = arith.constant 0 : i32
    %c0_i32_0 = arith.constant 0 : i32
    %c0_i32_1 = arith.constant 0 : i32
    return %arg0, %c0_i32, %c0_i32_0 : i32, i32, i32
  }
}

</mosaic_0001>

<llo_original>
// kernel: forward.1
$region0: #{forward.1}
  #allocation0 [shape = 'u32[]', space=smem, size = 0x4, offset = 0x4, fixed_abs, tag = 'smem constant byte address 0x4 - core index']
  #allocation1 [shape = 'u32[72,128]{1,0:T(1,128)}', space=vmem, size = 0x9000, scoped, tag = 'internal scratch']
  #allocation2 [shape = 'f32[128,128]{1,0:T(8,128)}', space=vmem, size = 0x10000, scoped, tag = 'scratch operand']
  #allocation3 [shape = 'f32[10,10,128]{2,1,0:T(8,128)}', space=vmem, size = 0x14000, scoped, tag = 'scratch operand']
  #allocation4 [shape = 'bf16[80,384]{1,0:T(8,128)(2,1)}', space=vmem, size = 0xf000, scoped, tag = 'scratch operand']
  #allocation5 [shape = 'f32[64,128]{1,0:T(8,128)}', space=vmem, size = 0x8000, scoped, tag = 'scratch operand']
  #allocation6 [shape = 'f32[32,128]{1,0:T(8,128)}', space=vmem, size = 0x4000, scoped, tag = 'scratch operand']
  #allocation7 [shape = 'f32[6,6,128]{2,1,0:T(8,128)}', space=vmem, size = 0x6000, scoped, tag = 'scratch operand']
  #allocation8 [shape = 'bf16[24,384]{1,0:T(8,128)(2,1)}', space=vmem, size = 0x4800, scoped, tag = 'scratch operand']
  #allocation9 [shape = 'f32[16,128]{1,0:T(8,128)}', space=vmem, size = 0x2000, scoped, tag = 'scratch operand']
  #allocation10 [shape = 'f32[8,128]{1,0:T(8,128)}', space=vmem, size = 0x1000, scoped, tag = 'scratch operand']
  #allocation11 [shape = 'f32[8,128]{1,0:T(8,128)}', space=vmem, size = 0x1000, scoped, tag = 'scratch operand']
  %s0 = inlined_call_operand.vmem [shape: f32[2,18,18,128], index: 0, kind: input, shape index: {}]
  %s1 = inlined_call_operand.vmem [shape: f32[9,128], index: 1, kind: input, shape index: {}]
  %s2 = inlined_call_operand.vmem [shape: f32[1,128], index: 2, kind: input, shape index: {}]
  %s3 = inlined_call_operand.vmem [shape: f32[1,128], index: 3, kind: input, shape index: {}]
  %s4 = inlined_call_operand.vmem [shape: bf16[1152,128], index: 4, kind: input, shape index: {}]
  %s5 = inlined_call_operand.vmem [shape: f32[1,128], index: 5, kind: input, shape index: {}]
  %s6 = inlined_call_operand.vmem [shape: f32[1,128], index: 6, kind: input, shape index: {}]
  %s7 = inlined_call_operand.hbm [shape: bf16[1152,128], index: 7, kind: input, shape index: {}]
  %s8 = inlined_call_operand.vmem [shape: f32[1,128], index: 8, kind: input, shape index: {}]
  %s9 = inlined_call_operand.vmem [shape: f32[1,128], index: 9, kind: input, shape index: {}]
  %s10 = inlined_call_operand.hbm [shape: bf16[512,256], index: 10, kind: input, shape index: {}]
  %s11 = inlined_call_operand.vmem [shape: f32[1,256], index: 11, kind: input, shape index: {}]
  %s12 = inlined_call_operand.vmem [shape: f32[1,256], index: 12, kind: input, shape index: {}]
  %s13 = inlined_call_operand.vmem [shape: f32[256,128], index: 13, kind: input, shape index: {}]
  %s14 = inlined_call_operand.vmem [shape: f32[2,8,128], index: 14, kind: output, shape index: {}]
  %s15 = sld [smem:[#allocation0]]
  $region97: #{forward.1} parent=0
    _
  %s17 = ssub.s32 1, %s15
  %s18 = scalar_select 0, %s17, %s15
  $region1: #{forward.1} parent=0
    #allocation12 [shape = 'u8[294912]{0}', space=vmem, size = 0x48000, scoped, tag = 'input window, operand 7, single buffered']
    #allocation13 [shape = 's32[2]{0}', space=sflag, size = 0x8, scoped, tag = 'scoped memory for forward.1']
    #allocation14 [shape = 'u8[262144]{0}', space=vmem, size = 0x40000, scoped, tag = 'input window, operand 10, single buffered']
    #allocation15 [shape = 's32[1]{0}', space=sflag, size = 0x4, scoped, tag = 'scoped memory for forward.1']
    %19 = vsyncpa [#allocation13], 0
    %20 = vsyncpa [#allocation15], 0
    loop: start=0, step=1, limit=4
    $region2: #{forward.1} parent=1 // loop_pre_header
      _
    $region3: #{forward.1} parent=1 // loop_header
      %s22 = sphi 0, %s26
      %p23 = scmp.ge.s32.totalorder %s22, 4
      %s32 = sphi 0, %s34
      %s35 = sphi 0, %s32
      %s36 = sphi 0, %s35
      %s52 = sphi 0, %s36
      %s56 = sphi 0, %s56
      %s58 = sphi 0, %s56
      %s59 = sphi 0, %s58
      %s73 = sphi 0, %s59
      %s77 = sphi 0, %s77
      %s79 = sphi 0, %s77
      %s80 = sphi 0, %s79
      %s94 = sphi 0, %s80
      %s98 = sphi 0, %s98
      %s100 = sphi 0, %s98
      %s101 = sphi 0, %s100
      %s115 = sphi 0, %s101
      %s119 = sphi 0, %s119
      %s121 = sphi 0, %s119
      %s122 = sphi 0, %s121
      %s136 = sphi 0, %s122
      %s140 = sphi 0, %s140
      %s142 = sphi 0, %s140
      %s143 = sphi 0, %s142
      %s157 = sphi 0, %s143
      %s161 = sphi 0, %s161
      %s163 = sphi 0, %s161
      %s164 = sphi 0, %s163
      %s178 = sphi 0, %s164
      %s182 = sphi 0, %s182
      %s184 = sphi 0, %s182
      %s185 = sphi 0, %s184
      %s199 = sphi 0, %s185
      %s203 = sphi 0, %s203
      %s205 = sphi 0, %s203
      %s206 = sphi 0, %s205
      %s220 = sphi 0, %s206
      %s224 = sphi 0, %s224
      %s226 = sphi 0, %s224
      %s227 = sphi 0, %s226
      %s241 = sphi 0, %s227
      %s245 = sphi 0, %s245
      %s247 = sphi 0, %s245
      %s248 = sphi 0, %s247
      %s262 = sphi 0, %s248
      %s266 = sphi 0, %s266
      %s268 = sphi 0, %s266
      %s269 = sphi 0, %s268
      %s283 = sphi 0, %s269
      %s287 = sphi 0, %s287
      %s289 = sphi 0, %s287
      %s290 = sphi 0, %s289
      %s304 = sphi 0, %s290
      %s308 = sphi 0, %s308
      %s310 = sphi 0, %s308
      %s311 = sphi 0, %s310
      %s325 = sphi 0, %s311
      %s331 = sphi 0, %s333
      %s334 = sphi 0, %s331
      %s335 = sphi 0, %s334
      %s351 = sphi 0, %s335
    $region4: #{forward.1} parent=1 // loop_header_branch
      %25 = sbr.rel (%p23) target = $region8
    $region5: #{forward.1} parent=1 // loop_body
      %s27 = ssub.s32 %s22, 1
      %s28 = ssub.s32 %s22, 2
      %s29 = sadd.s32 %s22, 1
      %s30 = ssub.s32 %s22, %s29
      %p31 = scmp.eq.s32.totalorder %s30, 0
      %s33 = sadd.s32 %s32, 1
      %s34 = scalar_select %p31, %s32, %s33
      %p37 = pneg %p31
      %p38 = scmp.eq.s32.totalorder %s22, 1
      %p39 = por %p37, %p38
      %p40 = scmp.ne.s32.totalorder %s32, %s35
      %p41 = scmp.eq.s32.totalorder %s22, 0
      %p42 = por %p40, %p41
      %p43 = scmp.ne.s32.totalorder %s32, %s35
      %p44 = scmp.eq.s32.totalorder %s27, 1
      %p45 = por %p43, %p44
      %p46 = scmp.ne.s32.totalorder %s35, %s36
      %p47 = scmp.eq.s32.totalorder %s27, 0
      %p48 = por %p46, %p47
      %p49 = scmp.ne.s32.totalorder %s35, %s36
      %p50 = scmp.eq.s32.totalorder %s28, 1
      %p51 = por %p49, %p50
      %p53 = scmp.ne.s32.totalorder %s36, %s52
      %p54 = scmp.eq.s32.totalorder %s28, 0
      %p55 = por %p53, %p54
      %s57 = sadd.s32 %s56, 1
      %p60 = scmp.eq.s32.totalorder %s22, 1
      %p61 = scmp.ne.s32.totalorder %s56, %s58
      %p62 = scmp.eq.s32.totalorder %s22, 0
      %p63 = por %p61, %p62
      %p64 = scmp.ne.s32.totalorder %s56, %s58
      %p65 = scmp.eq.s32.totalorder %s27, 1
      %p66 = por %p64, %p65
      %p67 = scmp.ne.s32.totalorder %s58, %s59
      %p68 = scmp.eq.s32.totalorder %s27, 0
      %p69 = por %p67, %p68
      %p70 = scmp.ne.s32.totalorder %s58, %s59
      %p71 = scmp.eq.s32.totalorder %s28, 1
      %p72 = por %p70, %p71
      %p74 = scmp.ne.s32.totalorder %s59, %s73
      %p75 = scmp.eq.s32.totalorder %s28, 0
      %p76 = por %p74, %p75
      %s78 = sadd.s32 %s77, 1
      %p81 = scmp.eq.s32.totalorder %s22, 1
      %p82 = scmp.ne.s32.totalorder %s77, %s79
      %p83 = scmp.eq.s32.totalorder %s22, 0
      %p84 = por %p82, %p83
      %p85 = scmp.ne.s32.totalorder %s77, %s79
      %p86 = scmp.eq.s32.totalorder %s27, 1
      %p87 = por %p85, %p86
      %p88 = scmp.ne.s32.totalorder %s79, %s80
      %p89 = scmp.eq.s32.totalorder %s27, 0
      %p90 = por %p88, %p89
      %p91 = scmp.ne.s32.totalorder %s79, %s80
      %p92 = scmp.eq.s32.totalorder %s28, 1
      %p93 = por %p91, %p92
      %p95 = scmp.ne.s32.totalorder %s80, %s94
      %p96 = scmp.eq.s32.totalorder %s28, 0
      %p97 = por %p95, %p96
      %s99 = sadd.s32 %s98, 1
      %p102 = scmp.eq.s32.totalorder %s22, 1
      %p103 = scmp.ne.s32.totalorder %s98, %s100
      %p104 = scmp.eq.s32.totalorder %s22, 0
      %p105 = por %p103, %p104
      %p106 = scmp.ne.s32.totalorder %s98, %s100
      %p107 = scmp.eq.s32.totalorder %s27, 1
      %p108 = por %p106, %p107
      %p109 = scmp.ne.s32.totalorder %s100, %s101
      %p110 = scmp.eq.s32.totalorder %s27, 0
      %p111 = por %p109, %p110
      %p112 = scmp.ne.s32.totalorder %s100, %s101
      %p113 = scmp.eq.s32.totalorder %s28, 1
      %p114 = por %p112, %p113
      %p116 = scmp.ne.s32.totalorder %s101, %s115
      %p117 = scmp.eq.s32.totalorder %s28, 0
      %p118 = por %p116, %p117
      %s120 = sadd.s32 %s119, 1
      %p123 = scmp.eq.s32.totalorder %s22, 1
      %p124 = scmp.ne.s32.totalorder %s119, %s121
      %p125 = scmp.eq.s32.totalorder %s22, 0
      %p126 = por %p124, %p125
      %p127 = scmp.ne.s32.totalorder %s119, %s121
      %p128 = scmp.eq.s32.totalorder %s27, 1
      %p129 = por %p127, %p128
      %p130 = scmp.ne.s32.totalorder %s121, %s122
      %p131 = scmp.eq.s32.totalorder %s27, 0
      %p132 = por %p130, %p131
      %p133 = scmp.ne.s32.totalorder %s121, %s122
      %p134 = scmp.eq.s32.totalorder %s28, 1
      %p135 = por %p133, %p134
      %p137 = scmp.ne.s32.totalorder %s122, %s136
      %p138 = scmp.eq.s32.totalorder %s28, 0
      %p139 = por %p137, %p138
      %s141 = sadd.s32 %s140, 1
      %p144 = scmp.eq.s32.totalorder %s22, 1
      %p145 = scmp.ne.s32.totalorder %s140, %s142
      %p146 = scmp.eq.s32.totalorder %s22, 0
      %p147 = por %p145, %p146
      %p148 = scmp.ne.s32.totalorder %s140, %s142
      %p149 = scmp.eq.s32.totalorder %s27, 1
      %p150 = por %p148, %p149
      %p151 = scmp.ne.s32.totalorder %s142, %s143
      %p152 = scmp.eq.s32.totalorder %s27, 0
      %p153 = por %p151, %p152
      %p154 = scmp.ne.s32.totalorder %s142, %s143
      %p155 = scmp.eq.s32.totalorder %s28, 1
      %p156 = por %p154, %p155
      %p158 = scmp.ne.s32.totalorder %s143, %s157
      %p159 = scmp.eq.s32.totalorder %s28, 0
      %p160 = por %p158, %p159
      %s162 = sadd.s32 %s161, 1
      %p165 = scmp.eq.s32.totalorder %s22, 1
      %p166 = scmp.ne.s32.totalorder %s161, %s163
      %p167 = scmp.eq.s32.totalorder %s22, 0
      %p168 = por %p166, %p167
      %p169 = scmp.ne.s32.totalorder %s161, %s163
      %p170 = scmp.eq.s32.totalorder %s27, 1
      %p171 = por %p169, %p170
      %p172 = scmp.ne.s32.totalorder %s163, %s164
      %p173 = scmp.eq.s32.totalorder %s27, 0
      %p174 = por %p172, %p173
      %p175 = scmp.ne.s32.totalorder %s163, %s164
      %p176 = scmp.eq.s32.totalorder %s28, 1
      %p177 = por %p175, %p176
      %p179 = scmp.ne.s32.totalorder %s164, %s178
      %p180 = scmp.eq.s32.totalorder %s28, 0
      %p181 = por %p179, %p180
      %s183 = sadd.s32 %s182, 1
      %p186 = scmp.eq.s32.totalorder %s22, 1
      %p187 = scmp.ne.s32.totalorder %s182, %s184
      %p188 = scmp.eq.s32.totalorder %s22, 0
      %p189 = por %p187, %p188
      %p190 = scmp.ne.s32.totalorder %s182, %s184
      %p191 = scmp.eq.s32.totalorder %s27, 1
      %p192 = por %p190, %p191
      %p193 = scmp.ne.s32.totalorder %s184, %s185
      %p194 = scmp.eq.s32.totalorder %s27, 0
      %p195 = por %p193, %p194
      %p196 = scmp.ne.s32.totalorder %s184, %s185
      %p197 = scmp.eq.s32.totalorder %s28, 1
      %p198 = por %p196, %p197
      %p200 = scmp.ne.s32.totalorder %s185, %s199
      %p201 = scmp.eq.s32.totalorder %s28, 0
      %p202 = por %p200, %p201
      %s204 = sadd.s32 %s203, 1
      %p207 = scmp.eq.s32.totalorder %s22, 1
      %p208 = scmp.ne.s32.totalorder %s203, %s205
      %p209 = scmp.eq.s32.totalorder %s22, 0
      %p210 = por %p208, %p209
      %p211 = scmp.ne.s32.totalorder %s203, %s205
      %p212 = scmp.eq.s32.totalorder %s27, 1
      %p213 = por %p211, %p212
      %p214 = scmp.ne.s32.totalorder %s205, %s206
      %p215 = scmp.eq.s32.totalorder %s27, 0
      %p216 = por %p214, %p215
      %p217 = scmp.ne.s32.totalorder %s205, %s206
      %p218 = scmp.eq.s32.totalorder %s28, 1
      %p219 = por %p217, %p218
      %p221 = scmp.ne.s32.totalorder %s206, %s220
      %p222 = scmp.eq.s32.totalorder %s28, 0
      %p223 = por %p221, %p222
      %s225 = sadd.s32 %s224, 1
      %p228 = scmp.eq.s32.totalorder %s22, 1
      %p229 = scmp.ne.s32.totalorder %s224, %s226
      %p230 = scmp.eq.s32.totalorder %s22, 0
      %p231 = por %p229, %p230
      %p232 = scmp.ne.s32.totalorder %s224, %s226
      %p233 = scmp.eq.s32.totalorder %s27, 1
      %p234 = por %p232, %p233
      %p235 = scmp.ne.s32.totalorder %s226, %s227
      %p236 = scmp.eq.s32.totalorder %s27, 0
      %p237 = por %p235, %p236
      %p238 = scmp.ne.s32.totalorder %s226, %s227
      %p239 = scmp.eq.s32.totalorder %s28, 1
      %p240 = por %p238, %p239
      %p242 = scmp.ne.s32.totalorder %s227, %s241
      %p243 = scmp.eq.s32.totalorder %s28, 0
      %p244 = por %p242, %p243
      %s246 = sadd.s32 %s245, 1
      %p249 = scmp.eq.s32.totalorder %s22, 1
      %p250 = scmp.ne.s32.totalorder %s245, %s247
      %p251 = scmp.eq.s32.totalorder %s22, 0
      %p252 = por %p250, %p251
      %p253 = scmp.ne.s32.totalorder %s245, %s247
      %p254 = scmp.eq.s32.totalorder %s27, 1
      %p255 = por %p253, %p254
      %p256 = scmp.ne.s32.totalorder %s247, %s248
      %p257 = scmp.eq.s32.totalorder %s27, 0
      %p258 = por %p256, %p257
      %p259 = scmp.ne.s32.totalorder %s247, %s248
      %p260 = scmp.eq.s32.totalorder %s28, 1
      %p261 = por %p259, %p260
      %p263 = scmp.ne.s32.totalorder %s248, %s262
      %p264 = scmp.eq.s32.totalorder %s28, 0
      %p265 = por %p263, %p264
      %s267 = sadd.s32 %s266, 1
      %p270 = scmp.eq.s32.totalorder %s22, 1
      %p271 = scmp.ne.s32.totalorder %s266, %s268
      %p272 = scmp.eq.s32.totalorder %s22, 0
      %p273 = por %p271, %p272
      %p274 = scmp.ne.s32.totalorder %s266, %s268
      %p275 = scmp.eq.s32.totalorder %s27, 1
      %p276 = por %p274, %p275
      %p277 = scmp.ne.s32.totalorder %s268, %s269
      %p278 = scmp.eq.s32.totalorder %s27, 0
      %p279 = por %p277, %p278
      %p280 = scmp.ne.s32.totalorder %s268, %s269
      %p281 = scmp.eq.s32.totalorder %s28, 1
      %p282 = por %p280, %p281
      %p284 = scmp.ne.s32.totalorder %s269, %s283
      %p285 = scmp.eq.s32.totalorder %s28, 0
      %p286 = por %p284, %p285
      %s288 = sadd.s32 %s287, 1
      %p291 = scmp.eq.s32.totalorder %s22, 1
      %p292 = scmp.ne.s32.totalorder %s287, %s289
      %p293 = scmp.eq.s32.totalorder %s22, 0
      %p294 = por %p292, %p293
      %p295 = scmp.ne.s32.totalorder %s287, %s289
      %p296 = scmp.eq.s32.totalorder %s27, 1
      %p297 = por %p295, %p296
      %p298 = scmp.ne.s32.totalorder %s289, %s290
      %p299 = scmp.eq.s32.totalorder %s27, 0
      %p300 = por %p298, %p299
      %p301 = scmp.ne.s32.totalorder %s289, %s290
      %p302 = scmp.eq.s32.totalorder %s28, 1
      %p303 = por %p301, %p302
      %p305 = scmp.ne.s32.totalorder %s290, %s304
      %p306 = scmp.eq.s32.totalorder %s28, 0
      %p307 = por %p305, %p306
      %s309 = sadd.s32 %s308, 1
      %p312 = scmp.eq.s32.totalorder %s22, 1
      %p313 = scmp.ne.s32.totalorder %s308, %s310
      %p314 = scmp.eq.s32.totalorder %s22, 0
      %p315 = por %p313, %p314
      %p316 = scmp.ne.s32.totalorder %s308, %s310
      %p317 = scmp.eq.s32.totalorder %s27, 1
      %p318 = por %p316, %p317
      %p319 = scmp.ne.s32.totalorder %s310, %s311
      %p320 = scmp.eq.s32.totalorder %s27, 0
      %p321 = por %p319, %p320
      %p322 = scmp.ne.s32.totalorder %s310, %s311
      %p323 = scmp.eq.s32.totalorder %s28, 1
      %p324 = por %p322, %p323
      %p326 = scmp.ne.s32.totalorder %s311, %s325
      %p327 = scmp.eq.s32.totalorder %s28, 0
      %p328 = por %p326, %p327
      %s329 = ssub.s32 %s22, %s29
      %p330 = scmp.eq.s32.totalorder %s329, 0
      %s332 = sadd.s32 %s331, 1
      %s333 = scalar_select %p330, %s331, %s332
      %p336 = pneg %p330
      %p337 = scmp.eq.s32.totalorder %s22, 1
      %p338 = por %p336, %p337
      %p339 = scmp.ne.s32.totalorder %s331, %s334
      %p340 = scmp.eq.s32.totalorder %s22, 0
      %p341 = por %p339, %p340
      %p342 = scmp.ne.s32.totalorder %s331, %s334
      %p343 = scmp.eq.s32.totalorder %s27, 1
      %p344 = por %p342, %p343
      %p345 = scmp.ne.s32.totalorder %s334, %s335
      %p346 = scmp.eq.s32.totalorder %s27, 0
      %p347 = por %p345, %p346
      %p348 = scmp.ne.s32.totalorder %s334, %s335
      %p349 = scmp.eq.s32.totalorder %s28, 1
      %p350 = por %p348, %p349
      %p352 = scmp.ne.s32.totalorder %s335, %s351
      %p353 = scmp.eq.s32.totalorder %s28, 0
      %p354 = por %p352, %p353
      %p355 = scmp.le.s32.totalorder 1, %s22
      %p356 = scmp.lt.s32.totalorder %s22, 3
      %p357 = pnand %p355, %p356
      %p358 = pneg %p357
      // Predicated region
      $region9: #{forward.1} parent=5 // pred_check
        _
      $region10: #{forward.1} parent=5 // pred_check_branch
        %360 = sbr.rel (%p357) target = $region12
      $region11: #{forward.1} parent=5 // pred_region
        %s361 = ssub.s32 %s22, 1
        // Predicated region
        $region13: #{forward.1} parent=11 // pred_check
          %p362 = pneg %p69
        $region14: #{forward.1} parent=11 // pred_check_branch
          %364 = sbr.rel (%p362) target = $region16
        $region15: #{forward.1} parent=11 // pred_region
          _
        $region16: #{forward.1} parent=11 // pred_fallthru
          _
        // Predicated region
        $region17: #{forward.1} parent=11 // pred_check
          %p365 = pneg %p90
        $region18: #{forward.1} parent=11 // pred_check_branch
          %367 = sbr.rel (%p365) target = $region20
        $region19: #{forward.1} parent=11 // pred_region
          _
        $region20: #{forward.1} parent=11 // pred_fallthru
          _
        // Predicated region
        $region21: #{forward.1} parent=11 // pred_check
          %p368 = pneg %p111
        $region22: #{forward.1} parent=11 // pred_check_branch
          %370 = sbr.rel (%p368) target = $region24
        $region23: #{forward.1} parent=11 // pred_region
          _
        $region24: #{forward.1} parent=11 // pred_fallthru
          _
        // Predicated region
        $region25: #{forward.1} parent=11 // pred_check
          %p371 = pneg %p132
        $region26: #{forward.1} parent=11 // pred_check_branch
          %373 = sbr.rel (%p371) target = $region28
        $region27: #{forward.1} parent=11 // pred_region
          _
        $region28: #{forward.1} parent=11 // pred_fallthru
          _
        // Predicated region
        $region29: #{forward.1} parent=11 // pred_check
          %p374 = pneg %p153
        $region30: #{forward.1} parent=11 // pred_check_branch
          %376 = sbr.rel (%p374) target = $region32
        $region31: #{forward.1} parent=11 // pred_region
          _
        $region32: #{forward.1} parent=11 // pred_fallthru
          _
        // Predicated region
        $region33: #{forward.1} parent=11 // pred_check
          %p377 = pneg %p174
        $region34: #{forward.1} parent=11 // pred_check_branch
          %379 = sbr.rel (%p377) target = $region36
        $region35: #{forward.1} parent=11 // pred_region
          _
        $region36: #{forward.1} parent=11 // pred_fallthru
          _
        // Predicated region
        $region37: #{forward.1} parent=11 // pred_check
          %p380 = pneg %p195
        $region38: #{forward.1} parent=11 // pred_check_branch
          %382 = sbr.rel (%p380) target = $region40
        $region39: #{forward.1} parent=11 // pred_region
          %384 = vsyncadd [#allocation13], 0
          %s385 = sshll.u32 %s7, 4
          %s386 = int_to_ptr.hbm [resolvable:$true] %s385
          %s387 = sshll.u32 [#allocation12], 4
          %s388 = int_to_ptr.vmem [resolvable:$true] %s387
          %393 = dma.hbm_to_vmem [thread:$0]  %s386, 9216, %s388, [#allocation13], 64, 64, 4
        $region40: #{forward.1} parent=11 // pred_fallthru
          _
        // Predicated region
        $region41: #{forward.1} parent=11 // pred_check
          %p394 = pneg %p216
        $region42: #{forward.1} parent=11 // pred_check_branch
          %396 = sbr.rel (%p394) target = $region44
        $region43: #{forward.1} parent=11 // pred_region
          _
        $region44: #{forward.1} parent=11 // pred_fallthru
          _
        // Predicated region
        $region45: #{forward.1} parent=11 // pred_check
          %p397 = pneg %p237
        $region46: #{forward.1} parent=11 // pred_check_branch
          %399 = sbr.rel (%p397) target = $region48
        $region47: #{forward.1} parent=11 // pred_region
          _
        $region48: #{forward.1} parent=11 // pred_fallthru
          _
        // Predicated region
        $region49: #{forward.1} parent=11 // pred_check
          %p400 = pneg %p258
        $region50: #{forward.1} parent=11 // pred_check_branch
          %402 = sbr.rel (%p400) target = $region52
        $region51: #{forward.1} parent=11 // pred_region
          %404 = vsyncadd [#allocation15], 0
          %s405 = sshll.u32 %s10, 4
          %s406 = int_to_ptr.hbm [resolvable:$true] %s405
          %s407 = sshll.u32 [#allocation14], 4
          %s408 = int_to_ptr.vmem [resolvable:$true] %s407
          %413 = dma.hbm_to_vmem [thread:$0]  %s406, 8192, %s408, [#allocation15], 128, 128, 8
        $region52: #{forward.1} parent=11 // pred_fallthru
          _
        // Predicated region
        $region53: #{forward.1} parent=11 // pred_check
          %p414 = pneg %p279
        $region54: #{forward.1} parent=11 // pred_check_branch
          %416 = sbr.rel (%p414) target = $region56
        $region55: #{forward.1} parent=11 // pred_region
          _
        $region56: #{forward.1} parent=11 // pred_fallthru
          _
        // Predicated region
        $region57: #{forward.1} parent=11 // pred_check
          %p417 = pneg %p300
        $region58: #{forward.1} parent=11 // pred_check_branch
          %419 = sbr.rel (%p417) target = $region60
        $region59: #{forward.1} parent=11 // pred_region
          _
        $region60: #{forward.1} parent=11 // pred_fallthru
          _
        // Predicated region
        $region61: #{forward.1} parent=11 // pred_check
          %p420 = pneg %p321
        $region62: #{forward.1} parent=11 // pred_check_branch
          %422 = sbr.rel (%p420) target = $region64
        $region63: #{forward.1} parent=11 // pred_region
          _
        $region64: #{forward.1} parent=11 // pred_fallthru
          _
      $region12: #{forward.1} parent=5 // pred_fallthru
        _
      %p423 = scmp.lt.s32.totalorder %s22, 2
      // Predicated region
      $region65: #{forward.1} parent=5 // pred_check
        %p424 = pneg %p423
      $region66: #{forward.1} parent=5 // pred_check_branch
        %426 = sbr.rel (%p424) target = $region68
      $region67: #{forward.1} parent=5 // pred_region
        // Predicated region
        $region69: #{forward.1} parent=67 // pred_check
          %p427 = pneg %p42
        $region70: #{forward.1} parent=67 // pred_check_branch
          %429 = sbr.rel (%p427) target = $region72
        $region71: #{forward.1} parent=67 // pred_region
          %p430 = scmp.lt.s32.totalorder %s22, 1
          %s431 = scalar_select %p430, %s22, 1
          %s432 = smul.addr %s431, 54
          %s433 = smul.addr %s432, 8
          %s434 = scalar_lea.vmem %s0, %s433
        $region72: #{forward.1} parent=67 // pred_fallthru
          _
      $region68: #{forward.1} parent=5 // pred_fallthru
        _
      %p435 = scmp.le.s32.totalorder 1, %s22
      %p436 = scmp.lt.s32.totalorder %s22, 3
      %p437 = pnand %p435, %p436
      %p438 = pneg %p437
      // Predicated region
      $region73: #{forward.1} parent=5 // pred_check
        _
      $region74: #{forward.1} parent=5 // pred_check_branch
        %440 = sbr.rel (%p437) target = $region76
      $region75: #{forward.1} parent=5 // pred_region
        %s441 = ssub.s32 %s22, 1
        // Predicated region
        $region77: #{forward.1} parent=75 // pred_check
          %p442 = pneg %p195
        $region78: #{forward.1} parent=75 // pred_check_branch
          %444 = sbr.rel (%p442) target = $region80
        $region79: #{forward.1} parent=75 // pred_region
          %446 = dma.done [#allocation13], 9216
        $region80: #{forward.1} parent=75 // pred_fallthru
          _
        // Predicated region
        $region81: #{forward.1} parent=75 // pred_check
          %p447 = pneg %p258
        $region82: #{forward.1} parent=75 // pred_check_branch
          %449 = sbr.rel (%p447) target = $region84
        $region83: #{forward.1} parent=75 // pred_region
          %451 = dma.done [#allocation15], 8192
        $region84: #{forward.1} parent=75 // pred_fallthru
          _
        %p452 = scmp.lt.s32.totalorder %s27, 1
        %s453 = scalar_select %p452, %s27, 1
        %s454 = smul.addr %s453, 54
        %s455 = smul.addr %s454, 8
        %s456 = scalar_lea.vmem %s0, %s455
        %p457 = pneg %p48
        %p458 = pneg %p45
        %p459 = pneg %p69
        %p460 = pneg %p66
        %p461 = pneg %p90
        %p462 = pneg %p87
        %p463 = pneg %p111
        %p464 = pneg %p108
        %p465 = pneg %p132
        %p466 = pneg %p129
        %p467 = pneg %p153
        %p468 = pneg %p150
        %p469 = pneg %p174
        %p470 = pneg %p171
        %p471 = pneg %p195
        %p472 = pneg %p192
        %p473 = pneg %p216
        %p474 = pneg %p213
        %p475 = pneg %p237
        %p476 = pneg %p234
        %p477 = pneg %p258
        %p478 = pneg %p255
        %p479 = pneg %p279
        %p480 = pneg %p276
        %p481 = pneg %p300
        %p482 = pneg %p297
        %p483 = pneg %p321
        %p484 = pneg %p318
        %p485 = pneg %p347
        %p486 = pneg %p344
        %p487 = scmp.lt.s32.totalorder %s27, 1
        %s488 = scalar_select %p487, %s27, 1
        %s489 = smul.addr %s488, 8
        %s490 = scalar_lea.vmem %s14, %s489
        %p491 = scmp.lt.s32.totalorder %s27, 1
        %s492 = scalar_select %p491, %s27, 1
        %s493 = smul.addr %s492, 54
        %s494 = smul.addr %s493, 8
        %s495 = scalar_lea.vmem %s0, %s494
        %p496 = scmp.lt.s32.totalorder %s27, 1
        %s497 = scalar_select %p496, %s27, 1
        %s498 = smul.addr %s497, 8
        %s499 = scalar_lea.vmem %s14, %s498
        %500 = vst [vmem:[#allocation3] sm:$0xff] 0.0
        %501 = vst [vmem:[#allocation3 + $0x8] sm:$0x3] 0.0
        %502 = vst [vmem:[#allocation3 + $0x10] sm:$0xff] 0.0
        %503 = vst [vmem:[#allocation3 + $0x18] sm:$0x3] 0.0
        %504 = vst [vmem:[#allocation3 + $0x20] sm:$0xff] 0.0
        %505 = vst [vmem:[#allocation3 + $0x28] sm:$0x3] 0.0
        %506 = vst [vmem:[#allocation3 + $0x30] sm:$0xff] 0.0
        %507 = vst [vmem:[#allocation3 + $0x38] sm:$0x3] 0.0
        %508 = vst [vmem:[#allocation3 + $0x40] sm:$0xff] 0.0
        %509 = vst [vmem:[#allocation3 + $0x48] sm:$0x3] 0.0
        %510 = vst [vmem:[#allocation3 + $0x50] sm:$0xff] 0.0
        %511 = vst [vmem:[#allocation3 + $0x58] sm:$0x3] 0.0
        %512 = vst [vmem:[#allocation3 + $0x60] sm:$0xff] 0.0
        %513 = vst [vmem:[#allocation3 + $0x68] sm:$0x3] 0.0
        %514 = vst [vmem:[#allocation3 + $0x70] sm:$0xff] 0.0
        %515 = vst [vmem:[#allocation3 + $0x78] sm:$0x3] 0.0
        %516 = vst [vmem:[#allocation3 + $0x80] sm:$0xff] 0.0
        %517 = vst [vmem:[#allocation3 + $0x88] sm:$0x3] 0.0
        %518 = vst [vmem:[#allocation3 + $0x90] sm:$0xff] 0.0
        %519 = vst [vmem:[#allocation3 + $0x98] sm:$0x3] 0.0
        %520 = vst [vmem:[#allocation7] sm:$0x3f] 0.0
        %521 = vst [vmem:[#allocation7 + $0x8] sm:$0x3f] 0.0
        %522 = vst [vmem:[#allocation7 + $0x10] sm:$0x3f] 0.0
        %523 = vst [vmem:[#allocation7 + $0x18] sm:$0x3f] 0.0
        %524 = vst [vmem:[#allocation7 + $0x20] sm:$0x3f] 0.0
        %525 = vst [vmem:[#allocation7 + $0x28] sm:$0x3f] 0.0
        %v526 = vld [vmem:[%s1] sm:$0x1]
        %v527 = vld [vmem:[%s1 + $0x1] sm:$0x1]
        %v528 = vld [vmem:[%s1 + $0x2] sm:$0x1]
        %v529 = vld [vmem:[%s1 + $0x3] sm:$0x1]
        %v530 = vld [vmem:[%s1 + $0x4] sm:$0x1]
        %v531 = vld [vmem:[%s1 + $0x5] sm:$0x1]
        %v532 = vld [vmem:[%s1 + $0x6] sm:$0x1]
        %v533 = vld [vmem:[%s1 + $0x7] sm:$0x1]
        %v534 = vld [vmem:[%s1 + $0x8] sm:$0x1]
        %v535 = vld [vmem:[%s2] sm:$0x1]
        %v536 = vld [vmem:[%s3] sm:$0x1]
        %v537 = vld [vmem:[%s495] sm:$0xff]
        %v538 = vld [vmem:[%s495 + $0x8] sm:$0xff]
        %v539 = vld [vmem:[%s495 + $0x18] sm:$0xff]
        %v540 = vld [vmem:[%s495 + $0x20] sm:$0xff]
        %v541 = vperm.slane %v526, 0
        %v542 = vmul.f32 %v537, %v541
        %v543 = vmul.f32 %v538, %v541
        %v544 = vmul.f32 %v539, %v541
        %v545 = vmul.f32 %v540, %v541
        %v546 = vadd.f32 %v542, 0.0
        %v547 = vadd.f32 %v543, 0.0
        %v548 = vadd.f32 %v544, 0.0
        %v549 = vadd.f32 %v545, 0.0
        %v550 = vld [vmem:[%s495 + $0x1] sm:$0xff]
        %v551 = vld [vmem:[%s495 + $0x9] sm:$0xff]
        %v552 = vld [vmem:[%s495 + $0x19] sm:$0xff]
        %v553 = vld [vmem:[%s495 + $0x21] sm:$0xff]
        %v554 = vperm.slane %v527, 0
        %v555 = vmul.f32 %v550, %v554
        %v556 = vmul.f32 %v551, %v554
        %v557 = vmul.f32 %v552, %v554
        %v558 = vmul.f32 %v553, %v554
        %v559 = vadd.f32 %v546, %v555
        %v560 = vadd.f32 %v547, %v556
        %v561 = vadd.f32 %v548, %v557
        %v562 = vadd.f32 %v549, %v558
        %v563 = vld [vmem:[%s495 + $0x2] sm:$0xff]
        %v564 = vld [vmem:[%s495 + $0xa] sm:$0xff]
        %v565 = vld [vmem:[%s495 + $0x1a] sm:$0xff]
        %v566 = vld [vmem:[%s495 + $0x22] sm:$0xff]
        %v567 = vperm.slane %v528, 0
        %v568 = vmul.f32 %v563, %v567
        %v569 = vmul.f32 %v564, %v567
        %v570 = vmul.f32 %v565, %v567
        %v571 = vmul.f32 %v566, %v567
        %v572 = vadd.f32 %v559, %v568
        %v573 = vadd.f32 %v560, %v569
        %v574 = vadd.f32 %v561, %v570
        %v575 = vadd.f32 %v562, %v571
        %s576 = scalar_lea.vmem %s495, 24
        %v577 = vld [vmem:[%s576] sm:$0xff]
        %v578 = vld [vmem:[%s576 + $0x8] sm:$0xff]
        %v579 = vld [vmem:[%s576 + $0x18] sm:$0xff]
        %v580 = vld [vmem:[%s576 + $0x20] sm:$0xff]
        %v581 = vperm.slane %v529, 0
        %v582 = vmul.f32 %v577, %v581
        %v583 = vmul.f32 %v578, %v581
        %v584 = vmul.f32 %v579, %v581
        %v585 = vmul.f32 %v580, %v581
        %v586 = vadd.f32 %v572, %v582
        %v587 = vadd.f32 %v573, %v583
        %v588 = vadd.f32 %v574, %v584
        %v589 = vadd.f32 %v575, %v585
        %v590 = vld [vmem:[%s576 + $0x1] sm:$0xff]
        %v591 = vld [vmem:[%s576 + $0x9] sm:$0xff]
        %v592 = vld [vmem:[%s576 + $0x19] sm:$0xff]
        %v593 = vld [vmem:[%s576 + $0x21] sm:$0xff]
        %v594 = vperm.slane %v530, 0
        %v595 = vmul.f32 %v590, %v594
        %v596 = vmul.f32 %v591, %v594
        %v597 = vmul.f32 %v592, %v594
        %v598 = vmul.f32 %v593, %v594
        %v599 = vadd.f32 %v586, %v595
        %v600 = vadd.f32 %v587, %v596
        %v601 = vadd.f32 %v588, %v597
        %v602 = vadd.f32 %v589, %v598
        %v603 = vld [vmem:[%s576 + $0x2] sm:$0xff]
        %v604 = vld [vmem:[%s576 + $0xa] sm:$0xff]
        %v605 = vld [vmem:[%s576 + $0x1a] sm:$0xff]
        %v606 = vld [vmem:[%s576 + $0x22] sm:$0xff]
        %v607 = vperm.slane %v531, 0
        %v608 = vmul.f32 %v603, %v607
        %v609 = vmul.f32 %v604, %v607
        %v610 = vmul.f32 %v605, %v607
        %v611 = vmul.f32 %v606, %v607
        %v612 = vadd.f32 %v599, %v608
        %v613 = vadd.f32 %v600, %v609
        %v614 = vadd.f32 %v601, %v610
        %v615 = vadd.f32 %v602, %v611
        %s616 = scalar_lea.vmem %s495, 48
        %v617 = vld [vmem:[%s616] sm:$0xff]
        %v618 = vld [vmem:[%s616 + $0x8] sm:$0xff]
        %v619 = vld [vmem:[%s616 + $0x18] sm:$0xff]
        %v620 = vld [vmem:[%s616 + $0x20] sm:$0xff]
        %v621 = vperm.slane %v532, 0
        %v622 = vmul.f32 %v617, %v621
        %v623 = vmul.f32 %v618, %v621
        %v624 = vmul.f32 %v619, %v621
        %v625 = vmul.f32 %v620, %v621
        %v626 = vadd.f32 %v612, %v622
        %v627 = vadd.f32 %v613, %v623
        %v628 = vadd.f32 %v614, %v624
        %v629 = vadd.f32 %v615, %v625
        %v630 = vld [vmem:[%s616 + $0x1] sm:$0xff]
        %v631 = vld [vmem:[%s616 + $0x9] sm:$0xff]
        %v632 = vld [vmem:[%s616 + $0x19] sm:$0xff]
        %v633 = vld [vmem:[%s616 + $0x21] sm:$0xff]
        %v634 = vperm.slane %v533, 0
        %v635 = vmul.f32 %v630, %v634
        %v636 = vmul.f32 %v631, %v634
        %v637 = vmul.f32 %v632, %v634
        %v638 = vmul.f32 %v633, %v634
        %v639 = vadd.f32 %v626, %v635
        %v640 = vadd.f32 %v627, %v636
        %v641 = vadd.f32 %v628, %v637
        %v642 = vadd.f32 %v629, %v638
        %v643 = vld [vmem:[%s616 + $0x2] sm:$0xff]
        %v644 = vld [vmem:[%s616 + $0xa] sm:$0xff]
        %v645 = vld [vmem:[%s616 + $0x1a] sm:$0xff]
        %v646 = vld [vmem:[%s616 + $0x22] sm:$0xff]
        %v647 = vperm.slane %v534, 0
        %v648 = vmul.f32 %v643, %v647
        %v649 = vmul.f32 %v644, %v647
        %v650 = vmul.f32 %v645, %v647
        %v651 = vmul.f32 %v646, %v647
        %v652 = vadd.f32 %v639, %v648
        %v653 = vadd.f32 %v640, %v649
        %v654 = vadd.f32 %v641, %v650
        %v655 = vadd.f32 %v642, %v651
        %v657 = vperm.slane %v535, 0
        %v659 = vmul.f32 %v652, %v657
        %v660 = vmul.f32 %v653, %v657
        %v661 = vmul.f32 %v654, %v657
        %v662 = vmul.f32 %v655, %v657
        %v664 = vperm.slane %v536, 0
        %v666 = vadd.f32 %v659, %v664
        %v667 = vadd.f32 %v660, %v664
        %v668 = vadd.f32 %v661, %v664
        %v669 = vadd.f32 %v662, %v664
        %v670 = vmax.f32 %v666, 0.0
        %v671 = vmax.f32 %v667, 0.0
        %v672 = vmax.f32 %v668, 0.0
        %v673 = vmax.f32 %v669, 0.0
        %v674 = vmax.f32 %v670, %v672
        %v675 = vmax.f32 %v671, %v673
        %676 = vst [vmem:[#allocation2] sm:$0xff] %v674
        %677 = vst [vmem:[#allocation2 + $0x8] sm:$0xff] %v675
        %v678 = vld [vmem:[%s616] sm:$0xff]
        %v679 = vld [vmem:[%s616 + $0x8] sm:$0xff]
        %v680 = vld [vmem:[%s616 + $0x18] sm:$0xff]
        %v681 = vld [vmem:[%s616 + $0x20] sm:$0xff]
        %v682 = vmul.f32 %v678, %v541
        %v683 = vmul.f32 %v679, %v541
        %v684 = vmul.f32 %v680, %v541
        %v685 = vmul.f32 %v681, %v541
        %v686 = vadd.f32 %v682, 0.0
        %v687 = vadd.f32 %v683, 0.0
        %v688 = vadd.f32 %v684, 0.0
        %v689 = vadd.f32 %v685, 0.0
        %v690 = vld [vmem:[%s616 + $0x1] sm:$0xff]
        %v691 = vld [vmem:[%s616 + $0x9] sm:$0xff]
        %v692 = vld [vmem:[%s616 + $0x19] sm:$0xff]
        %v693 = vld [vmem:[%s616 + $0x21] sm:$0xff]
        %v694 = vmul.f32 %v690, %v554
        %v695 = vmul.f32 %v691, %v554
        %v696 = vmul.f32 %v692, %v554
        %v697 = vmul.f32 %v693, %v554
        %v698 = vadd.f32 %v686, %v694
        %v699 = vadd.f32 %v687, %v695
        %v700 = vadd.f32 %v688, %v696
        %v701 = vadd.f32 %v689, %v697
        %v702 = vld [vmem:[%s616 + $0x2] sm:$0xff]
        %v703 = vld [vmem:[%s616 + $0xa] sm:$0xff]
        %v704 = vld [vmem:[%s616 + $0x1a] sm:$0xff]
        %v705 = vld [vmem:[%s616 + $0x22] sm:$0xff]
        %v706 = vmul.f32 %v702, %v567
        %v707 = vmul.f32 %v703, %v567
        %v708 = vmul.f32 %v704, %v567
        %v709 = vmul.f32 %v705, %v567
        %v710 = vadd.f32 %v698, %v706
        %v711 = vadd.f32 %v699, %v707
        %v712 = vadd.f32 %v700, %v708
        %v713 = vadd.f32 %v701, %v709
        %s714 = scalar_lea.vmem %s495, 72
        %v715 = vld [vmem:[%s714] sm:$0xff]
        %v716 = vld [vmem:[%s714 + $0x8] sm:$0xff]
        %v717 = vld [vmem:[%s714 + $0x18] sm:$0xff]
        %v718 = vld [vmem:[%s714 + $0x20] sm:$0xff]
        %v719 = vmul.f32 %v715, %v581
        %v720 = vmul.f32 %v716, %v581
        %v721 = vmul.f32 %v717, %v581
        %v722 = vmul.f32 %v718, %v581
        %v723 = vadd.f32 %v710, %v719
        %v724 = vadd.f32 %v711, %v720
        %v725 = vadd.f32 %v712, %v721
        %v726 = vadd.f32 %v713, %v722
        %v727 = vld [vmem:[%s714 + $0x1] sm:$0xff]
        %v728 = vld [vmem:[%s714 + $0x9] sm:$0xff]
        %v729 = vld [vmem:[%s714 + $0x19] sm:$0xff]
        %v730 = vld [vmem:[%s714 + $0x21] sm:$0xff]
        %v731 = vmul.f32 %v727, %v594
        %v732 = vmul.f32 %v728, %v594
        %v733 = vmul.f32 %v729, %v594
        %v734 = vmul.f32 %v730, %v594
        %v735 = vadd.f32 %v723, %v731
        %v736 = vadd.f32 %v724, %v732
        %v737 = vadd.f32 %v725, %v733
        %v738 = vadd.f32 %v726, %v734
        %v739 = vld [vmem:[%s714 + $0x2] sm:$0xff]
        %v740 = vld [vmem:[%s714 + $0xa] sm:$0xff]
        %v741 = vld [vmem:[%s714 + $0x1a] sm:$0xff]
        %v742 = vld [vmem:[%s714 + $0x22] sm:$0xff]
        %v743 = vmul.f32 %v739, %v607
        %v744 = vmul.f32 %v740, %v607
        %v745 = vmul.f32 %v741, %v607
        %v746 = vmul.f32 %v742, %v607
        %v747 = vadd.f32 %v735, %v743
        %v748 = vadd.f32 %v736, %v744
        %v749 = vadd.f32 %v737, %v745
        %v750 = vadd.f32 %v738, %v746
        %s751 = scalar_lea.vmem %s495, 96
        %v752 = vld [vmem:[%s751] sm:$0xff]
        %v753 = vld [vmem:[%s751 + $0x8] sm:$0xff]
        %v754 = vld [vmem:[%s751 + $0x18] sm:$0xff]
        %v755 = vld [vmem:[%s751 + $0x20] sm:$0xff]
        %v756 = vmul.f32 %v752, %v621
        %v757 = vmul.f32 %v753, %v621
        %v758 = vmul.f32 %v754, %v621
        %v759 = vmul.f32 %v755, %v621
        %v760 = vadd.f32 %v747, %v756
        %v761 = vadd.f32 %v748, %v757
        %v762 = vadd.f32 %v749, %v758
        %v763 = vadd.f32 %v750, %v759
        %v764 = vld [vmem:[%s751 + $0x1] sm:$0xff]
        %v765 = vld [vmem:[%s751 + $0x9] sm:$0xff]
        %v766 = vld [vmem:[%s751 + $0x19] sm:$0xff]
        %v767 = vld [vmem:[%s751 + $0x21] sm:$0xff]
        %v768 = vmul.f32 %v764, %v634
        %v769 = vmul.f32 %v765, %v634
        %v770 = vmul.f32 %v766, %v634
        %v771 = vmul.f32 %v767, %v634
        %v772 = vadd.f32 %v760, %v768
        %v773 = vadd.f32 %v761, %v769
        %v774 = vadd.f32 %v762, %v770
        %v775 = vadd.f32 %v763, %v771
        %v776 = vld [vmem:[%s751 + $0x2] sm:$0xff]
        %v777 = vld [vmem:[%s751 + $0xa] sm:$0xff]
        %v778 = vld [vmem:[%s751 + $0x1a] sm:$0xff]
        %v779 = vld [vmem:[%s751 + $0x22] sm:$0xff]
        %v780 = vmul.f32 %v776, %v647
        %v781 = vmul.f32 %v777, %v647
        %v782 = vmul.f32 %v778, %v647
        %v783 = vmul.f32 %v779, %v647
        %v784 = vadd.f32 %v772, %v780
        %v785 = vadd.f32 %v773, %v781
        %v786 = vadd.f32 %v774, %v782
        %v787 = vadd.f32 %v775, %v783
        %v788 = vmul.f32 %v784, %v657
        %v789 = vmul.f32 %v785, %v657
        %v790 = vmul.f32 %v786, %v657
        %v791 = vmul.f32 %v787, %v657
        %v792 = vadd.f32 %v788, %v664
        %v793 = vadd.f32 %v789, %v664
        %v794 = vadd.f32 %v790, %v664
        %v795 = vadd.f32 %v791, %v664
        %v796 = vmax.f32 %v792, 0.0
        %v797 = vmax.f32 %v793, 0.0
        %v798 = vmax.f32 %v794, 0.0
        %v799 = vmax.f32 %v795, 0.0
        %v800 = vmax.f32 %v796, %v798
        %v801 = vmax.f32 %v797, %v799
        %802 = vst [vmem:[#allocation2 + $0x10] sm:$0xff] %v800
        %803 = vst [vmem:[#allocation2 + $0x18] sm:$0xff] %v801
        %v804 = vld [vmem:[%s751] sm:$0xff]
        %v805 = vld [vmem:[%s751 + $0x8] sm:$0xff]
        %v806 = vld [vmem:[%s751 + $0x18] sm:$0xff]
        %v807 = vld [vmem:[%s751 + $0x20] sm:$0xff]
        %v808 = vmul.f32 %v804, %v541
        %v809 = vmul.f32 %v805, %v541
        %v810 = vmul.f32 %v806, %v541
        %v811 = vmul.f32 %v807, %v541
        %v812 = vadd.f32 %v808, 0.0
        %v813 = vadd.f32 %v809, 0.0
        %v814 = vadd.f32 %v810, 0.0
        %v815 = vadd.f32 %v811, 0.0
        %v816 = vld [vmem:[%s751 + $0x1] sm:$0xff]
        %v817 = vld [vmem:[%s751 + $0x9] sm:$0xff]
        %v818 = vld [vmem:[%s751 + $0x19] sm:$0xff]
        %v819 = vld [vmem:[%s751 + $0x21] sm:$0xff]
        %v820 = vmul.f32 %v816, %v554
        %v821 = vmul.f32 %v817, %v554
        %v822 = vmul.f32 %v818, %v554
        %v823 = vmul.f32 %v819, %v554
        %v824 = vadd.f32 %v812, %v820
        %v825 = vadd.f32 %v813, %v821
        %v826 = vadd.f32 %v814, %v822
        %v827 = vadd.f32 %v815, %v823
        %v828 = vld [vmem:[%s751 + $0x2] sm:$0xff]
        %v829 = vld [vmem:[%s751 + $0xa] sm:$0xff]
        %v830 = vld [vmem:[%s751 + $0x1a] sm:$0xff]
        %v831 = vld [vmem:[%s751 + $0x22] sm:$0xff]
        %v832 = vmul.f32 %v828, %v567
        %v833 = vmul.f32 %v829, %v567
        %v834 = vmul.f32 %v830, %v567
        %v835 = vmul.f32 %v831, %v567
        %v836 = vadd.f32 %v824, %v832
        %v837 = vadd.f32 %v825, %v833
        %v838 = vadd.f32 %v826, %v834
        %v839 = vadd.f32 %v827, %v835
        %s840 = scalar_lea.vmem %s495, 120
        %v841 = vld [vmem:[%s840] sm:$0xff]
        %v842 = vld [vmem:[%s840 + $0x8] sm:$0xff]
        %v843 = vld [vmem:[%s840 + $0x18] sm:$0xff]
        %v844 = vld [vmem:[%s840 + $0x20] sm:$0xff]
        %v845 = vmul.f32 %v841, %v581
        %v846 = vmul.f32 %v842, %v581
        %v847 = vmul.f32 %v843, %v581
        %v848 = vmul.f32 %v844, %v581
        %v849 = vadd.f32 %v836, %v845
        %v850 = vadd.f32 %v837, %v846
        %v851 = vadd.f32 %v838, %v847
        %v852 = vadd.f32 %v839, %v848
        %v853 = vld [vmem:[%s840 + $0x1] sm:$0xff]
        %v854 = vld [vmem:[%s840 + $0x9] sm:$0xff]
        %v855 = vld [vmem:[%s840 + $0x19] sm:$0xff]
        %v856 = vld [vmem:[%s840 + $0x21] sm:$0xff]
        %v857 = vmul.f32 %v853, %v594
        %v858 = vmul.f32 %v854, %v594
        %v859 = vmul.f32 %v855, %v594
        %v860 = vmul.f32 %v856, %v594
        %v861 = vadd.f32 %v849, %v857
        %v862 = vadd.f32 %v850, %v858
        %v863 = vadd.f32 %v851, %v859
        %v864 = vadd.f32 %v852, %v860
        %v865 = vld [vmem:[%s840 + $0x2] sm:$0xff]
        %v866 = vld [vmem:[%s840 + $0xa] sm:$0xff]
        %v867 = vld [vmem:[%s840 + $0x1a] sm:$0xff]
        %v868 = vld [vmem:[%s840 + $0x22] sm:$0xff]
        %v869 = vmul.f32 %v865, %v607
        %v870 = vmul.f32 %v866, %v607
        %v871 = vmul.f32 %v867, %v607
        %v872 = vmul.f32 %v868, %v607
        %v873 = vadd.f32 %v861, %v869
        %v874 = vadd.f32 %v862, %v870
        %v875 = vadd.f32 %v863, %v871
        %v876 = vadd.f32 %v864, %v872
        %s877 = scalar_lea.vmem %s495, 144
        %v878 = vld [vmem:[%s877] sm:$0xff]
        %v879 = vld [vmem:[%s877 + $0x8] sm:$0xff]
        %v880 = vld [vmem:[%s877 + $0x18] sm:$0xff]
        %v881 = vld [vmem:[%s877 + $0x20] sm:$0xff]
        %v882 = vmul.f32 %v878, %v621
        %v883 = vmul.f32 %v879, %v621
        %v884 = vmul.f32 %v880, %v621
        %v885 = vmul.f32 %v881, %v621
        %v886 = vadd.f32 %v873, %v882
        %v887 = vadd.f32 %v874, %v883
        %v888 = vadd.f32 %v875, %v884
        %v889 = vadd.f32 %v876, %v885
        %v890 = vld [vmem:[%s877 + $0x1] sm:$0xff]
        %v891 = vld [vmem:[%s877 + $0x9] sm:$0xff]
        %v892 = vld [vmem:[%s877 + $0x19] sm:$0xff]
        %v893 = vld [vmem:[%s877 + $0x21] sm:$0xff]
        %v894 = vmul.f32 %v890, %v634
        %v895 = vmul.f32 %v891, %v634
        %v896 = vmul.f32 %v892, %v634
        %v897 = vmul.f32 %v893, %v634
        %v898 = vadd.f32 %v886, %v894
        %v899 = vadd.f32 %v887, %v895
        %v900 = vadd.f32 %v888, %v896
        %v901 = vadd.f32 %v889, %v897
        %v902 = vld [vmem:[%s877 + $0x2] sm:$0xff]
        %v903 = vld [vmem:[%s877 + $0xa] sm:$0xff]
        %v904 = vld [vmem:[%s877 + $0x1a] sm:$0xff]
        %v905 = vld [vmem:[%s877 + $0x22] sm:$0xff]
        %v906 = vmul.f32 %v902, %v647
        %v907 = vmul.f32 %v903, %v647
        %v908 = vmul.f32 %v904, %v647
        %v909 = vmul.f32 %v905, %v647
        %v910 = vadd.f32 %v898, %v906
        %v911 = vadd.f32 %v899, %v907
        %v912 = vadd.f32 %v900, %v908
        %v913 = vadd.f32 %v901, %v909
        %v914 = vmul.f32 %v910, %v657
        %v915 = vmul.f32 %v911, %v657
        %v916 = vmul.f32 %v912, %v657
        %v917 = vmul.f32 %v913, %v657
        %v918 = vadd.f32 %v914, %v664
        %v919 = vadd.f32 %v915, %v664
        %v920 = vadd.f32 %v916, %v664
        %v921 = vadd.f32 %v917, %v664
        %v922 = vmax.f32 %v918, 0.0
        %v923 = vmax.f32 %v919, 0.0
        %v924 = vmax.f32 %v920, 0.0
        %v925 = vmax.f32 %v921, 0.0
        %v926 = vmax.f32 %v922, %v924
        %v927 = vmax.f32 %v923, %v925
        %928 = vst [vmem:[#allocation2 + $0x20] sm:$0xff] %v926
        %929 = vst [vmem:[#allocation2 + $0x28] sm:$0xff] %v927
        %v930 = vld [vmem:[%s877] sm:$0xff]
        %v931 = vld [vmem:[%s877 + $0x8] sm:$0xff]
        %v932 = vld [vmem:[%s877 + $0x18] sm:$0xff]
        %v933 = vld [vmem:[%s877 + $0x20] sm:$0xff]
        %v934 = vmul.f32 %v930, %v541
        %v935 = vmul.f32 %v931, %v541
        %v936 = vmul.f32 %v932, %v541
        %v937 = vmul.f32 %v933, %v541
        %v938 = vadd.f32 %v934, 0.0
        %v939 = vadd.f32 %v935, 0.0
        %v940 = vadd.f32 %v936, 0.0
        %v941 = vadd.f32 %v937, 0.0
        %v942 = vld [vmem:[%s877 + $0x1] sm:$0xff]
        %v943 = vld [vmem:[%s877 + $0x9] sm:$0xff]
        %v944 = vld [vmem:[%s877 + $0x19] sm:$0xff]
        %v945 = vld [vmem:[%s877 + $0x21] sm:$0xff]
        %v946 = vmul.f32 %v942, %v554
        %v947 = vmul.f32 %v943, %v554
        %v948 = vmul.f32 %v944, %v554
        %v949 = vmul.f32 %v945, %v554
        %v950 = vadd.f32 %v938, %v946
        %v951 = vadd.f32 %v939, %v947
        %v952 = vadd.f32 %v940, %v948
        %v953 = vadd.f32 %v941, %v949
        %v954 = vld [vmem:[%s877 + $0x2] sm:$0xff]
        %v955 = vld [vmem:[%s877 + $0xa] sm:$0xff]
        %v956 = vld [vmem:[%s877 + $0x1a] sm:$0xff]
        %v957 = vld [vmem:[%s877 + $0x22] sm:$0xff]
        %v958 = vmul.f32 %v954, %v567
        %v959 = vmul.f32 %v955, %v567
        %v960 = vmul.f32 %v956, %v567
        %v961 = vmul.f32 %v957, %v567
        %v962 = vadd.f32 %v950, %v958
        %v963 = vadd.f32 %v951, %v959
        %v964 = vadd.f32 %v952, %v960
        %v965 = vadd.f32 %v953, %v961
        %s966 = scalar_lea.vmem %s495, 168
        %v967 = vld [vmem:[%s966] sm:$0xff]
        %v968 = vld [vmem:[%s966 + $0x8] sm:$0xff]
        %v969 = vld [vmem:[%s966 + $0x18] sm:$0xff]
        %v970 = vld [vmem:[%s966 + $0x20] sm:$0xff]
        %v971 = vmul.f32 %v967, %v581
        %v972 = vmul.f32 %v968, %v581
        %v973 = vmul.f32 %v969, %v581
        %v974 = vmul.f32 %v970, %v581
        %v975 = vadd.f32 %v962, %v971
        %v976 = vadd.f32 %v963, %v972
        %v977 = vadd.f32 %v964, %v973
        %v978 = vadd.f32 %v965, %v974
        %v979 = vld [vmem:[%s966 + $0x1] sm:$0xff]
        %v980 = vld [vmem:[%s966 + $0x9] sm:$0xff]
        %v981 = vld [vmem:[%s966 + $0x19] sm:$0xff]
        %v982 = vld [vmem:[%s966 + $0x21] sm:$0xff]
        %v983 = vmul.f32 %v979, %v594
        %v984 = vmul.f32 %v980, %v594
        %v985 = vmul.f32 %v981, %v594
        %v986 = vmul.f32 %v982, %v594
        %v987 = vadd.f32 %v975, %v983
        %v988 = vadd.f32 %v976, %v984
        %v989 = vadd.f32 %v977, %v985
        %v990 = vadd.f32 %v978, %v986
        %v991 = vld [vmem:[%s966 + $0x2] sm:$0xff]
        %v992 = vld [vmem:[%s966 + $0xa] sm:$0xff]
        %v993 = vld [vmem:[%s966 + $0x1a] sm:$0xff]
        %v994 = vld [vmem:[%s966 + $0x22] sm:$0xff]
        %v995 = vmul.f32 %v991, %v607
        %v996 = vmul.f32 %v992, %v607
        %v997 = vmul.f32 %v993, %v607
        %v998 = vmul.f32 %v994, %v607
        %v999 = vadd.f32 %v987, %v995
        %v1000 = vadd.f32 %v988, %v996
        %v1001 = vadd.f32 %v989, %v997
        %v1002 = vadd.f32 %v990, %v998
        %s1003 = scalar_lea.vmem %s495, 192
        %v1004 = vld [vmem:[%s1003] sm:$0xff]
        %v1005 = vld [vmem:[%s1003 + $0x8] sm:$0xff]
        %v1006 = vld [vmem:[%s1003 + $0x18] sm:$0xff]
        %v1007 = vld [vmem:[%s1003 + $0x20] sm:$0xff]
        %v1008 = vmul.f32 %v1004, %v621
        %v1009 = vmul.f32 %v1005, %v621
        %v1010 = vmul.f32 %v1006, %v621
        %v1011 = vmul.f32 %v1007, %v621
        %v1012 = vadd.f32 %v999, %v1008
        %v1013 = vadd.f32 %v1000, %v1009
        %v1014 = vadd.f32 %v1001, %v1010
        %v1015 = vadd.f32 %v1002, %v1011
        %v1016 = vld [vmem:[%s1003 + $0x1] sm:$0xff]
        %v1017 = vld [vmem:[%s1003 + $0x9] sm:$0xff]
        %v1018 = vld [vmem:[%s1003 + $0x19] sm:$0xff]
        %v1019 = vld [vmem:[%s1003 + $0x21] sm:$0xff]
        %v1020 = vmul.f32 %v1016, %v634
        %v1021 = vmul.f32 %v1017, %v634
        %v1022 = vmul.f32 %v1018, %v634
        %v1023 = vmul.f32 %v1019, %v634
        %v1024 = vadd.f32 %v1012, %v1020
        %v1025 = vadd.f32 %v1013, %v1021
        %v1026 = vadd.f32 %v1014, %v1022
        %v1027 = vadd.f32 %v1015, %v1023
        %v1028 = vld [vmem:[%s1003 + $0x2] sm:$0xff]
        %v1029 = vld [vmem:[%s1003 + $0xa] sm:$0xff]
        %v1030 = vld [vmem:[%s1003 + $0x1a] sm:$0xff]
        %v1031 = vld [vmem:[%s1003 + $0x22] sm:$0xff]
        %v1032 = vmul.f32 %v1028, %v647
        %v1033 = vmul.f32 %v1029, %v647
        %v1034 = vmul.f32 %v1030, %v647
        %v1035 = vmul.f32 %v1031, %v647
        %v1036 = vadd.f32 %v1024, %v1032
        %v1037 = vadd.f32 %v1025, %v1033
        %v1038 = vadd.f32 %v1026, %v1034
        %v1039 = vadd.f32 %v1027, %v1035
        %v1040 = vmul.f32 %v1036, %v657
        %v1041 = vmul.f32 %v1037, %v657
        %v1042 = vmul.f32 %v1038, %v657
        %v1043 = vmul.f32 %v1039, %v657
        %v1044 = vadd.f32 %v1040, %v664
        %v1045 = vadd.f32 %v1041, %v664
        %v1046 = vadd.f32 %v1042, %v664
        %v1047 = vadd.f32 %v1043, %v664
        %v1048 = vmax.f32 %v1044, 0.0
        %v1049 = vmax.f32 %v1045, 0.0
        %v1050 = vmax.f32 %v1046, 0.0
        %v1051 = vmax.f32 %v1047, 0.0
        %v1052 = vmax.f32 %v1048, %v1050
        %v1053 = vmax.f32 %v1049, %v1051
        %1054 = vst [vmem:[#allocation2 + $0x30] sm:$0xff] %v1052
        %1055 = vst [vmem:[#allocation2 + $0x38] sm:$0xff] %v1053
        %v1056 = vld [vmem:[%s1003] sm:$0xff]
        %v1057 = vld [vmem:[%s1003 + $0x8] sm:$0xff]
        %v1058 = vld [vmem:[%s1003 + $0x18] sm:$0xff]
        %v1059 = vld [vmem:[%s1003 + $0x20] sm:$0xff]
        %v1060 = vmul.f32 %v1056, %v541
        %v1061 = vmul.f32 %v1057, %v541
        %v1062 = vmul.f32 %v1058, %v541
        %v1063 = vmul.f32 %v1059, %v541
        %v1064 = vadd.f32 %v1060, 0.0
        %v1065 = vadd.f32 %v1061, 0.0
        %v1066 = vadd.f32 %v1062, 0.0
        %v1067 = vadd.f32 %v1063, 0.0
        %v1068 = vld [vmem:[%s1003 + $0x1] sm:$0xff]
        %v1069 = vld [vmem:[%s1003 + $0x9] sm:$0xff]
        %v1070 = vld [vmem:[%s1003 + $0x19] sm:$0xff]
        %v1071 = vld [vmem:[%s1003 + $0x21] sm:$0xff]
        %v1072 = vmul.f32 %v1068, %v554
        %v1073 = vmul.f32 %v1069, %v554
        %v1074 = vmul.f32 %v1070, %v554
        %v1075 = vmul.f32 %v1071, %v554
        %v1076 = vadd.f32 %v1064, %v1072
        %v1077 = vadd.f32 %v1065, %v1073
        %v1078 = vadd.f32 %v1066, %v1074
        %v1079 = vadd.f32 %v1067, %v1075
        %v1080 = vld [vmem:[%s1003 + $0x2] sm:$0xff]
        %v1081 = vld [vmem:[%s1003 + $0xa] sm:$0xff]
        %v1082 = vld [vmem:[%s1003 + $0x1a] sm:$0xff]
        %v1083 = vld [vmem:[%s1003 + $0x22] sm:$0xff]
        %v1084 = vmul.f32 %v1080, %v567
        %v1085 = vmul.f32 %v1081, %v567
        %v1086 = vmul.f32 %v1082, %v567
        %v1087 = vmul.f32 %v1083, %v567
        %v1088 = vadd.f32 %v1076, %v1084
        %v1089 = vadd.f32 %v1077, %v1085
        %v1090 = vadd.f32 %v1078, %v1086
        %v1091 = vadd.f32 %v1079, %v1087
        %s1092 = scalar_lea.vmem %s495, 216
        %v1093 = vld [vmem:[%s1092] sm:$0xff]
        %v1094 = vld [vmem:[%s1092 + $0x8] sm:$0xff]
        %v1095 = vld [vmem:[%s1092 + $0x18] sm:$0xff]
        %v1096 = vld [vmem:[%s1092 + $0x20] sm:$0xff]
        %v1097 = vmul.f32 %v1093, %v581
        %v1098 = vmul.f32 %v1094, %v581
        %v1099 = vmul.f32 %v1095, %v581
        %v1100 = vmul.f32 %v1096, %v581
        %v1101 = vadd.f32 %v1088, %v1097
        %v1102 = vadd.f32 %v1089, %v1098
        %v1103 = vadd.f32 %v1090, %v1099
        %v1104 = vadd.f32 %v1091, %v1100
        %v1105 = vld [vmem:[%s1092 + $0x1] sm:$0xff]
        %v1106 = vld [vmem:[%s1092 + $0x9] sm:$0xff]
        %v1107 = vld [vmem:[%s1092 + $0x19] sm:$0xff]
        %v1108 = vld [vmem:[%s1092 + $0x21] sm:$0xff]
        %v1109 = vmul.f32 %v1105, %v594
        %v1110 = vmul.f32 %v1106, %v594
        %v1111 = vmul.f32 %v1107, %v594
        %v1112 = vmul.f32 %v1108, %v594
        %v1113 = vadd.f32 %v1101, %v1109
        %v1114 = vadd.f32 %v1102, %v1110
        %v1115 = vadd.f32 %v1103, %v1111
        %v1116 = vadd.f32 %v1104, %v1112
        %v1117 = vld [vmem:[%s1092 + $0x2] sm:$0xff]
        %v1118 = vld [vmem:[%s1092 + $0xa] sm:$0xff]
        %v1119 = vld [vmem:[%s1092 + $0x1a] sm:$0xff]
        %v1120 = vld [vmem:[%s1092 + $0x22] sm:$0xff]
        %v1121 = vmul.f32 %v1117, %v607
        %v1122 = vmul.f32 %v1118, %v607
        %v1123 = vmul.f32 %v1119, %v607
        %v1124 = vmul.f32 %v1120, %v607
        %v1125 = vadd.f32 %v1113, %v1121
        %v1126 = vadd.f32 %v1114, %v1122
        %v1127 = vadd.f32 %v1115, %v1123
        %v1128 = vadd.f32 %v1116, %v1124
        %s1129 = scalar_lea.vmem %s495, 240
        %v1130 = vld [vmem:[%s1129] sm:$0xff]
        %v1131 = vld [vmem:[%s1129 + $0x8] sm:$0xff]
        %v1132 = vld [vmem:[%s1129 + $0x18] sm:$0xff]
        %v1133 = vld [vmem:[%s1129 + $0x20] sm:$0xff]
        %v1134 = vmul.f32 %v1130, %v621
        %v1135 = vmul.f32 %v1131, %v621
        %v1136 = vmul.f32 %v1132, %v621
        %v1137 = vmul.f32 %v1133, %v621
        %v1138 = vadd.f32 %v1125, %v1134
        %v1139 = vadd.f32 %v1126, %v1135
        %v1140 = vadd.f32 %v1127, %v1136
        %v1141 = vadd.f32 %v1128, %v1137
        %v1142 = vld [vmem:[%s1129 + $0x1] sm:$0xff]
        %v1143 = vld [vmem:[%s1129 + $0x9] sm:$0xff]
        %v1144 = vld [vmem:[%s1129 + $0x19] sm:$0xff]
        %v1145 = vld [vmem:[%s1129 + $0x21] sm:$0xff]
        %v1146 = vmul.f32 %v1142, %v634
        %v1147 = vmul.f32 %v1143, %v634
        %v1148 = vmul.f32 %v1144, %v634
        %v1149 = vmul.f32 %v1145, %v634
        %v1150 = vadd.f32 %v1138, %v1146
        %v1151 = vadd.f32 %v1139, %v1147
        %v1152 = vadd.f32 %v1140, %v1148
        %v1153 = vadd.f32 %v1141, %v1149
        %v1154 = vld [vmem:[%s1129 + $0x2] sm:$0xff]
        %v1155 = vld [vmem:[%s1129 + $0xa] sm:$0xff]
        %v1156 = vld [vmem:[%s1129 + $0x1a] sm:$0xff]
        %v1157 = vld [vmem:[%s1129 + $0x22] sm:$0xff]
        %v1158 = vmul.f32 %v1154, %v647
        %v1159 = vmul.f32 %v1155, %v647
        %v1160 = vmul.f32 %v1156, %v647
        %v1161 = vmul.f32 %v1157, %v647
        %v1162 = vadd.f32 %v1150, %v1158
        %v1163 = vadd.f32 %v1151, %v1159
        %v1164 = vadd.f32 %v1152, %v1160
        %v1165 = vadd.f32 %v1153, %v1161
        %v1166 = vmul.f32 %v1162, %v657
        %v1167 = vmul.f32 %v1163, %v657
        %v1168 = vmul.f32 %v1164, %v657
        %v1169 = vmul.f32 %v1165, %v657
        %v1170 = vadd.f32 %v1166, %v664
        %v1171 = vadd.f32 %v1167, %v664
        %v1172 = vadd.f32 %v1168, %v664
        %v1173 = vadd.f32 %v1169, %v664
        %v1174 = vmax.f32 %v1170, 0.0
        %v1175 = vmax.f32 %v1171, 0.0
        %v1176 = vmax.f32 %v1172, 0.0
        %v1177 = vmax.f32 %v1173, 0.0
        %v1178 = vmax.f32 %v1174, %v1176
        %v1179 = vmax.f32 %v1175, %v1177
        %1180 = vst [vmem:[#allocation2 + $0x40] sm:$0xff] %v1178
        %1181 = vst [vmem:[#allocation2 + $0x48] sm:$0xff] %v1179
        %v1182 = vld [vmem:[%s1129] sm:$0xff]
        %v1183 = vld [vmem:[%s1129 + $0x8] sm:$0xff]
        %v1184 = vld [vmem:[%s1129 + $0x18] sm:$0xff]
        %v1185 = vld [vmem:[%s1129 + $0x20] sm:$0xff]
        %v1186 = vmul.f32 %v1182, %v541
        %v1187 = vmul.f32 %v1183, %v541
        %v1188 = vmul.f32 %v1184, %v541
        %v1189 = vmul.f32 %v1185, %v541
        %v1190 = vadd.f32 %v1186, 0.0
        %v1191 = vadd.f32 %v1187, 0.0
        %v1192 = vadd.f32 %v1188, 0.0
        %v1193 = vadd.f32 %v1189, 0.0
        %v1194 = vld [vmem:[%s1129 + $0x1] sm:$0xff]
        %v1195 = vld [vmem:[%s1129 + $0x9] sm:$0xff]
        %v1196 = vld [vmem:[%s1129 + $0x19] sm:$0xff]
        %v1197 = vld [vmem:[%s1129 + $0x21] sm:$0xff]
        %v1198 = vmul.f32 %v1194, %v554
        %v1199 = vmul.f32 %v1195, %v554
        %v1200 = vmul.f32 %v1196, %v554
        %v1201 = vmul.f32 %v1197, %v554
        %v1202 = vadd.f32 %v1190, %v1198
        %v1203 = vadd.f32 %v1191, %v1199
        %v1204 = vadd.f32 %v1192, %v1200
        %v1205 = vadd.f32 %v1193, %v1201
        %v1206 = vld [vmem:[%s1129 + $0x2] sm:$0xff]
        %v1207 = vld [vmem:[%s1129 + $0xa] sm:$0xff]
        %v1208 = vld [vmem:[%s1129 + $0x1a] sm:$0xff]
        %v1209 = vld [vmem:[%s1129 + $0x22] sm:$0xff]
        %v1210 = vmul.f32 %v1206, %v567
        %v1211 = vmul.f32 %v1207, %v567
        %v1212 = vmul.f32 %v1208, %v567
        %v1213 = vmul.f32 %v1209, %v567
        %v1214 = vadd.f32 %v1202, %v1210
        %v1215 = vadd.f32 %v1203, %v1211
        %v1216 = vadd.f32 %v1204, %v1212
        %v1217 = vadd.f32 %v1205, %v1213
        %s1218 = scalar_lea.vmem %s495, 264
        %v1219 = vld [vmem:[%s1218] sm:$0xff]
        %v1220 = vld [vmem:[%s1218 + $0x8] sm:$0xff]
        %v1221 = vld [vmem:[%s1218 + $0x18] sm:$0xff]
        %v1222 = vld [vmem:[%s1218 + $0x20] sm:$0xff]
        %v1223 = vmul.f32 %v1219, %v581
        %v1224 = vmul.f32 %v1220, %v581
        %v1225 = vmul.f32 %v1221, %v581
        %v1226 = vmul.f32 %v1222, %v581
        %v1227 = vadd.f32 %v1214, %v1223
        %v1228 = vadd.f32 %v1215, %v1224
        %v1229 = vadd.f32 %v1216, %v1225
        %v1230 = vadd.f32 %v1217, %v1226
        %v1231 = vld [vmem:[%s1218 + $0x1] sm:$0xff]
        %v1232 = vld [vmem:[%s1218 + $0x9] sm:$0xff]
        %v1233 = vld [vmem:[%s1218 + $0x19] sm:$0xff]
        %v1234 = vld [vmem:[%s1218 + $0x21] sm:$0xff]
        %v1235 = vmul.f32 %v1231, %v594
        %v1236 = vmul.f32 %v1232, %v594
        %v1237 = vmul.f32 %v1233, %v594
        %v1238 = vmul.f32 %v1234, %v594
        %v1239 = vadd.f32 %v1227, %v1235
        %v1240 = vadd.f32 %v1228, %v1236
        %v1241 = vadd.f32 %v1229, %v1237
        %v1242 = vadd.f32 %v1230, %v1238
        %v1243 = vld [vmem:[%s1218 + $0x2] sm:$0xff]
        %v1244 = vld [vmem:[%s1218 + $0xa] sm:$0xff]
        %v1245 = vld [vmem:[%s1218 + $0x1a] sm:$0xff]
        %v1246 = vld [vmem:[%s1218 + $0x22] sm:$0xff]
        %v1247 = vmul.f32 %v1243, %v607
        %v1248 = vmul.f32 %v1244, %v607
        %v1249 = vmul.f32 %v1245, %v607
        %v1250 = vmul.f32 %v1246, %v607
        %v1251 = vadd.f32 %v1239, %v1247
        %v1252 = vadd.f32 %v1240, %v1248
        %v1253 = vadd.f32 %v1241, %v1249
        %v1254 = vadd.f32 %v1242, %v1250
        %s1255 = scalar_lea.vmem %s495, 288
        %v1256 = vld [vmem:[%s1255] sm:$0xff]
        %v1257 = vld [vmem:[%s1255 + $0x8] sm:$0xff]
        %v1258 = vld [vmem:[%s1255 + $0x18] sm:$0xff]
        %v1259 = vld [vmem:[%s1255 + $0x20] sm:$0xff]
        %v1260 = vmul.f32 %v1256, %v621
        %v1261 = vmul.f32 %v1257, %v621
        %v1262 = vmul.f32 %v1258, %v621
        %v1263 = vmul.f32 %v1259, %v621
        %v1264 = vadd.f32 %v1251, %v1260
        %v1265 = vadd.f32 %v1252, %v1261
        %v1266 = vadd.f32 %v1253, %v1262
        %v1267 = vadd.f32 %v1254, %v1263
        %v1268 = vld [vmem:[%s1255 + $0x1] sm:$0xff]
        %v1269 = vld [vmem:[%s1255 + $0x9] sm:$0xff]
        %v1270 = vld [vmem:[%s1255 + $0x19] sm:$0xff]
        %v1271 = vld [vmem:[%s1255 + $0x21] sm:$0xff]
        %v1272 = vmul.f32 %v1268, %v634
        %v1273 = vmul.f32 %v1269, %v634
        %v1274 = vmul.f32 %v1270, %v634
        %v1275 = vmul.f32 %v1271, %v634
        %v1276 = vadd.f32 %v1264, %v1272
        %v1277 = vadd.f32 %v1265, %v1273
        %v1278 = vadd.f32 %v1266, %v1274
        %v1279 = vadd.f32 %v1267, %v1275
        %v1280 = vld [vmem:[%s1255 + $0x2] sm:$0xff]
        %v1281 = vld [vmem:[%s1255 + $0xa] sm:$0xff]
        %v1282 = vld [vmem:[%s1255 + $0x1a] sm:$0xff]
        %v1283 = vld [vmem:[%s1255 + $0x22] sm:$0xff]
        %v1284 = vmul.f32 %v1280, %v647
        %v1285 = vmul.f32 %v1281, %v647
        %v1286 = vmul.f32 %v1282, %v647
        %v1287 = vmul.f32 %v1283, %v647
        %v1288 = vadd.f32 %v1276, %v1284
        %v1289 = vadd.f32 %v1277, %v1285
        %v1290 = vadd.f32 %v1278, %v1286
        %v1291 = vadd.f32 %v1279, %v1287
        %v1292 = vmul.f32 %v1288, %v657
        %v1293 = vmul.f32 %v1289, %v657
        %v1294 = vmul.f32 %v1290, %v657
        %v1295 = vmul.f32 %v1291, %v657
        %v1296 = vadd.f32 %v1292, %v664
        %v1297 = vadd.f32 %v1293, %v664
        %v1298 = vadd.f32 %v1294, %v664
        %v1299 = vadd.f32 %v1295, %v664
        %v1300 = vmax.f32 %v1296, 0.0
        %v1301 = vmax.f32 %v1297, 0.0
        %v1302 = vmax.f32 %v1298, 0.0
        %v1303 = vmax.f32 %v1299, 0.0
        %v1304 = vmax.f32 %v1300, %v1302
        %v1305 = vmax.f32 %v1301, %v1303
        %1306 = vst [vmem:[#allocation2 + $0x50] sm:$0xff] %v1304
        %1307 = vst [vmem:[#allocation2 + $0x58] sm:$0xff] %v1305
        %v1308 = vld [vmem:[%s1255] sm:$0xff]
        %v1309 = vld [vmem:[%s1255 + $0x8] sm:$0xff]
        %v1310 = vld [vmem:[%s1255 + $0x18] sm:$0xff]
        %v1311 = vld [vmem:[%s1255 + $0x20] sm:$0xff]
        %v1312 = vmul.f32 %v1308, %v541
        %v1313 = vmul.f32 %v1309, %v541
        %v1314 = vmul.f32 %v1310, %v541
        %v1315 = vmul.f32 %v1311, %v541
        %v1316 = vadd.f32 %v1312, 0.0
        %v1317 = vadd.f32 %v1313, 0.0
        %v1318 = vadd.f32 %v1314, 0.0
        %v1319 = vadd.f32 %v1315, 0.0
        %v1320 = vld [vmem:[%s1255 + $0x1] sm:$0xff]
        %v1321 = vld [vmem:[%s1255 + $0x9] sm:$0xff]
        %v1322 = vld [vmem:[%s1255 + $0x19] sm:$0xff]
        %v1323 = vld [vmem:[%s1255 + $0x21] sm:$0xff]
        %v1324 = vmul.f32 %v1320, %v554
        %v1325 = vmul.f32 %v1321, %v554
        %v1326 = vmul.f32 %v1322, %v554
        %v1327 = vmul.f32 %v1323, %v554
        %v1328 = vadd.f32 %v1316, %v1324
        %v1329 = vadd.f32 %v1317, %v1325
        %v1330 = vadd.f32 %v1318, %v1326
        %v1331 = vadd.f32 %v1319, %v1327
        %v1332 = vld [vmem:[%s1255 + $0x2] sm:$0xff]
        %v1333 = vld [vmem:[%s1255 + $0xa] sm:$0xff]
        %v1334 = vld [vmem:[%s1255 + $0x1a] sm:$0xff]
        %v1335 = vld [vmem:[%s1255 + $0x22] sm:$0xff]
        %v1336 = vmul.f32 %v1332, %v567
        %v1337 = vmul.f32 %v1333, %v567
        %v1338 = vmul.f32 %v1334, %v567
        %v1339 = vmul.f32 %v1335, %v567
        %v1340 = vadd.f32 %v1328, %v1336
        %v1341 = vadd.f32 %v1329, %v1337
        %v1342 = vadd.f32 %v1330, %v1338
        %v1343 = vadd.f32 %v1331, %v1339
        %s1344 = scalar_lea.vmem %s495, 312
        %v1345 = vld [vmem:[%s1344] sm:$0xff]
        %v1346 = vld [vmem:[%s1344 + $0x8] sm:$0xff]
        %v1347 = vld [vmem:[%s1344 + $0x18] sm:$0xff]
        %v1348 = vld [vmem:[%s1344 + $0x20] sm:$0xff]
        %v1349 = vmul.f32 %v1345, %v581
        %v1350 = vmul.f32 %v1346, %v581
        %v1351 = vmul.f32 %v1347, %v581
        %v1352 = vmul.f32 %v1348, %v581
        %v1353 = vadd.f32 %v1340, %v1349
        %v1354 = vadd.f32 %v1341, %v1350
        %v1355 = vadd.f32 %v1342, %v1351
        %v1356 = vadd.f32 %v1343, %v1352
        %v1357 = vld [vmem:[%s1344 + $0x1] sm:$0xff]
        %v1358 = vld [vmem:[%s1344 + $0x9] sm:$0xff]
        %v1359 = vld [vmem:[%s1344 + $0x19] sm:$0xff]
        %v1360 = vld [vmem:[%s1344 + $0x21] sm:$0xff]
        %v1361 = vmul.f32 %v1357, %v594
        %v1362 = vmul.f32 %v1358, %v594
        %v1363 = vmul.f32 %v1359, %v594
        %v1364 = vmul.f32 %v1360, %v594
        %v1365 = vadd.f32 %v1353, %v1361
        %v1366 = vadd.f32 %v1354, %v1362
        %v1367 = vadd.f32 %v1355, %v1363
        %v1368 = vadd.f32 %v1356, %v1364
        %v1369 = vld [vmem:[%s1344 + $0x2] sm:$0xff]
        %v1370 = vld [vmem:[%s1344 + $0xa] sm:$0xff]
        %v1371 = vld [vmem:[%s1344 + $0x1a] sm:$0xff]
        %v1372 = vld [vmem:[%s1344 + $0x22] sm:$0xff]
        %v1373 = vmul.f32 %v1369, %v607
        %v1374 = vmul.f32 %v1370, %v607
        %v1375 = vmul.f32 %v1371, %v607
        %v1376 = vmul.f32 %v1372, %v607
        %v1377 = vadd.f32 %v1365, %v1373
        %v1378 = vadd.f32 %v1366, %v1374
        %v1379 = vadd.f32 %v1367, %v1375
        %v1380 = vadd.f32 %v1368, %v1376
        %s1381 = scalar_lea.vmem %s495, 336
        %v1382 = vld [vmem:[%s1381] sm:$0xff]
        %v1383 = vld [vmem:[%s1381 + $0x8] sm:$0xff]
        %v1384 = vld [vmem:[%s1381 + $0x18] sm:$0xff]
        %v1385 = vld [vmem:[%s1381 + $0x20] sm:$0xff]
        %v1386 = vmul.f32 %v1382, %v621
        %v1387 = vmul.f32 %v1383, %v621
        %v1388 = vmul.f32 %v1384, %v621
        %v1389 = vmul.f32 %v1385, %v621
        %v1390 = vadd.f32 %v1377, %v1386
        %v1391 = vadd.f32 %v1378, %v1387
        %v1392 = vadd.f32 %v1379, %v1388
        %v1393 = vadd.f32 %v1380, %v1389
        %v1394 = vld [vmem:[%s1381 + $0x1] sm:$0xff]
        %v1395 = vld [vmem:[%s1381 + $0x9] sm:$0xff]
        %v1396 = vld [vmem:[%s1381 + $0x19] sm:$0xff]
        %v1397 = vld [vmem:[%s1381 + $0x21] sm:$0xff]
        %v1398 = vmul.f32 %v1394, %v634
        %v1399 = vmul.f32 %v1395, %v634
        %v1400 = vmul.f32 %v1396, %v634
        %v1401 = vmul.f32 %v1397, %v634
        %v1402 = vadd.f32 %v1390, %v1398
        %v1403 = vadd.f32 %v1391, %v1399
        %v1404 = vadd.f32 %v1392, %v1400
        %v1405 = vadd.f32 %v1393, %v1401
        %v1406 = vld [vmem:[%s1381 + $0x2] sm:$0xff]
        %v1407 = vld [vmem:[%s1381 + $0xa] sm:$0xff]
        %v1408 = vld [vmem:[%s1381 + $0x1a] sm:$0xff]
        %v1409 = vld [vmem:[%s1381 + $0x22] sm:$0xff]
        %v1410 = vmul.f32 %v1406, %v647
        %v1411 = vmul.f32 %v1407, %v647
        %v1412 = vmul.f32 %v1408, %v647
        %v1413 = vmul.f32 %v1409, %v647
        %v1414 = vadd.f32 %v1402, %v1410
        %v1415 = vadd.f32 %v1403, %v1411
        %v1416 = vadd.f32 %v1404, %v1412
        %v1417 = vadd.f32 %v1405, %v1413
        %v1418 = vmul.f32 %v1414, %v657
        %v1419 = vmul.f32 %v1415, %v657
        %v1420 = vmul.f32 %v1416, %v657
        %v1421 = vmul.f32 %v1417, %v657
        %v1422 = vadd.f32 %v1418, %v664
        %v1423 = vadd.f32 %v1419, %v664
        %v1424 = vadd.f32 %v1420, %v664
        %v1425 = vadd.f32 %v1421, %v664
        %v1426 = vmax.f32 %v1422, 0.0
        %v1427 = vmax.f32 %v1423, 0.0
        %v1428 = vmax.f32 %v1424, 0.0
        %v1429 = vmax.f32 %v1425, 0.0
        %v1430 = vmax.f32 %v1426, %v1428
        %v1431 = vmax.f32 %v1427, %v1429
        %1432 = vst [vmem:[#allocation2 + $0x60] sm:$0xff] %v1430
        %1433 = vst [vmem:[#allocation2 + $0x68] sm:$0xff] %v1431
        %v1434 = vld [vmem:[%s1381] sm:$0xff]
        %v1435 = vld [vmem:[%s1381 + $0x8] sm:$0xff]
        %v1436 = vld [vmem:[%s1381 + $0x18] sm:$0xff]
        %v1437 = vld [vmem:[%s1381 + $0x20] sm:$0xff]
        %v1438 = vmul.f32 %v1434, %v541
        %v1439 = vmul.f32 %v1435, %v541
        %v1440 = vmul.f32 %v1436, %v541
        %v1441 = vmul.f32 %v1437, %v541
        %v1442 = vadd.f32 %v1438, 0.0
        %v1443 = vadd.f32 %v1439, 0.0
        %v1444 = vadd.f32 %v1440, 0.0
        %v1445 = vadd.f32 %v1441, 0.0
        %v1446 = vld [vmem:[%s1381 + $0x1] sm:$0xff]
        %v1447 = vld [vmem:[%s1381 + $0x9] sm:$0xff]
        %v1448 = vld [vmem:[%s1381 + $0x19] sm:$0xff]
        %v1449 = vld [vmem:[%s1381 + $0x21] sm:$0xff]
        %v1450 = vmul.f32 %v1446, %v554
        %v1451 = vmul.f32 %v1447, %v554
        %v1452 = vmul.f32 %v1448, %v554
        %v1453 = vmul.f32 %v1449, %v554
        %v1454 = vadd.f32 %v1442, %v1450
        %v1455 = vadd.f32 %v1443, %v1451
        %v1456 = vadd.f32 %v1444, %v1452
        %v1457 = vadd.f32 %v1445, %v1453
        %v1458 = vld [vmem:[%s1381 + $0x2] sm:$0xff]
        %v1459 = vld [vmem:[%s1381 + $0xa] sm:$0xff]
        %v1460 = vld [vmem:[%s1381 + $0x1a] sm:$0xff]
        %v1461 = vld [vmem:[%s1381 + $0x22] sm:$0xff]
        %v1462 = vmul.f32 %v1458, %v567
        %v1463 = vmul.f32 %v1459, %v567
        %v1464 = vmul.f32 %v1460, %v567
        %v1465 = vmul.f32 %v1461, %v567
        %v1466 = vadd.f32 %v1454, %v1462
        %v1467 = vadd.f32 %v1455, %v1463
        %v1468 = vadd.f32 %v1456, %v1464
        %v1469 = vadd.f32 %v1457, %v1465
        %s1470 = scalar_lea.vmem %s495, 360
        %v1471 = vld [vmem:[%s1470] sm:$0xff]
        %v1472 = vld [vmem:[%s1470 + $0x8] sm:$0xff]
        %v1473 = vld [vmem:[%s1470 + $0x18] sm:$0xff]
        %v1474 = vld [vmem:[%s1470 + $0x20] sm:$0xff]
        %v1475 = vmul.f32 %v1471, %v581
        %v1476 = vmul.f32 %v1472, %v581
        %v1477 = vmul.f32 %v1473, %v581
        %v1478 = vmul.f32 %v1474, %v581
        %v1479 = vadd.f32 %v1466, %v1475
        %v1480 = vadd.f32 %v1467, %v1476
        %v1481 = vadd.f32 %v1468, %v1477
        %v1482 = vadd.f32 %v1469, %v1478
        %v1483 = vld [vmem:[%s1470 + $0x1] sm:$0xff]
        %v1484 = vld [vmem:[%s1470 + $0x9] sm:$0xff]
        %v1485 = vld [vmem:[%s1470 + $0x19] sm:$0xff]
        %v1486 = vld [vmem:[%s1470 + $0x21] sm:$0xff]
        %v1487 = vmul.f32 %v1483, %v594
        %v1488 = vmul.f32 %v1484, %v594
        %v1489 = vmul.f32 %v1485, %v594
        %v1490 = vmul.f32 %v1486, %v594
        %v1491 = vadd.f32 %v1479, %v1487
        %v1492 = vadd.f32 %v1480, %v1488
        %v1493 = vadd.f32 %v1481, %v1489
        %v1494 = vadd.f32 %v1482, %v1490
        %v1495 = vld [vmem:[%s1470 + $0x2] sm:$0xff]
        %v1496 = vld [vmem:[%s1470 + $0xa] sm:$0xff]
        %v1497 = vld [vmem:[%s1470 + $0x1a] sm:$0xff]
        %v1498 = vld [vmem:[%s1470 + $0x22] sm:$0xff]
        %v1499 = vmul.f32 %v1495, %v607
        %v1500 = vmul.f32 %v1496, %v607
        %v1501 = vmul.f32 %v1497, %v607
        %v1502 = vmul.f32 %v1498, %v607
        %v1503 = vadd.f32 %v1491, %v1499
        %v1504 = vadd.f32 %v1492, %v1500
        %v1505 = vadd.f32 %v1493, %v1501
        %v1506 = vadd.f32 %v1494, %v1502
        %s1507 = scalar_lea.vmem %s495, 384
        %v1508 = vld [vmem:[%s1507] sm:$0xff]
        %v1509 = vld [vmem:[%s1507 + $0x8] sm:$0xff]
        %v1510 = vld [vmem:[%s1507 + $0x18] sm:$0xff]
        %v1511 = vld [vmem:[%s1507 + $0x20] sm:$0xff]
        %v1512 = vmul.f32 %v1508, %v621
        %v1513 = vmul.f32 %v1509, %v621
        %v1514 = vmul.f32 %v1510, %v621
        %v1515 = vmul.f32 %v1511, %v621
        %v1516 = vadd.f32 %v1503, %v1512
        %v1517 = vadd.f32 %v1504, %v1513
        %v1518 = vadd.f32 %v1505, %v1514
        %v1519 = vadd.f32 %v1506, %v1515
        %v1520 = vld [vmem:[%s1507 + $0x1] sm:$0xff]
        %v1521 = vld [vmem:[%s1507 + $0x9] sm:$0xff]
        %v1522 = vld [vmem:[%s1507 + $0x19] sm:$0xff]
        %v1523 = vld [vmem:[%s1507 + $0x21] sm:$0xff]
        %v1524 = vmul.f32 %v1520, %v634
        %v1525 = vmul.f32 %v1521, %v634
        %v1526 = vmul.f32 %v1522, %v634
        %v1527 = vmul.f32 %v1523, %v634
        %v1528 = vadd.f32 %v1516, %v1524
        %v1529 = vadd.f32 %v1517, %v1525
        %v1530 = vadd.f32 %v1518, %v1526
        %v1531 = vadd.f32 %v1519, %v1527
        %v1532 = vld [vmem:[%s1507 + $0x2] sm:$0xff]
        %v1533 = vld [vmem:[%s1507 + $0xa] sm:$0xff]
        %v1534 = vld [vmem:[%s1507 + $0x1a] sm:$0xff]
        %v1535 = vld [vmem:[%s1507 + $0x22] sm:$0xff]
        %v1536 = vmul.f32 %v1532, %v647
        %v1537 = vmul.f32 %v1533, %v647
        %v1538 = vmul.f32 %v1534, %v647
        %v1539 = vmul.f32 %v1535, %v647
        %v1540 = vadd.f32 %v1528, %v1536
        %v1541 = vadd.f32 %v1529, %v1537
        %v1542 = vadd.f32 %v1530, %v1538
        %v1543 = vadd.f32 %v1531, %v1539
        %v1544 = vmul.f32 %v1540, %v657
        %v1545 = vmul.f32 %v1541, %v657
        %v1546 = vmul.f32 %v1542, %v657
        %v1547 = vmul.f32 %v1543, %v657
        %v1548 = vadd.f32 %v1544, %v664
        %v1549 = vadd.f32 %v1545, %v664
        %v1550 = vadd.f32 %v1546, %v664
        %v1551 = vadd.f32 %v1547, %v664
        %v1552 = vmax.f32 %v1548, 0.0
        %v1553 = vmax.f32 %v1549, 0.0
        %v1554 = vmax.f32 %v1550, 0.0
        %v1555 = vmax.f32 %v1551, 0.0
        %v1556 = vmax.f32 %v1552, %v1554
        %v1557 = vmax.f32 %v1553, %v1555
        %1558 = vst [vmem:[#allocation2 + $0x70] sm:$0xff] %v1556
        %1559 = vst [vmem:[#allocation2 + $0x78] sm:$0xff] %v1557
        %v1560 = vld [vmem:[#allocation2] ss:$2 sm:$0xff]
        %s1561 = scalar_lea.vmem [#allocation2], 16
        %v1562 = vld [vmem:[%s1561] ss:$2 sm:$0xff]
        %s1563 = scalar_lea.vmem [#allocation2], 32
        %v1564 = vld [vmem:[%s1563] ss:$2 sm:$0xff]
        %s1565 = scalar_lea.vmem [#allocation2], 48
        %v1566 = vld [vmem:[%s1565] ss:$2 sm:$0xff]
        %s1567 = scalar_lea.vmem [#allocation2], 64
        %v1568 = vld [vmem:[%s1567] ss:$2 sm:$0xff]
        %s1569 = scalar_lea.vmem [#allocation2], 80
        %v1570 = vld [vmem:[%s1569] ss:$2 sm:$0xff]
        %s1571 = scalar_lea.vmem [#allocation2], 96
        %v1572 = vld [vmem:[%s1571] ss:$2 sm:$0xff]
        %s1573 = scalar_lea.vmem [#allocation2], 112
        %v1574 = vld [vmem:[%s1573] ss:$2 sm:$0xff]
        %s1575 = scalar_lea.vmem [#allocation2], 1
        %v1576 = vld [vmem:[%s1575] ss:$2 sm:$0xff]
        %s1577 = scalar_lea.vmem [#allocation2], 17
        %v1578 = vld [vmem:[%s1577] ss:$2 sm:$0xff]
        %s1579 = scalar_lea.vmem [#allocation2], 33
        %v1580 = vld [vmem:[%s1579] ss:$2 sm:$0xff]
        %s1581 = scalar_lea.vmem [#allocation2], 49
        %v1582 = vld [vmem:[%s1581] ss:$2 sm:$0xff]
        %s1583 = scalar_lea.vmem [#allocation2], 65
        %v1584 = vld [vmem:[%s1583] ss:$2 sm:$0xff]
        %s1585 = scalar_lea.vmem [#allocation2], 81
        %v1586 = vld [vmem:[%s1585] ss:$2 sm:$0xff]
        %s1587 = scalar_lea.vmem [#allocation2], 97
        %v1588 = vld [vmem:[%s1587] ss:$2 sm:$0xff]
        %s1589 = scalar_lea.vmem [#allocation2], 113
        %v1590 = vld [vmem:[%s1589] ss:$2 sm:$0xff]
        %v1591 = vmax.f32 %v1560, %v1576
        %v1592 = vmax.f32 %v1562, %v1578
        %v1593 = vmax.f32 %v1564, %v1580
        %v1594 = vmax.f32 %v1566, %v1582
        %v1595 = vmax.f32 %v1568, %v1584
        %v1596 = vmax.f32 %v1570, %v1586
        %v1597 = vmax.f32 %v1572, %v1588
        %v1598 = vmax.f32 %v1574, %v1590
        %s1599 = scalar_lea.vmem [#allocation3], 16
        %1600 = vst [vmem:[%s1599 + $0x1] sm:$0xff] %v1591
        %1601 = vst [vmem:[%s1599 + $0x11] sm:$0xff] %v1592
        %1602 = vst [vmem:[%s1599 + $0x21] sm:$0xff] %v1593
        %1603 = vst [vmem:[%s1599 + $0x31] sm:$0xff] %v1594
        %1604 = vst [vmem:[%s1599 + $0x41] sm:$0xff] %v1595
        %1605 = vst [vmem:[%s1599 + $0x51] sm:$0xff] %v1596
        %1606 = vst [vmem:[%s1599 + $0x61] sm:$0xff] %v1597
        %1607 = vst [vmem:[%s1599 + $0x71] sm:$0xff] %v1598
        %v1608 = vld [vmem:[#allocation3] sm:$0xff]
        %v1609 = vld [vmem:[#allocation3 + $0x1] sm:$0xff]
        %v1610 = vld [vmem:[#allocation3 + $0x2] sm:$0xff]
        %v1611 = vpack.c.bf16 %v1609, %v1608
        %v1612 = vpack.c.bf16 %v1610, %v1610
        %1613 = vst [vmem:[#allocation4] sm:$0xff] %v1611
        %1614 = vst [vmem:[#allocation4 + $0x8] sm:$0xf] %v1612
        %v1615 = vld [vmem:[%s1599] sm:$0xff]
        %v1616 = vld [vmem:[%s1599 + $0x1] sm:$0xff]
        %v1617 = vld [vmem:[%s1599 + $0x2] sm:$0xff]
        %v1618 = vpack.c.bf16 %v1616, %v1615
        %v1619 = vpack.c.bf16 %v1617, %v1617
        %1620 = vst [vmem:[#allocation4 + $0xc] sm:$0xff] %v1618
        %1621 = vst [vmem:[#allocation4 + $0x14] sm:$0xf] %v1619
        %s1622 = scalar_lea.vmem [#allocation3], 32
        %v1623 = vld [vmem:[%s1622] sm:$0xff]
        %v1624 = vld [vmem:[%s1622 + $0x1] sm:$0xff]
        %v1625 = vld [vmem:[%s1622 + $0x2] sm:$0xff]
        %v1626 = vpack.c.bf16 %v1624, %v1623
        %v1627 = vpack.c.bf16 %v1625, %v1625
        %1628 = vst [vmem:[#allocation4 + $0x18] sm:$0xff] %v1626
        %1629 = vst [vmem:[#allocation4 + $0x20] sm:$0xf] %v1627
        %s1630 = scalar_lea.vmem [#allocation3], 48
        %v1631 = vld [vmem:[%s1630] sm:$0xff]
        %v1632 = vld [vmem:[%s1630 + $0x1] sm:$0xff]
        %v1633 = vld [vmem:[%s1630 + $0x2] sm:$0xff]
        %v1634 = vpack.c.bf16 %v1632, %v1631
        %v1635 = vpack.c.bf16 %v1633, %v1633
        %1636 = vst [vmem:[#allocation4 + $0x24] sm:$0xff] %v1634
        %1637 = vst [vmem:[#allocation4 + $0x2c] sm:$0xf] %v1635
        %s1638 = scalar_lea.vmem [#allocation3], 64
        %v1639 = vld [vmem:[%s1638] sm:$0xff]
        %v1640 = vld [vmem:[%s1638 + $0x1] sm:$0xff]
        %v1641 = vld [vmem:[%s1638 + $0x2] sm:$0xff]
        %v1642 = vpack.c.bf16 %v1640, %v1639
        %v1643 = vpack.c.bf16 %v1641, %v1641
        %1644 = vst [vmem:[#allocation4 + $0x30] sm:$0xff] %v1642
        %1645 = vst [vmem:[#allocation4 + $0x38] sm:$0xf] %v1643
        %s1646 = scalar_lea.vmem [#allocation3], 80
        %v1647 = vld [vmem:[%s1646] sm:$0xff]
        %v1648 = vld [vmem:[%s1646 + $0x1] sm:$0xff]
        %v1649 = vld [vmem:[%s1646 + $0x2] sm:$0xff]
        %v1650 = vpack.c.bf16 %v1648, %v1647
        %v1651 = vpack.c.bf16 %v1649, %v1649
        %1652 = vst [vmem:[#allocation4 + $0x3c] sm:$0xff] %v1650
        %1653 = vst [vmem:[#allocation4 + $0x44] sm:$0xf] %v1651
        %s1654 = scalar_lea.vmem [#allocation3], 96
        %v1655 = vld [vmem:[%s1654] sm:$0xff]
        %v1656 = vld [vmem:[%s1654 + $0x1] sm:$0xff]
        %v1657 = vld [vmem:[%s1654 + $0x2] sm:$0xff]
        %v1658 = vpack.c.bf16 %v1656, %v1655
        %v1659 = vpack.c.bf16 %v1657, %v1657
        %1660 = vst [vmem:[#allocation4 + $0x48] sm:$0xff] %v1658
        %1661 = vst [vmem:[#allocation4 + $0x50] sm:$0xf] %v1659
        %s1662 = scalar_lea.vmem [#allocation3], 112
        %v1663 = vld [vmem:[%s1662] sm:$0xff]
        %v1664 = vld [vmem:[%s1662 + $0x1] sm:$0xff]
        %v1665 = vld [vmem:[%s1662 + $0x2] sm:$0xff]
        %v1666 = vpack.c.bf16 %v1664, %v1663
        %v1667 = vpack.c.bf16 %v1665, %v1665
        %1668 = vst [vmem:[#allocation4 + $0x54] sm:$0xff] %v1666
        %1669 = vst [vmem:[#allocation4 + $0x5c] sm:$0xf] %v1667
        %s1670 = scalar_lea.vmem [#allocation3], 128
        %v1671 = vld [vmem:[%s1670] sm:$0xff]
        %v1672 = vld [vmem:[%s1670 + $0x1] sm:$0xff]
        %v1673 = vld [vmem:[%s1670 + $0x2] sm:$0xff]
        %v1674 = vpack.c.bf16 %v1672, %v1671
        %v1675 = vpack.c.bf16 %v1673, %v1673
        %1676 = vst [vmem:[#allocation4 + $0x60] sm:$0xff] %v1674
        %1677 = vst [vmem:[#allocation4 + $0x68] sm:$0xf] %v1675
        %s1678 = scalar_lea.vmem [#allocation3], 144
        %v1679 = vld [vmem:[%s1678] sm:$0xff]
        %v1680 = vld [vmem:[%s1678 + $0x1] sm:$0xff]
        %v1681 = vld [vmem:[%s1678 + $0x2] sm:$0xff]
        %v1682 = vpack.c.bf16 %v1680, %v1679
        %v1683 = vpack.c.bf16 %v1681, %v1681
        %1684 = vst [vmem:[#allocation4 + $0x6c] sm:$0xff] %v1682
        %1685 = vst [vmem:[#allocation4 + $0x74] sm:$0xf] %v1683
        %v1686 = vld [vmem:[#allocation4] sm:$0xff]
        %v1687 = vld [vmem:[#allocation4 + $0x8] sm:$0xf]
        %v1688 = vld [vmem:[#allocation4 + $0xc] sm:$0xff]
        %v1689 = vld [vmem:[#allocation4 + $0x14] sm:$0xf]
        %v1690 = vld [vmem:[#allocation4 + $0x18] sm:$0xff]
        %v1691 = vld [vmem:[#allocation4 + $0x20] sm:$0xf]
        %v1692 = vld [vmem:[#allocation4 + $0x24] sm:$0xff]
        %v1693 = vld [vmem:[#allocation4 + $0x2c] sm:$0xf]
        %v1694 = vld [vmem:[#allocation4 + $0x30] sm:$0xff]
        %v1695 = vld [vmem:[#allocation4 + $0x38] sm:$0xf]
        %v1696 = vld [vmem:[#allocation4 + $0x3c] sm:$0xff]
        %v1697 = vld [vmem:[#allocation4 + $0x44] sm:$0xf]
        %v1698 = vld [vmem:[#allocation4 + $0x48] sm:$0xff]
        %v1699 = vld [vmem:[#allocation4 + $0x50] sm:$0xf]
        %v1700 = vld [vmem:[#allocation4 + $0x54] sm:$0xff]
        %v1701 = vld [vmem:[#allocation4 + $0x5c] sm:$0xf]
        %v1702 = vld [vmem:[%s4] sm:$0xf]
        %v1703 = vld [vmem:[%s4 + $0x4] sm:$0xf]
        %v1704 = vld [vmem:[%s4 + $0x8] sm:$0xf]
        %v1705 = vld [vmem:[%s4 + $0xc] sm:$0xf]
        %v1706 = vld [vmem:[%s4 + $0x10] sm:$0xf]
        %v1707 = vld [vmem:[%s4 + $0x14] sm:$0xf]
        %v1708 = vld [vmem:[%s4 + $0x18] sm:$0xf]
        %v1709 = vld [vmem:[%s4 + $0x1c] sm:$0xf]
        %v1710 = vld [vmem:[%s4 + $0x20] sm:$0xf]
        %v1711 = vld [vmem:[%s4 + $0x24] sm:$0xf]
        %v1712 = vld [vmem:[%s4 + $0x28] sm:$0xf]
        %v1713 = vld [vmem:[%s4 + $0x2c] sm:$0xf]
        %v1714 = vld [vmem:[%s4 + $0x30] sm:$0xf]
        %v1715 = vld [vmem:[%s4 + $0x34] sm:$0xf]
        %v1716 = vld [vmem:[%s4 + $0x38] sm:$0xf]
        %v1717 = vld [vmem:[%s4 + $0x3c] sm:$0xf]
        %v1718 = vld [vmem:[%s4 + $0x40] sm:$0xf]
        %v1719 = vld [vmem:[%s4 + $0x44] sm:$0xf]
        %v1720 = vld [vmem:[%s4 + $0x48] sm:$0xf]
        %v1721 = vld [vmem:[%s4 + $0x4c] sm:$0xf]
        %v1722 = vld [vmem:[%s4 + $0x50] sm:$0xf]
        %v1723 = vld [vmem:[%s4 + $0x54] sm:$0xf]
        %v1724 = vld [vmem:[%s4 + $0x58] sm:$0xf]
        %v1725 = vld [vmem:[%s4 + $0x5c] sm:$0xf]
        %v1726 = vld [vmem:[%s4 + $0x60] sm:$0xf]
        %v1727 = vld [vmem:[%s4 + $0x64] sm:$0xf]
        %v1728 = vld [vmem:[%s4 + $0x68] sm:$0xf]
        %v1729 = vld [vmem:[%s4 + $0x6c] sm:$0xf]
        %v1730 = vld [vmem:[%s4 + $0x70] sm:$0xf]
        %v1731 = vld [vmem:[%s4 + $0x74] sm:$0xf]
        %v1732 = vld [vmem:[%s4 + $0x78] sm:$0xf]
        %v1733 = vld [vmem:[%s4 + $0x7c] sm:$0xf]
        %v1734 = vld [vmem:[%s4 + $0x80] sm:$0xf]
        %v1735 = vld [vmem:[%s4 + $0x84] sm:$0xf]
        %v1736 = vld [vmem:[%s4 + $0x88] sm:$0xf]
        %v1737 = vld [vmem:[%s4 + $0x8c] sm:$0xf]
        %v1738 = vld [vmem:[%s4 + $0x90] sm:$0xf]
        %v1739 = vld [vmem:[%s4 + $0x94] sm:$0xf]
        %v1740 = vld [vmem:[%s4 + $0x98] sm:$0xf]
        %v1741 = vld [vmem:[%s4 + $0x9c] sm:$0xf]
        %v1742 = vld [vmem:[%s4 + $0xa0] sm:$0xf]
        %v1743 = vld [vmem:[%s4 + $0xa4] sm:$0xf]
        %v1744 = vld [vmem:[%s4 + $0xa8] sm:$0xf]
        %v1745 = vld [vmem:[%s4 + $0xac] sm:$0xf]
        %v1746 = vld [vmem:[%s4 + $0xb0] sm:$0xf]
        %v1747 = vld [vmem:[%s4 + $0xb4] sm:$0xf]
        %v1748 = vld [vmem:[%s4 + $0xb8] sm:$0xf]
        %v1749 = vld [vmem:[%s4 + $0xbc] sm:$0xf]
        %v1750 = vld [vmem:[#allocation4 + $0x60] sm:$0xff]
        %v1751 = vld [vmem:[#allocation4 + $0x68] sm:$0xf]
        %v1752 = vld [vmem:[%s4 + $0xc0] sm:$0xf]
        %v1753 = vld [vmem:[%s4 + $0xc4] sm:$0xf]
        %v1754 = vld [vmem:[%s4 + $0xc8] sm:$0xf]
        %v1755 = vld [vmem:[%s4 + $0xcc] sm:$0xf]
        %v1756 = vld [vmem:[%s4 + $0xd0] sm:$0xf]
        %v1757 = vld [vmem:[%s4 + $0xd4] sm:$0xf]
        %v1758 = vld [vmem:[%s4 + $0xd8] sm:$0xf]
        %v1759 = vld [vmem:[%s4 + $0xdc] sm:$0xf]
        %v1760 = vld [vmem:[%s4 + $0xe0] sm:$0xf]
        %v1761 = vld [vmem:[%s4 + $0xe4] sm:$0xf]
        %v1762 = vld [vmem:[%s4 + $0xe8] sm:$0xf]
        %v1763 = vld [vmem:[%s4 + $0xec] sm:$0xf]
        %v1764 = vld [vmem:[%s4 + $0xf0] sm:$0xf]
        %v1765 = vld [vmem:[%s4 + $0xf4] sm:$0xf]
        %v1766 = vld [vmem:[%s4 + $0xf8] sm:$0xf]
        %v1767 = vld [vmem:[%s4 + $0xfc] sm:$0xf]
        %v1768 = vld [vmem:[%s4 + $0x100] sm:$0xf]
        %v1769 = vld [vmem:[%s4 + $0x104] sm:$0xf]
        %v1770 = vld [vmem:[%s4 + $0x108] sm:$0xf]
        %v1771 = vld [vmem:[%s4 + $0x10c] sm:$0xf]
        %v1772 = vld [vmem:[%s4 + $0x110] sm:$0xf]
        %v1773 = vld [vmem:[%s4 + $0x114] sm:$0xf]
        %v1774 = vld [vmem:[%s4 + $0x118] sm:$0xf]
        %v1775 = vld [vmem:[%s4 + $0x11c] sm:$0xf]
        %v1776 = vld [vmem:[%s4 + $0x120] sm:$0xf]
        %v1777 = vld [vmem:[%s4 + $0x124] sm:$0xf]
        %v1778 = vld [vmem:[%s4 + $0x128] sm:$0xf]
        %v1779 = vld [vmem:[%s4 + $0x12c] sm:$0xf]
        %v1780 = vld [vmem:[%s4 + $0x130] sm:$0xf]
        %v1781 = vld [vmem:[%s4 + $0x134] sm:$0xf]
        %v1782 = vld [vmem:[%s4 + $0x138] sm:$0xf]
        %v1783 = vld [vmem:[%s4 + $0x13c] sm:$0xf]
        %v1784 = vld [vmem:[%s4 + $0x140] sm:$0xf]
        %v1785 = vld [vmem:[%s4 + $0x144] sm:$0xf]
        %v1786 = vld [vmem:[%s4 + $0x148] sm:$0xf]
        %v1787 = vld [vmem:[%s4 + $0x14c] sm:$0xf]
        %v1788 = vld [vmem:[%s4 + $0x150] sm:$0xf]
        %v1789 = vld [vmem:[%s4 + $0x154] sm:$0xf]
        %v1790 = vld [vmem:[%s4 + $0x158] sm:$0xf]
        %v1791 = vld [vmem:[%s4 + $0x15c] sm:$0xf]
        %v1792 = vld [vmem:[%s4 + $0x160] sm:$0xf]
        %v1793 = vld [vmem:[%s4 + $0x164] sm:$0xf]
        %v1794 = vld [vmem:[%s4 + $0x168] sm:$0xf]
        %v1795 = vld [vmem:[%s4 + $0x16c] sm:$0xf]
        %v1796 = vld [vmem:[%s4 + $0x170] sm:$0xf]
        %v1797 = vld [vmem:[%s4 + $0x174] sm:$0xf]
        %v1798 = vld [vmem:[%s4 + $0x178] sm:$0xf]
        %v1799 = vld [vmem:[%s4 + $0x17c] sm:$0xf]
        %v1816 = vunpack.c.l.b16 %v1688
        %v1817 = vunpack.c.h.b16 %v1688
        %v1818 = vunpack.c.l.b16 %v1689
        %v1819 = vunpack.c.l.b16 %v1690
        %v1820 = vunpack.c.h.b16 %v1690
        %v1821 = vunpack.c.l.b16 %v1691
        %v1822 = vunpack.c.l.b16 %v1692
        %v1823 = vunpack.c.h.b16 %v1692
        %v1824 = vunpack.c.l.b16 %v1693
        %v1825 = vunpack.c.l.b16 %v1694
        %v1826 = vunpack.c.h.b16 %v1694
        %v1827 = vunpack.c.l.b16 %v1695
        %v1828 = vunpack.c.l.b16 %v1696
        %v1829 = vunpack.c.h.b16 %v1696
        %v1830 = vunpack.c.l.b16 %v1697
        %v1831 = vunpack.c.l.b16 %v1698
        %v1832 = vunpack.c.h.b16 %v1698
        %v1833 = vunpack.c.l.b16 %v1699
        %v1834 = vunpack.c.l.b16 %v1700
        %v1835 = vunpack.c.h.b16 %v1700
        %v1836 = vunpack.c.l.b16 %v1701
        %v1837 = vunpack.c.l.b16 %v1750
        %v1838 = vunpack.c.h.b16 %v1750
        %v1839 = vunpack.c.l.b16 %v1751
        %v1840 = vpack.c.b16 %v1819, %v1816
        %v1841 = vpack.c.b16 %v1820, %v1817
        %v1842 = vpack.c.b16 %v1821, %v1818
        %v1843 = vpack.c.b16 %v1825, %v1822
        %v1844 = vpack.c.b16 %v1826, %v1823
        %v1845 = vpack.c.b16 %v1827, %v1824
        %v1846 = vpack.c.b16 %v1831, %v1828
        %v1847 = vpack.c.b16 %v1832, %v1829
        %v1848 = vpack.c.b16 %v1833, %v1830
        %v1849 = vpack.c.b16 %v1837, %v1834
        %v1850 = vpack.c.b16 %v1838, %v1835
        %v1851 = vpack.c.b16 %v1839, %v1836
        %v1912 = vunpack.c.l.b16 %v1752
        %v1913 = vunpack.c.l.b16 %v1753
        %v1914 = vunpack.c.l.b16 %v1754
        %v1915 = vunpack.c.l.b16 %v1755
        %v1916 = vunpack.c.l.b16 %v1756
        %v1917 = vunpack.c.l.b16 %v1757
        %v1918 = vunpack.c.l.b16 %v1758
        %v1919 = vunpack.c.l.b16 %v1759
        %v1920 = vunpack.c.l.b16 %v1760
        %v1921 = vunpack.c.l.b16 %v1761
        %v1922 = vunpack.c.l.b16 %v1762
        %v1923 = vunpack.c.l.b16 %v1763
        %v1924 = vunpack.c.l.b16 %v1764
        %v1925 = vunpack.c.l.b16 %v1765
        %v1926 = vunpack.c.l.b16 %v1766
        %v1927 = vunpack.c.l.b16 %v1767
        %v1928 = vunpack.c.l.b16 %v1768
        %v1929 = vunpack.c.l.b16 %v1769
        %v1930 = vunpack.c.l.b16 %v1770
        %v1931 = vunpack.c.l.b16 %v1771
        %v1932 = vunpack.c.l.b16 %v1772
        %v1933 = vunpack.c.l.b16 %v1773
        %v1934 = vunpack.c.l.b16 %v1774
        %v1935 = vunpack.c.l.b16 %v1775
        %v1936 = vunpack.c.l.b16 %v1776
        %v1937 = vunpack.c.l.b16 %v1777
        %v1938 = vunpack.c.l.b16 %v1778
        %v1939 = vunpack.c.l.b16 %v1779
        %v1940 = vunpack.c.l.b16 %v1780
        %v1941 = vunpack.c.l.b16 %v1781
        %v1942 = vunpack.c.l.b16 %v1782
        %v1943 = vunpack.c.l.b16 %v1783
        %v1944 = vunpack.c.l.b16 %v1784
        %v1945 = vunpack.c.l.b16 %v1785
        %v1946 = vunpack.c.l.b16 %v1786
        %v1947 = vunpack.c.l.b16 %v1787
        %v1948 = vunpack.c.l.b16 %v1788
        %v1949 = vunpack.c.l.b16 %v1789
        %v1950 = vunpack.c.l.b16 %v1790
        %v1951 = vunpack.c.l.b16 %v1791
        %v1952 = vunpack.c.l.b16 %v1792
        %v1953 = vunpack.c.l.b16 %v1793
        %v1954 = vunpack.c.l.b16 %v1794
        %v1955 = vunpack.c.l.b16 %v1795
        %v1956 = vunpack.c.l.b16 %v1796
        %v1957 = vunpack.c.l.b16 %v1797
        %v1958 = vunpack.c.l.b16 %v1798
        %v1959 = vunpack.c.l.b16 %v1799
        %v1960 = vpack.c.b16 %v1913, %v1912
        %v1961 = vpack.c.b16 %v1915, %v1914
        %v1962 = vpack.c.b16 %v1917, %v1916
        %v1963 = vpack.c.b16 %v1919, %v1918
        %v1964 = vpack.c.b16 %v1921, %v1920
        %v1965 = vpack.c.b16 %v1923, %v1922
        %v1966 = vpack.c.b16 %v1925, %v1924
        %v1967 = vpack.c.b16 %v1927, %v1926
        %v1968 = vpack.c.b16 %v1929, %v1928
        %v1969 = vpack.c.b16 %v1931, %v1930
        %v1970 = vpack.c.b16 %v1933, %v1932
        %v1971 = vpack.c.b16 %v1935, %v1934
        %v1972 = vpack.c.b16 %v1937, %v1936
        %v1973 = vpack.c.b16 %v1939, %v1938
        %v1974 = vpack.c.b16 %v1941, %v1940
        %v1975 = vpack.c.b16 %v1943, %v1942
        %v1976 = vpack.c.b16 %v1945, %v1944
        %v1977 = vpack.c.b16 %v1947, %v1946
        %v1978 = vpack.c.b16 %v1949, %v1948
        %v1979 = vpack.c.b16 %v1951, %v1950
        %v1980 = vpack.c.b16 %v1953, %v1952
        %v1981 = vpack.c.b16 %v1955, %v1954
        %v1982 = vpack.c.b16 %v1957, %v1956
        %v1983 = vpack.c.b16 %v1959, %v1958
        %2008 = vmatpush.bf16.msra.mxu0 %v1967
        %2009 = vmatpush.bf16.msra.mxu0 %v1966
        %2010 = vmatpush.bf16.msra.mxu0 %v1965
        %2011 = vmatpush.bf16.msra.mxu0 %v1964
        %2012 = vmatpush.bf16.msra.mxu0 %v1963
        %2013 = vmatpush.bf16.msra.mxu0 %v1962
        %2014 = vmatpush.bf16.msra.mxu0 %v1961
        %2015 = vmatpush.bf16.msra.mxu0 %v1960
        %2016 = vmatmul.bf16.gmra.mxu0 %v1840
        %v2017 = vpop.f32.mrf.mxu0
        %v2018 = vadd.f32 0.0, %v2017
        %v2019 = vpop.f32.mrf.mxu0
        %v2020 = vadd.f32 0.0, %v2019
        %2021 = vmatmul.bf16.gmra.mxu0 %v1843
        %v2022 = vpop.f32.mrf.mxu0
        %v2023 = vadd.f32 0.0, %v2022
        %v2024 = vpop.f32.mrf.mxu0
        %v2025 = vadd.f32 0.0, %v2024
        %2026 = vmatmul.bf16.gmra.mxu0 %v1846
        %v2027 = vpop.f32.mrf.mxu0
        %v2028 = vadd.f32 0.0, %v2027
        %v2029 = vpop.f32.mrf.mxu0
        %v2030 = vadd.f32 0.0, %v2029
        %2031 = vmatmul.bf16.gmra.mxu0 %v1849
        %v2032 = vpop.f32.mrf.mxu0
        %v2033 = vadd.f32 0.0, %v2032
        %v2034 = vpop.f32.mrf.mxu0
        %v2035 = vadd.f32 0.0, %v2034
        %2036 = vdwg.mxu0
        %2037 = vmatpush.bf16.msra.mxu0 %v1975
        %2038 = vmatpush.bf16.msra.mxu0 %v1974
        %2039 = vmatpush.bf16.msra.mxu0 %v1973
        %2040 = vmatpush.bf16.msra.mxu0 %v1972
        %2041 = vmatpush.bf16.msra.mxu0 %v1971
        %2042 = vmatpush.bf16.msra.mxu0 %v1970
        %2043 = vmatpush.bf16.msra.mxu0 %v1969
        %2044 = vmatpush.bf16.msra.mxu0 %v1968
        %2045 = vmatmul.bf16.gmra.mxu0 %v1841
        %v2046 = vpop.f32.mrf.mxu0
        %v2047 = vadd.f32 %v2018, %v2046
        %v2048 = vpop.f32.mrf.mxu0
        %v2049 = vadd.f32 %v2020, %v2048
        %2050 = vmatmul.bf16.gmra.mxu0 %v1844
        %v2051 = vpop.f32.mrf.mxu0
        %v2052 = vadd.f32 %v2023, %v2051
        %v2053 = vpop.f32.mrf.mxu0
        %v2054 = vadd.f32 %v2025, %v2053
        %2055 = vmatmul.bf16.gmra.mxu0 %v1847
        %v2056 = vpop.f32.mrf.mxu0
        %v2057 = vadd.f32 %v2028, %v2056
        %v2058 = vpop.f32.mrf.mxu0
        %v2059 = vadd.f32 %v2030, %v2058
        %2060 = vmatmul.bf16.gmra.mxu0 %v1850
        %v2061 = vpop.f32.mrf.mxu0
        %v2062 = vadd.f32 %v2033, %v2061
        %v2063 = vpop.f32.mrf.mxu0
        %v2064 = vadd.f32 %v2035, %v2063
        %2065 = vdwg.mxu0
        %2066 = vmatpush.bf16.msra.mxu0 %v1983
        %2067 = vmatpush.bf16.msra.mxu0 %v1982
        %2068 = vmatpush.bf16.msra.mxu0 %v1981
        %2069 = vmatpush.bf16.msra.mxu0 %v1980
        %2070 = vmatpush.bf16.msra.mxu0 %v1979
        %2071 = vmatpush.bf16.msra.mxu0 %v1978
        %2072 = vmatpush.bf16.msra.mxu0 %v1977
        %2073 = vmatpush.bf16.msra.mxu0 %v1976
        %2074 = vmatmul.bf16.gmra.mxu0 %v1842
        %v2075 = vpop.f32.mrf.mxu0
        %v2076 = vadd.f32 %v2047, %v2075
        %v2077 = vpop.f32.mrf.mxu0
        %v2078 = vadd.f32 %v2049, %v2077
        %2079 = vmatmul.bf16.gmra.mxu0 %v1845
        %v2080 = vpop.f32.mrf.mxu0
        %v2081 = vadd.f32 %v2052, %v2080
        %v2082 = vpop.f32.mrf.mxu0
        %v2083 = vadd.f32 %v2054, %v2082
        %2084 = vmatmul.bf16.gmra.mxu0 %v1848
        %v2085 = vpop.f32.mrf.mxu0
        %v2086 = vadd.f32 %v2057, %v2085
        %v2087 = vpop.f32.mrf.mxu0
        %v2088 = vadd.f32 %v2059, %v2087
        %2089 = vmatmul.bf16.gmra.mxu0 %v1851
        %v2090 = vpop.f32.mrf.mxu0
        %v2091 = vadd.f32 %v2062, %v2090
        %v2092 = vpop.f32.mrf.mxu0
        %v2093 = vadd.f32 %v2064, %v2092
        %2094 = vdwg.mxu0
        %v2097 = vunpack.c.l.b16 %v1686
        %v2098 = vunpack.c.h.b16 %v1686
        %v2099 = vunpack.c.l.b16 %v1687
        %v2100 = vpack.c.b16 %v1816, %v2097
        %v2101 = vpack.c.b16 %v1817, %v2098
        %v2102 = vpack.c.b16 %v1818, %v2099
        %v2103 = vpack.c.b16 %v1822, %v1819
        %v2104 = vpack.c.b16 %v1823, %v1820
        %v2105 = vpack.c.b16 %v1824, %v1821
        %v2106 = vpack.c.b16 %v1828, %v1825
        %v2107 = vpack.c.b16 %v1829, %v1826
        %v2108 = vpack.c.b16 %v1830, %v1827
        %v2109 = vpack.c.b16 %v1834, %v1831
        %v2110 = vpack.c.b16 %v1835, %v1832
        %v2111 = vpack.c.b16 %v1836, %v1833
        %v2172 = vunpack.c.l.b16 %v1702
        %v2173 = vunpack.c.l.b16 %v1703
        %v2174 = vunpack.c.l.b16 %v1704
        %v2175 = vunpack.c.l.b16 %v1705
        %v2176 = vunpack.c.l.b16 %v1706
        %v2177 = vunpack.c.l.b16 %v1707
        %v2178 = vunpack.c.l.b16 %v1708
        %v2179 = vunpack.c.l.b16 %v1709
        %v2180 = vunpack.c.l.b16 %v1710
        %v2181 = vunpack.c.l.b16 %v1711
        %v2182 = vunpack.c.l.b16 %v1712
        %v2183 = vunpack.c.l.b16 %v1713
        %v2184 = vunpack.c.l.b16 %v1714
        %v2185 = vunpack.c.l.b16 %v1715
        %v2186 = vunpack.c.l.b16 %v1716
        %v2187 = vunpack.c.l.b16 %v1717
        %v2188 = vunpack.c.l.b16 %v1718
        %v2189 = vunpack.c.l.b16 %v1719
        %v2190 = vunpack.c.l.b16 %v1720
        %v2191 = vunpack.c.l.b16 %v1721
        %v2192 = vunpack.c.l.b16 %v1722
        %v2193 = vunpack.c.l.b16 %v1723
        %v2194 = vunpack.c.l.b16 %v1724
        %v2195 = vunpack.c.l.b16 %v1725
        %v2196 = vunpack.c.l.b16 %v1726
        %v2197 = vunpack.c.l.b16 %v1727
        %v2198 = vunpack.c.l.b16 %v1728
        %v2199 = vunpack.c.l.b16 %v1729
        %v2200 = vunpack.c.l.b16 %v1730
        %v2201 = vunpack.c.l.b16 %v1731
        %v2202 = vunpack.c.l.b16 %v1732
        %v2203 = vunpack.c.l.b16 %v1733
        %v2204 = vunpack.c.l.b16 %v1734
        %v2205 = vunpack.c.l.b16 %v1735
        %v2206 = vunpack.c.l.b16 %v1736
        %v2207 = vunpack.c.l.b16 %v1737
        %v2208 = vunpack.c.l.b16 %v1738
        %v2209 = vunpack.c.l.b16 %v1739
        %v2210 = vunpack.c.l.b16 %v1740
        %v2211 = vunpack.c.l.b16 %v1741
        %v2212 = vunpack.c.l.b16 %v1742
        %v2213 = vunpack.c.l.b16 %v1743
        %v2214 = vunpack.c.l.b16 %v1744
        %v2215 = vunpack.c.l.b16 %v1745
        %v2216 = vunpack.c.l.b16 %v1746
        %v2217 = vunpack.c.l.b16 %v1747
        %v2218 = vunpack.c.l.b16 %v1748
        %v2219 = vunpack.c.l.b16 %v1749
        %v2220 = vpack.c.b16 %v2173, %v2172
        %v2221 = vpack.c.b16 %v2175, %v2174
        %v2222 = vpack.c.b16 %v2177, %v2176
        %v2223 = vpack.c.b16 %v2179, %v2178
        %v2224 = vpack.c.b16 %v2181, %v2180
        %v2225 = vpack.c.b16 %v2183, %v2182
        %v2226 = vpack.c.b16 %v2185, %v2184
        %v2227 = vpack.c.b16 %v2187, %v2186
        %v2228 = vpack.c.b16 %v2189, %v2188
        %v2229 = vpack.c.b16 %v2191, %v2190
        %v2230 = vpack.c.b16 %v2193, %v2192
        %v2231 = vpack.c.b16 %v2195, %v2194
        %v2232 = vpack.c.b16 %v2197, %v2196
        %v2233 = vpack.c.b16 %v2199, %v2198
        %v2234 = vpack.c.b16 %v2201, %v2200
        %v2235 = vpack.c.b16 %v2203, %v2202
        %v2236 = vpack.c.b16 %v2205, %v2204
        %v2237 = vpack.c.b16 %v2207, %v2206
        %v2238 = vpack.c.b16 %v2209, %v2208
        %v2239 = vpack.c.b16 %v2211, %v2210
        %v2240 = vpack.c.b16 %v2213, %v2212
        %v2241 = vpack.c.b16 %v2215, %v2214
        %v2242 = vpack.c.b16 %v2217, %v2216
        %v2243 = vpack.c.b16 %v2219, %v2218
        %2268 = vmatpush.bf16.msra.mxu0 %v2227
        %2269 = vmatpush.bf16.msra.mxu0 %v2226
        %2270 = vmatpush.bf16.msra.mxu0 %v2225
        %2271 = vmatpush.bf16.msra.mxu0 %v2224
        %2272 = vmatpush.bf16.msra.mxu0 %v2223
        %2273 = vmatpush.bf16.msra.mxu0 %v2222
        %2274 = vmatpush.bf16.msra.mxu0 %v2221
        %2275 = vmatpush.bf16.msra.mxu0 %v2220
        %2276 = vmatmul.bf16.gmra.mxu0 %v2100
        %v2277 = vpop.f32.mrf.mxu0
        %v2278 = vadd.f32 %v2076, %v2277
        %v2279 = vpop.f32.mrf.mxu0
        %v2280 = vadd.f32 %v2078, %v2279
        %2281 = vmatmul.bf16.gmra.mxu0 %v2103
        %v2282 = vpop.f32.mrf.mxu0
        %v2283 = vadd.f32 %v2081, %v2282
        %v2284 = vpop.f32.mrf.mxu0
        %v2285 = vadd.f32 %v2083, %v2284
        %2286 = vmatmul.bf16.gmra.mxu0 %v2106
        %v2287 = vpop.f32.mrf.mxu0
        %v2288 = vadd.f32 %v2086, %v2287
        %v2289 = vpop.f32.mrf.mxu0
        %v2290 = vadd.f32 %v2088, %v2289
        %2291 = vmatmul.bf16.gmra.mxu0 %v2109
        %v2292 = vpop.f32.mrf.mxu0
        %v2293 = vadd.f32 %v2091, %v2292
        %v2294 = vpop.f32.mrf.mxu0
        %v2295 = vadd.f32 %v2093, %v2294
        %2296 = vdwg.mxu0
        %2297 = vmatpush.bf16.msra.mxu0 %v2235
        %2298 = vmatpush.bf16.msra.mxu0 %v2234
        %2299 = vmatpush.bf16.msra.mxu0 %v2233
        %2300 = vmatpush.bf16.msra.mxu0 %v2232
        %2301 = vmatpush.bf16.msra.mxu0 %v2231
        %2302 = vmatpush.bf16.msra.mxu0 %v2230
        %2303 = vmatpush.bf16.msra.mxu0 %v2229
        %2304 = vmatpush.bf16.msra.mxu0 %v2228
        %2305 = vmatmul.bf16.gmra.mxu0 %v2101
        %v2306 = vpop.f32.mrf.mxu0
        %v2307 = vadd.f32 %v2278, %v2306
        %v2308 = vpop.f32.mrf.mxu0
        %v2309 = vadd.f32 %v2280, %v2308
        %2310 = vmatmul.bf16.gmra.mxu0 %v2104
        %v2311 = vpop.f32.mrf.mxu0
        %v2312 = vadd.f32 %v2283, %v2311
        %v2313 = vpop.f32.mrf.mxu0
        %v2314 = vadd.f32 %v2285, %v2313
        %2315 = vmatmul.bf16.gmra.mxu0 %v2107
        %v2316 = vpop.f32.mrf.mxu0
        %v2317 = vadd.f32 %v2288, %v2316
        %v2318 = vpop.f32.mrf.mxu0
        %v2319 = vadd.f32 %v2290, %v2318
        %2320 = vmatmul.bf16.gmra.mxu0 %v2110
        %v2321 = vpop.f32.mrf.mxu0
        %v2322 = vadd.f32 %v2293, %v2321
        %v2323 = vpop.f32.mrf.mxu0
        %v2324 = vadd.f32 %v2295, %v2323
        %2325 = vdwg.mxu0
        %2326 = vmatpush.bf16.msra.mxu0 %v2243
        %2327 = vmatpush.bf16.msra.mxu0 %v2242
        %2328 = vmatpush.bf16.msra.mxu0 %v2241
        %2329 = vmatpush.bf16.msra.mxu0 %v2240
        %2330 = vmatpush.bf16.msra.mxu0 %v2239
        %2331 = vmatpush.bf16.msra.mxu0 %v2238
        %2332 = vmatpush.bf16.msra.mxu0 %v2237
        %2333 = vmatpush.bf16.msra.mxu0 %v2236
        %2334 = vmatmul.bf16.gmra.mxu0 %v2102
        %v2335 = vpop.f32.mrf.mxu0
        %v2336 = vadd.f32 %v2307, %v2335
        %v2337 = vpop.f32.mrf.mxu0
        %v2338 = vadd.f32 %v2309, %v2337
        %2339 = vmatmul.bf16.gmra.mxu0 %v2105
        %v2340 = vpop.f32.mrf.mxu0
        %v2341 = vadd.f32 %v2312, %v2340
        %v2342 = vpop.f32.mrf.mxu0
        %v2343 = vadd.f32 %v2314, %v2342
        %2344 = vmatmul.bf16.gmra.mxu0 %v2108
        %v2345 = vpop.f32.mrf.mxu0
        %v2346 = vadd.f32 %v2317, %v2345
        %v2347 = vpop.f32.mrf.mxu0
        %v2348 = vadd.f32 %v2319, %v2347
        %2349 = vmatmul.bf16.gmra.mxu0 %v2111
        %v2350 = vpop.f32.mrf.mxu0
        %v2351 = vadd.f32 %v2322, %v2350
        %v2352 = vpop.f32.mrf.mxu0
        %v2353 = vadd.f32 %v2324, %v2352
        %2354 = vdwg.mxu0
        %v2355 = vld [vmem:[#allocation4 + $0x18] sm:$0xff]
        %v2356 = vld [vmem:[#allocation4 + $0x20] sm:$0xf]
        %v2357 = vld [vmem:[#allocation4 + $0x24] sm:$0xff]
        %v2358 = vld [vmem:[#allocation4 + $0x2c] sm:$0xf]
        %v2359 = vld [vmem:[#allocation4 + $0x30] sm:$0xff]
        %v2360 = vld [vmem:[#allocation4 + $0x38] sm:$0xf]
        %v2361 = vld [vmem:[#allocation4 + $0x3c] sm:$0xff]
        %v2362 = vld [vmem:[#allocation4 + $0x44] sm:$0xf]
        %v2363 = vld [vmem:[#allocation4 + $0x48] sm:$0xff]
        %v2364 = vld [vmem:[#allocation4 + $0x50] sm:$0xf]
        %v2365 = vld [vmem:[#allocation4 + $0x54] sm:$0xff]
        %v2366 = vld [vmem:[#allocation4 + $0x5c] sm:$0xf]
        %v2367 = vld [vmem:[#allocation4 + $0x60] sm:$0xff]
        %v2368 = vld [vmem:[#allocation4 + $0x68] sm:$0xf]
        %v2369 = vld [vmem:[#allocation4 + $0x6c] sm:$0xff]
        %v2370 = vld [vmem:[#allocation4 + $0x74] sm:$0xf]
        %v2371 = vld [vmem:[%s4 + $0x180] sm:$0xf]
        %v2372 = vld [vmem:[%s4 + $0x184] sm:$0xf]
        %v2373 = vld [vmem:[%s4 + $0x188] sm:$0xf]
        %v2374 = vld [vmem:[%s4 + $0x18c] sm:$0xf]
        %v2375 = vld [vmem:[%s4 + $0x190] sm:$0xf]
        %v2376 = vld [vmem:[%s4 + $0x194] sm:$0xf]
        %v2377 = vld [vmem:[%s4 + $0x198] sm:$0xf]
        %v2378 = vld [vmem:[%s4 + $0x19c] sm:$0xf]
        %v2379 = vld [vmem:[%s4 + $0x1a0] sm:$0xf]
        %v2380 = vld [vmem:[%s4 + $0x1a4] sm:$0xf]
        %v2381 = vld [vmem:[%s4 + $0x1a8] sm:$0xf]
        %v2382 = vld [vmem:[%s4 + $0x1ac] sm:$0xf]
        %v2383 = vld [vmem:[%s4 + $0x1b0] sm:$0xf]
        %v2384 = vld [vmem:[%s4 + $0x1b4] sm:$0xf]
        %v2385 = vld [vmem:[%s4 + $0x1b8] sm:$0xf]
        %v2386 = vld [vmem:[%s4 + $0x1bc] sm:$0xf]
        %v2387 = vld [vmem:[%s4 + $0x1c0] sm:$0xf]
        %v2388 = vld [vmem:[%s4 + $0x1c4] sm:$0xf]
        %v2389 = vld [vmem:[%s4 + $0x1c8] sm:$0xf]
        %v2390 = vld [vmem:[%s4 + $0x1cc] sm:$0xf]
        %v2391 = vld [vmem:[%s4 + $0x1d0] sm:$0xf]
        %v2392 = vld [vmem:[%s4 + $0x1d4] sm:$0xf]
        %v2393 = vld [vmem:[%s4 + $0x1d8] sm:$0xf]
        %v2394 = vld [vmem:[%s4 + $0x1dc] sm:$0xf]
        %v2395 = vld [vmem:[%s4 + $0x1e0] sm:$0xf]
        %v2396 = vld [vmem:[%s4 + $0x1e4] sm:$0xf]
        %v2397 = vld [vmem:[%s4 + $0x1e8] sm:$0xf]
        %v2398 = vld [vmem:[%s4 + $0x1ec] sm:$0xf]
        %v2399 = vld [vmem:[%s4 + $0x1f0] sm:$0xf]
        %v2400 = vld [vmem:[%s4 + $0x1f4] sm:$0xf]
        %v2401 = vld [vmem:[%s4 + $0x1f8] sm:$0xf]
        %v2402 = vld [vmem:[%s4 + $0x1fc] sm:$0xf]
        %v2403 = vld [vmem:[%s4 + $0x200] sm:$0xf]
        %v2404 = vld [vmem:[%s4 + $0x204] sm:$0xf]
        %v2405 = vld [vmem:[%s4 + $0x208] sm:$0xf]
        %v2406 = vld [vmem:[%s4 + $0x20c] sm:$0xf]
        %v2407 = vld [vmem:[%s4 + $0x210] sm:$0xf]
        %v2408 = vld [vmem:[%s4 + $0x214] sm:$0xf]
        %v2409 = vld [vmem:[%s4 + $0x218] sm:$0xf]
        %v2410 = vld [vmem:[%s4 + $0x21c] sm:$0xf]
        %v2411 = vld [vmem:[%s4 + $0x220] sm:$0xf]
        %v2412 = vld [vmem:[%s4 + $0x224] sm:$0xf]
        %v2413 = vld [vmem:[%s4 + $0x228] sm:$0xf]
        %v2414 = vld [vmem:[%s4 + $0x22c] sm:$0xf]
        %v2415 = vld [vmem:[%s4 + $0x230] sm:$0xf]
        %v2416 = vld [vmem:[%s4 + $0x234] sm:$0xf]
        %v2417 = vld [vmem:[%s4 + $0x238] sm:$0xf]
        %v2418 = vld [vmem:[%s4 + $0x23c] sm:$0xf]
        %v2435 = vunpack.c.l.b16 %v2355
        %v2436 = vunpack.c.h.b16 %v2355
        %v2437 = vunpack.c.l.b16 %v2356
        %v2438 = vunpack.c.l.b16 %v2357
        %v2439 = vunpack.c.h.b16 %v2357
        %v2440 = vunpack.c.l.b16 %v2358
        %v2441 = vunpack.c.l.b16 %v2359
        %v2442 = vunpack.c.h.b16 %v2359
        %v2443 = vunpack.c.l.b16 %v2360
        %v2444 = vunpack.c.l.b16 %v2361
        %v2445 = vunpack.c.h.b16 %v2361
        %v2446 = vunpack.c.l.b16 %v2362
        %v2447 = vunpack.c.l.b16 %v2363
        %v2448 = vunpack.c.h.b16 %v2363
        %v2449 = vunpack.c.l.b16 %v2364
        %v2450 = vunpack.c.l.b16 %v2365
        %v2451 = vunpack.c.h.b16 %v2365
        %v2452 = vunpack.c.l.b16 %v2366
        %v2453 = vunpack.c.l.b16 %v2367
        %v2454 = vunpack.c.h.b16 %v2367
        %v2455 = vunpack.c.l.b16 %v2368
        %v2456 = vunpack.c.l.b16 %v2369
        %v2457 = vunpack.c.h.b16 %v2369
        %v2458 = vunpack.c.l.b16 %v2370
        %v2459 = vpack.c.b16 %v2438, %v2435
        %v2460 = vpack.c.b16 %v2439, %v2436
        %v2461 = vpack.c.b16 %v2440, %v2437
        %v2462 = vpack.c.b16 %v2444, %v2441
        %v2463 = vpack.c.b16 %v2445, %v2442
        %v2464 = vpack.c.b16 %v2446, %v2443
        %v2465 = vpack.c.b16 %v2450, %v2447
        %v2466 = vpack.c.b16 %v2451, %v2448
        %v2467 = vpack.c.b16 %v2452, %v2449
        %v2468 = vpack.c.b16 %v2456, %v2453
        %v2469 = vpack.c.b16 %v2457, %v2454
        %v2470 = vpack.c.b16 %v2458, %v2455
        %v2531 = vunpack.c.l.b16 %v2371
        %v2532 = vunpack.c.l.b16 %v2372
        %v2533 = vunpack.c.l.b16 %v2373
        %v2534 = vunpack.c.l.b16 %v2374
        %v2535 = vunpack.c.l.b16 %v2375
        %v2536 = vunpack.c.l.b16 %v2376
        %v2537 = vunpack.c.l.b16 %v2377
        %v2538 = vunpack.c.l.b16 %v2378
        %v2539 = vunpack.c.l.b16 %v2379
        %v2540 = vunpack.c.l.b16 %v2380
        %v2541 = vunpack.c.l.b16 %v2381
        %v2542 = vunpack.c.l.b16 %v2382
        %v2543 = vunpack.c.l.b16 %v2383
        %v2544 = vunpack.c.l.b16 %v2384
        %v2545 = vunpack.c.l.b16 %v2385
        %v2546 = vunpack.c.l.b16 %v2386
        %v2547 = vunpack.c.l.b16 %v2387
        %v2548 = vunpack.c.l.b16 %v2388
        %v2549 = vunpack.c.l.b16 %v2389
        %v2550 = vunpack.c.l.b16 %v2390
        %v2551 = vunpack.c.l.b16 %v2391
        %v2552 = vunpack.c.l.b16 %v2392
        %v2553 = vunpack.c.l.b16 %v2393
        %v2554 = vunpack.c.l.b16 %v2394
        %v2555 = vunpack.c.l.b16 %v2395
        %v2556 = vunpack.c.l.b16 %v2396
        %v2557 = vunpack.c.l.b16 %v2397
        %v2558 = vunpack.c.l.b16 %v2398
        %v2559 = vunpack.c.l.b16 %v2399
        %v2560 = vunpack.c.l.b16 %v2400
        %v2561 = vunpack.c.l.b16 %v2401
        %v2562 = vunpack.c.l.b16 %v2402
        %v2563 = vunpack.c.l.b16 %v2403
        %v2564 = vunpack.c.l.b16 %v2404
        %v2565 = vunpack.c.l.b16 %v2405
        %v2566 = vunpack.c.l.b16 %v2406
        %v2567 = vunpack.c.l.b16 %v2407
        %v2568 = vunpack.c.l.b16 %v2408
        %v2569 = vunpack.c.l.b16 %v2409
        %v2570 = vunpack.c.l.b16 %v2410
        %v2571 = vunpack.c.l.b16 %v2411
        %v2572 = vunpack.c.l.b16 %v2412
        %v2573 = vunpack.c.l.b16 %v2413
        %v2574 = vunpack.c.l.b16 %v2414
        %v2575 = vunpack.c.l.b16 %v2415
        %v2576 = vunpack.c.l.b16 %v2416
        %v2577 = vunpack.c.l.b16 %v2417
        %v2578 = vunpack.c.l.b16 %v2418
        %v2579 = vpack.c.b16 %v2532, %v2531
        %v2580 = vpack.c.b16 %v2534, %v2533
        %v2581 = vpack.c.b16 %v2536, %v2535
        %v2582 = vpack.c.b16 %v2538, %v2537
        %v2583 = vpack.c.b16 %v2540, %v2539
        %v2584 = vpack.c.b16 %v2542, %v2541
        %v2585 = vpack.c.b16 %v2544, %v2543
        %v2586 = vpack.c.b16 %v2546, %v2545
        %v2587 = vpack.c.b16 %v2548, %v2547
        %v2588 = vpack.c.b16 %v2550, %v2549
        %v2589 = vpack.c.b16 %v2552, %v2551
        %v2590 = vpack.c.b16 %v2554, %v2553
        %v2591 = vpack.c.b16 %v2556, %v2555
        %v2592 = vpack.c.b16 %v2558, %v2557
        %v2593 = vpack.c.b16 %v2560, %v2559
        %v2594 = vpack.c.b16 %v2562, %v2561
        %v2595 = vpack.c.b16 %v2564, %v2563
        %v2596 = vpack.c.b16 %v2566, %v2565
        %v2597 = vpack.c.b16 %v2568, %v2567
        %v2598 = vpack.c.b16 %v2570, %v2569
        %v2599 = vpack.c.b16 %v2572, %v2571
        %v2600 = vpack.c.b16 %v2574, %v2573
        %v2601 = vpack.c.b16 %v2576, %v2575
        %v2602 = vpack.c.b16 %v2578, %v2577
        %2627 = vmatpush.bf16.msra.mxu0 %v2586
        %2628 = vmatpush.bf16.msra.mxu0 %v2585
        %2629 = vmatpush.bf16.msra.mxu0 %v2584
        %2630 = vmatpush.bf16.msra.mxu0 %v2583
        %2631 = vmatpush.bf16.msra.mxu0 %v2582
        %2632 = vmatpush.bf16.msra.mxu0 %v2581
        %2633 = vmatpush.bf16.msra.mxu0 %v2580
        %2634 = vmatpush.bf16.msra.mxu0 %v2579
        %2635 = vmatmul.bf16.gmra.mxu0 %v2459
        %v2636 = vpop.f32.mrf.mxu0
        %v2637 = vadd.f32 0.0, %v2636
        %v2638 = vpop.f32.mrf.mxu0
        %v2639 = vadd.f32 0.0, %v2638
        %2640 = vmatmul.bf16.gmra.mxu0 %v2462
        %v2641 = vpop.f32.mrf.mxu0
        %v2642 = vadd.f32 0.0, %v2641
        %v2643 = vpop.f32.mrf.mxu0
        %v2644 = vadd.f32 0.0, %v2643
        %2645 = vmatmul.bf16.gmra.mxu0 %v2465
        %v2646 = vpop.f32.mrf.mxu0
        %v2647 = vadd.f32 0.0, %v2646
        %v2648 = vpop.f32.mrf.mxu0
        %v2649 = vadd.f32 0.0, %v2648
        %2650 = vmatmul.bf16.gmra.mxu0 %v2468
        %v2651 = vpop.f32.mrf.mxu0
        %v2652 = vadd.f32 0.0, %v2651
        %v2653 = vpop.f32.mrf.mxu0
        %v2654 = vadd.f32 0.0, %v2653
        %2655 = vdwg.mxu0
        %2656 = vmatpush.bf16.msra.mxu0 %v2594
        %2657 = vmatpush.bf16.msra.mxu0 %v2593
        %2658 = vmatpush.bf16.msra.mxu0 %v2592
        %2659 = vmatpush.bf16.msra.mxu0 %v2591
        %2660 = vmatpush.bf16.msra.mxu0 %v2590
        %2661 = vmatpush.bf16.msra.mxu0 %v2589
        %2662 = vmatpush.bf16.msra.mxu0 %v2588
        %2663 = vmatpush.bf16.msra.mxu0 %v2587
        %2664 = vmatmul.bf16.gmra.mxu0 %v2460
        %v2665 = vpop.f32.mrf.mxu0
        %v2666 = vadd.f32 %v2637, %v2665
        %v2667 = vpop.f32.mrf.mxu0
        %v2668 = vadd.f32 %v2639, %v2667
        %2669 = vmatmul.bf16.gmra.mxu0 %v2463
        %v2670 = vpop.f32.mrf.mxu0
        %v2671 = vadd.f32 %v2642, %v2670
        %v2672 = vpop.f32.mrf.mxu0
        %v2673 = vadd.f32 %v2644, %v2672
        %2674 = vmatmul.bf16.gmra.mxu0 %v2466
        %v2675 = vpop.f32.mrf.mxu0
        %v2676 = vadd.f32 %v2647, %v2675
        %v2677 = vpop.f32.mrf.mxu0
        %v2678 = vadd.f32 %v2649, %v2677
        %2679 = vmatmul.bf16.gmra.mxu0 %v2469
        %v2680 = vpop.f32.mrf.mxu0
        %v2681 = vadd.f32 %v2652, %v2680
        %v2682 = vpop.f32.mrf.mxu0
        %v2683 = vadd.f32 %v2654, %v2682
        %2684 = vdwg.mxu0
        %2685 = vmatpush.bf16.msra.mxu0 %v2602
        %2686 = vmatpush.bf16.msra.mxu0 %v2601
        %2687 = vmatpush.bf16.msra.mxu0 %v2600
        %2688 = vmatpush.bf16.msra.mxu0 %v2599
        %2689 = vmatpush.bf16.msra.mxu0 %v2598
        %2690 = vmatpush.bf16.msra.mxu0 %v2597
        %2691 = vmatpush.bf16.msra.mxu0 %v2596
        %2692 = vmatpush.bf16.msra.mxu0 %v2595
        %2693 = vmatmul.bf16.gmra.mxu0 %v2461
        %v2694 = vpop.f32.mrf.mxu0
        %v2695 = vadd.f32 %v2666, %v2694
        %v2696 = vpop.f32.mrf.mxu0
        %v2697 = vadd.f32 %v2668, %v2696
        %2698 = vmatmul.bf16.gmra.mxu0 %v2464
        %v2699 = vpop.f32.mrf.mxu0
        %v2700 = vadd.f32 %v2671, %v2699
        %v2701 = vpop.f32.mrf.mxu0
        %v2702 = vadd.f32 %v2673, %v2701
        %2703 = vmatmul.bf16.gmra.mxu0 %v2467
        %v2704 = vpop.f32.mrf.mxu0
        %v2705 = vadd.f32 %v2676, %v2704
        %v2706 = vpop.f32.mrf.mxu0
        %v2707 = vadd.f32 %v2678, %v2706
        %2708 = vmatmul.bf16.gmra.mxu0 %v2470
        %v2709 = vpop.f32.mrf.mxu0
        %v2710 = vadd.f32 %v2681, %v2709
        %v2711 = vpop.f32.mrf.mxu0
        %v2712 = vadd.f32 %v2683, %v2711
        %2713 = vdwg.mxu0
        %v2714 = vadd.f32 %v2336, %v2695
        %v2715 = vadd.f32 %v2338, %v2697
        %v2716 = vadd.f32 %v2341, %v2700
        %v2717 = vadd.f32 %v2343, %v2702
        %v2718 = vadd.f32 %v2346, %v2705
        %v2719 = vadd.f32 %v2348, %v2707
        %v2720 = vadd.f32 %v2351, %v2710
        %v2721 = vadd.f32 %v2353, %v2712
        %v2722 = vld [vmem:[%s5] sm:$0x1]
        %v2724 = vperm.slane %v2722, 0
        %v2726 = vmul.f32 %v2714, %v2724
        %v2727 = vmul.f32 %v2715, %v2724
        %v2728 = vmul.f32 %v2716, %v2724
        %v2729 = vmul.f32 %v2717, %v2724
        %v2730 = vmul.f32 %v2718, %v2724
        %v2731 = vmul.f32 %v2719, %v2724
        %v2732 = vmul.f32 %v2720, %v2724
        %v2733 = vmul.f32 %v2721, %v2724
        %v2734 = vld [vmem:[%s6] sm:$0x1]
        %v2736 = vperm.slane %v2734, 0
        %v2738 = vadd.f32 %v2726, %v2736
        %v2739 = vadd.f32 %v2727, %v2736
        %v2740 = vadd.f32 %v2728, %v2736
        %v2741 = vadd.f32 %v2729, %v2736
        %v2742 = vadd.f32 %v2730, %v2736
        %v2743 = vadd.f32 %v2731, %v2736
        %v2744 = vadd.f32 %v2732, %v2736
        %v2745 = vadd.f32 %v2733, %v2736
        %v2746 = vmax.f32 %v2738, 0.0
        %v2747 = vmax.f32 %v2739, 0.0
        %v2748 = vmax.f32 %v2740, 0.0
        %v2749 = vmax.f32 %v2741, 0.0
        %v2750 = vmax.f32 %v2742, 0.0
        %v2751 = vmax.f32 %v2743, 0.0
        %v2752 = vmax.f32 %v2744, 0.0
        %v2753 = vmax.f32 %v2745, 0.0
        %2754 = vst [vmem:[#allocation5] sm:$0xff] %v2746
        %2755 = vst [vmem:[#allocation5 + $0x8] sm:$0xff] %v2747
        %2756 = vst [vmem:[#allocation5 + $0x10] sm:$0xff] %v2748
        %2757 = vst [vmem:[#allocation5 + $0x18] sm:$0xff] %v2749
        %2758 = vst [vmem:[#allocation5 + $0x20] sm:$0xff] %v2750
        %2759 = vst [vmem:[#allocation5 + $0x28] sm:$0xff] %v2751
        %2760 = vst [vmem:[#allocation5 + $0x30] sm:$0xff] %v2752
        %2761 = vst [vmem:[#allocation5 + $0x38] sm:$0xff] %v2753
        %v2762 = vld [vmem:[#allocation5] ss:$2 sm:$0xff]
        %s2763 = scalar_lea.vmem [#allocation5], 16
        %v2764 = vld [vmem:[%s2763] ss:$2 sm:$0xff]
        %s2765 = scalar_lea.vmem [#allocation5], 32
        %v2766 = vld [vmem:[%s2765] ss:$2 sm:$0xff]
        %s2767 = scalar_lea.vmem [#allocation5], 48
        %v2768 = vld [vmem:[%s2767] ss:$2 sm:$0xff]
        %s2769 = scalar_lea.vmem [#allocation5], 1
        %v2770 = vld [vmem:[%s2769] ss:$2 sm:$0xff]
        %s2771 = scalar_lea.vmem [#allocation5], 17
        %v2772 = vld [vmem:[%s2771] ss:$2 sm:$0xff]
        %s2773 = scalar_lea.vmem [#allocation5], 33
        %v2774 = vld [vmem:[%s2773] ss:$2 sm:$0xff]
        %s2775 = scalar_lea.vmem [#allocation5], 49
        %v2776 = vld [vmem:[%s2775] ss:$2 sm:$0xff]
        %v2777 = vmax.f32 %v2762, %v2770
        %v2778 = vmax.f32 %v2764, %v2772
        %v2779 = vmax.f32 %v2766, %v2774
        %v2780 = vmax.f32 %v2768, %v2776
        %2781 = vst [vmem:[#allocation6] sm:$0xff] %v2777
        %2782 = vst [vmem:[#allocation6 + $0x8] sm:$0xff] %v2778
        %2783 = vst [vmem:[#allocation6 + $0x10] sm:$0xff] %v2779
        %2784 = vst [vmem:[#allocation6 + $0x18] sm:$0xff] %v2780
        %v2785 = vld [vmem:[#allocation6] sm:$0xf]
        %v2786 = vld [vmem:[#allocation6 + $0x4] sm:$0xf]
        %v2787 = vmax.f32 %v2785, %v2786
        %s2788 = scalar_lea.vmem [#allocation7], 8
        %2789 = vst [vmem:[%s2788 + $0x1] sm:$0xf] %v2787
        %v2790 = vld [vmem:[#allocation6 + $0x8] sm:$0xf]
        %v2791 = vld [vmem:[#allocation6 + $0xc] sm:$0xf]
        %v2792 = vmax.f32 %v2790, %v2791
        %s2793 = scalar_lea.vmem [#allocation7], 16
        %2794 = vst [vmem:[%s2793 + $0x1] sm:$0xf] %v2792
        %v2795 = vld [vmem:[#allocation6 + $0x10] sm:$0xf]
        %v2796 = vld [vmem:[#allocation6 + $0x14] sm:$0xf]
        %v2797 = vmax.f32 %v2795, %v2796
        %s2798 = scalar_lea.vmem [#allocation7], 24
        %2799 = vst [vmem:[%s2798 + $0x1] sm:$0xf] %v2797
        %v2800 = vld [vmem:[#allocation6 + $0x18] sm:$0xf]
        %v2801 = vld [vmem:[#allocation6 + $0x1c] sm:$0xf]
        %v2802 = vmax.f32 %v2800, %v2801
        %s2803 = scalar_lea.vmem [#allocation7], 32
        %2804 = vst [vmem:[%s2803 + $0x1] sm:$0xf] %v2802
        %v2805 = vld [vmem:[#allocation7] sm:$0xf]
        %v2806 = vld [vmem:[#allocation7 + $0x1] sm:$0xf]
        %v2807 = vld [vmem:[#allocation7 + $0x2] sm:$0xf]
        %v2808 = vpack.c.bf16 %v2806, %v2805
        %v2809 = vpack.c.bf16 %v2807, %v2807
        %2810 = vst [vmem:[#allocation8] sm:$0x33] %v2808
        %2811 = vst [vmem:[#allocation8 + $0x8] sm:$0x3] %v2809
        %v2812 = vld [vmem:[%s2788] sm:$0xf]
        %v2813 = vld [vmem:[%s2788 + $0x1] sm:$0xf]
        %v2814 = vld [vmem:[%s2788 + $0x2] sm:$0xf]
        %v2815 = vpack.c.bf16 %v2813, %v2812
        %v2816 = vpack.c.bf16 %v2814, %v2814
        %v2819 = vrot.slane %v2815, 6
        %v2820 = vrot.slane %v2816, 6
        %2823 = vst [vmem:[#allocation8] sm:$0xcc] %v2819
        %2824 = vst [vmem:[#allocation8 + $0x8] sm:$0xc] %v2820
        %v2825 = vld [vmem:[%s2793] sm:$0xf]
        %v2826 = vld [vmem:[%s2793 + $0x1] sm:$0xf]
        %v2827 = vld [vmem:[%s2793 + $0x2] sm:$0xf]
        %v2828 = vpack.c.bf16 %v2826, %v2825
        %v2829 = vpack.c.bf16 %v2827, %v2827
        %2830 = vst [vmem:[#allocation8 + $0xc] sm:$0x33] %v2828
        %2831 = vst [vmem:[#allocation8 + $0x14] sm:$0x3] %v2829
        %v2832 = vld [vmem:[%s2798] sm:$0xf]
        %v2833 = vld [vmem:[%s2798 + $0x1] sm:$0xf]
        %v2834 = vld [vmem:[%s2798 + $0x2] sm:$0xf]
        %v2835 = vpack.c.bf16 %v2833, %v2832
        %v2836 = vpack.c.bf16 %v2834, %v2834
        %v2839 = vrot.slane %v2835, 6
        %v2840 = vrot.slane %v2836, 6
        %2843 = vst [vmem:[#allocation8 + $0xc] sm:$0xcc] %v2839
        %2844 = vst [vmem:[#allocation8 + $0x14] sm:$0xc] %v2840
        %v2845 = vld [vmem:[%s2803] sm:$0xf]
        %v2846 = vld [vmem:[%s2803 + $0x1] sm:$0xf]
        %v2847 = vld [vmem:[%s2803 + $0x2] sm:$0xf]
        %v2848 = vpack.c.bf16 %v2846, %v2845
        %v2849 = vpack.c.bf16 %v2847, %v2847
        %2850 = vst [vmem:[#allocation8 + $0x18] sm:$0x33] %v2848
        %2851 = vst [vmem:[#allocation8 + $0x20] sm:$0x3] %v2849
        %s2852 = scalar_lea.vmem [#allocation7], 40
        %v2853 = vld [vmem:[%s2852] sm:$0xf]
        %v2854 = vld [vmem:[%s2852 + $0x1] sm:$0xf]
        %v2855 = vld [vmem:[%s2852 + $0x2] sm:$0xf]
        %v2856 = vpack.c.bf16 %v2854, %v2853
        %v2857 = vpack.c.bf16 %v2855, %v2855
        %v2860 = vrot.slane %v2856, 6
        %v2861 = vrot.slane %v2857, 6
        %2864 = vst [vmem:[#allocation8 + $0x18] sm:$0xcc] %v2860
        %2865 = vst [vmem:[#allocation8 + $0x20] sm:$0xc] %v2861
        %v2866 = vld [vmem:[#allocation8] sm:$0xff]
        %v2867 = vld [vmem:[#allocation8 + $0x8] sm:$0xf]
        %v2868 = vld [vmem:[#allocation8 + $0xc] sm:$0xff]
        %v2869 = vld [vmem:[#allocation8 + $0x14] sm:$0xf]
        %v2870 = vld [vmem:[#allocation12] sm:$0xf]
        %v2871 = vld [vmem:[#allocation12 + $0x4] sm:$0xf]
        %v2872 = vld [vmem:[#allocation12 + $0x8] sm:$0xf]
        %v2873 = vld [vmem:[#allocation12 + $0xc] sm:$0xf]
        %v2874 = vld [vmem:[#allocation12 + $0x10] sm:$0xf]
        %v2875 = vld [vmem:[#allocation12 + $0x14] sm:$0xf]
        %v2876 = vld [vmem:[#allocation12 + $0x18] sm:$0xf]
        %v2877 = vld [vmem:[#allocation12 + $0x1c] sm:$0xf]
        %v2878 = vld [vmem:[#allocation12 + $0x20] sm:$0xf]
        %v2879 = vld [vmem:[#allocation12 + $0x24] sm:$0xf]
        %v2880 = vld [vmem:[#allocation12 + $0x28] sm:$0xf]
        %v2881 = vld [vmem:[#allocation12 + $0x2c] sm:$0xf]
        %v2882 = vld [vmem:[#allocation12 + $0x30] sm:$0xf]
        %v2883 = vld [vmem:[#allocation12 + $0x34] sm:$0xf]
        %v2884 = vld [vmem:[#allocation12 + $0x38] sm:$0xf]
        %v2885 = vld [vmem:[#allocation12 + $0x3c] sm:$0xf]
        %v2886 = vld [vmem:[#allocation12 + $0x40] sm:$0xf]
        %v2887 = vld [vmem:[#allocation12 + $0x44] sm:$0xf]
        %v2888 = vld [vmem:[#allocation12 + $0x48] sm:$0xf]
        %v2889 = vld [vmem:[#allocation12 + $0x4c] sm:$0xf]
        %v2890 = vld [vmem:[#allocation12 + $0x50] sm:$0xf]
        %v2891 = vld [vmem:[#allocation12 + $0x54] sm:$0xf]
        %v2892 = vld [vmem:[#allocation12 + $0x58] sm:$0xf]
        %v2893 = vld [vmem:[#allocation12 + $0x5c] sm:$0xf]
        %v2894 = vld [vmem:[#allocation12 + $0x60] sm:$0xf]
        %v2895 = vld [vmem:[#allocation12 + $0x64] sm:$0xf]
        %v2896 = vld [vmem:[#allocation12 + $0x68] sm:$0xf]
        %v2897 = vld [vmem:[#allocation12 + $0x6c] sm:$0xf]
        %v2898 = vld [vmem:[#allocation12 + $0x70] sm:$0xf]
        %v2899 = vld [vmem:[#allocation12 + $0x74] sm:$0xf]
        %v2900 = vld [vmem:[#allocation12 + $0x78] sm:$0xf]
        %v2901 = vld [vmem:[#allocation12 + $0x7c] sm:$0xf]
        %v2902 = vld [vmem:[#allocation12 + $0x80] sm:$0xf]
        %v2903 = vld [vmem:[#allocation12 + $0x84] sm:$0xf]
        %v2904 = vld [vmem:[#allocation12 + $0x88] sm:$0xf]
        %v2905 = vld [vmem:[#allocation12 + $0x8c] sm:$0xf]
        %v2906 = vld [vmem:[#allocation12 + $0x90] sm:$0xf]
        %v2907 = vld [vmem:[#allocation12 + $0x94] sm:$0xf]
        %v2908 = vld [vmem:[#allocation12 + $0x98] sm:$0xf]
        %v2909 = vld [vmem:[#allocation12 + $0x9c] sm:$0xf]
        %v2910 = vld [vmem:[#allocation12 + $0xa0] sm:$0xf]
        %v2911 = vld [vmem:[#allocation12 + $0xa4] sm:$0xf]
        %v2912 = vld [vmem:[#allocation12 + $0xa8] sm:$0xf]
        %v2913 = vld [vmem:[#allocation12 + $0xac] sm:$0xf]
        %v2914 = vld [vmem:[#allocation12 + $0xb0] sm:$0xf]
        %v2915 = vld [vmem:[#allocation12 + $0xb4] sm:$0xf]
        %v2916 = vld [vmem:[#allocation12 + $0xb8] sm:$0xf]
        %v2917 = vld [vmem:[#allocation12 + $0xbc] sm:$0xf]
        %v2918 = vld [vmem:[#allocation8] sm:$0xcc]
        %v2919 = vld [vmem:[#allocation8 + $0x8] sm:$0xc]
        %v2920 = vld [vmem:[#allocation8 + $0xc] sm:$0xff]
        %v2921 = vld [vmem:[#allocation8 + $0x14] sm:$0xf]
        %v2922 = vld [vmem:[#allocation8 + $0x18] sm:$0x33]
        %v2923 = vld [vmem:[#allocation8 + $0x20] sm:$0x3]
        %v2924 = vld [vmem:[#allocation12 + $0xc0] sm:$0xf]
        %v2925 = vld [vmem:[#allocation12 + $0xc4] sm:$0xf]
        %v2926 = vld [vmem:[#allocation12 + $0xc8] sm:$0xf]
        %v2927 = vld [vmem:[#allocation12 + $0xcc] sm:$0xf]
        %v2928 = vld [vmem:[#allocation12 + $0xd0] sm:$0xf]
        %v2929 = vld [vmem:[#allocation12 + $0xd4] sm:$0xf]
        %v2930 = vld [vmem:[#allocation12 + $0xd8] sm:$0xf]
        %v2931 = vld [vmem:[#allocation12 + $0xdc] sm:$0xf]
        %v2932 = vld [vmem:[#allocation12 + $0xe0] sm:$0xf]
        %v2933 = vld [vmem:[#allocation12 + $0xe4] sm:$0xf]
        %v2934 = vld [vmem:[#allocation12 + $0xe8] sm:$0xf]
        %v2935 = vld [vmem:[#allocation12 + $0xec] sm:$0xf]
        %v2936 = vld [vmem:[#allocation12 + $0xf0] sm:$0xf]
        %v2937 = vld [vmem:[#allocation12 + $0xf4] sm:$0xf]
        %v2938 = vld [vmem:[#allocation12 + $0xf8] sm:$0xf]
        %v2939 = vld [vmem:[#allocation12 + $0xfc] sm:$0xf]
        %v2940 = vld [vmem:[#allocation12 + $0x100] sm:$0xf]
        %v2941 = vld [vmem:[#allocation12 + $0x104] sm:$0xf]
        %v2942 = vld [vmem:[#allocation12 + $0x108] sm:$0xf]
        %v2943 = vld [vmem:[#allocation12 + $0x10c] sm:$0xf]
        %v2944 = vld [vmem:[#allocation12 + $0x110] sm:$0xf]
        %v2945 = vld [vmem:[#allocation12 + $0x114] sm:$0xf]
        %v2946 = vld [vmem:[#allocation12 + $0x118] sm:$0xf]
        %v2947 = vld [vmem:[#allocation12 + $0x11c] sm:$0xf]
        %v2948 = vld [vmem:[#allocation12 + $0x120] sm:$0xf]
        %v2949 = vld [vmem:[#allocation12 + $0x124] sm:$0xf]
        %v2950 = vld [vmem:[#allocation12 + $0x128] sm:$0xf]
        %v2951 = vld [vmem:[#allocation12 + $0x12c] sm:$0xf]
        %v2952 = vld [vmem:[#allocation12 + $0x130] sm:$0xf]
        %v2953 = vld [vmem:[#allocation12 + $0x134] sm:$0xf]
        %v2954 = vld [vmem:[#allocation12 + $0x138] sm:$0xf]
        %v2955 = vld [vmem:[#allocation12 + $0x13c] sm:$0xf]
        %v2956 = vld [vmem:[#allocation12 + $0x140] sm:$0xf]
        %v2957 = vld [vmem:[#allocation12 + $0x144] sm:$0xf]
        %v2958 = vld [vmem:[#allocation12 + $0x148] sm:$0xf]
        %v2959 = vld [vmem:[#allocation12 + $0x14c] sm:$0xf]
        %v2960 = vld [vmem:[#allocation12 + $0x150] sm:$0xf]
        %v2961 = vld [vmem:[#allocation12 + $0x154] sm:$0xf]
        %v2962 = vld [vmem:[#allocation12 + $0x158] sm:$0xf]
        %v2963 = vld [vmem:[#allocation12 + $0x15c] sm:$0xf]
        %v2964 = vld [vmem:[#allocation12 + $0x160] sm:$0xf]
        %v2965 = vld [vmem:[#allocation12 + $0x164] sm:$0xf]
        %v2966 = vld [vmem:[#allocation12 + $0x168] sm:$0xf]
        %v2967 = vld [vmem:[#allocation12 + $0x16c] sm:$0xf]
        %v2968 = vld [vmem:[#allocation12 + $0x170] sm:$0xf]
        %v2969 = vld [vmem:[#allocation12 + $0x174] sm:$0xf]
        %v2970 = vld [vmem:[#allocation12 + $0x178] sm:$0xf]
        %v2971 = vld [vmem:[#allocation12 + $0x17c] sm:$0xf]
        %v2978 = vunpack.c.l.b16 %v2918
        %v2979 = vunpack.c.h.b16 %v2918
        %v2980 = vunpack.c.l.b16 %v2919
        %v2981 = vunpack.c.l.b16 %v2920
        %v2982 = vunpack.c.h.b16 %v2920
        %v2983 = vunpack.c.l.b16 %v2921
        %v2984 = vunpack.c.l.b16 %v2922
        %v2985 = vunpack.c.h.b16 %v2922
        %v2986 = vunpack.c.l.b16 %v2923
        %v2987 = vpack.c.b16 %v2981, %v2978
        %v2988 = vpack.c.b16 %v2982, %v2979
        %v2989 = vpack.c.b16 %v2983, %v2980
        %v2990 = vpack.c.b16 %v2984, %v2984
        %v2991 = vpack.c.b16 %v2985, %v2985
        %v2992 = vpack.c.b16 %v2986, %v2986
        %vm2993 = vcmask 1045504
        %v2994 = vrot.slane %v2987, 2
        %v2995 = vrot.slane %v2990, 2
        %v2996 = vsel %vm2993, %v2994, %v2995
        %v2997 = vrot.slane %v2988, 2
        %v2998 = vrot.slane %v2991, 2
        %v2999 = vsel %vm2993, %v2997, %v2998
        %v3000 = vrot.slane %v2989, 2
        %v3001 = vrot.slane %v2992, 2
        %v3002 = vsel %vm2993, %v3000, %v3001
        %v3054 = vunpack.c.l.b16 %v2924
        %v3055 = vunpack.c.l.b16 %v2925
        %v3056 = vunpack.c.l.b16 %v2926
        %v3057 = vunpack.c.l.b16 %v2927
        %v3058 = vunpack.c.l.b16 %v2928
        %v3059 = vunpack.c.l.b16 %v2929
        %v3060 = vunpack.c.l.b16 %v2930
        %v3061 = vunpack.c.l.b16 %v2931
        %v3062 = vunpack.c.l.b16 %v2932
        %v3063 = vunpack.c.l.b16 %v2933
        %v3064 = vunpack.c.l.b16 %v2934
        %v3065 = vunpack.c.l.b16 %v2935
        %v3066 = vunpack.c.l.b16 %v2936
        %v3067 = vunpack.c.l.b16 %v2937
        %v3068 = vunpack.c.l.b16 %v2938
        %v3069 = vunpack.c.l.b16 %v2939
        %v3070 = vunpack.c.l.b16 %v2940
        %v3071 = vunpack.c.l.b16 %v2941
        %v3072 = vunpack.c.l.b16 %v2942
        %v3073 = vunpack.c.l.b16 %v2943
        %v3074 = vunpack.c.l.b16 %v2944
        %v3075 = vunpack.c.l.b16 %v2945
        %v3076 = vunpack.c.l.b16 %v2946
        %v3077 = vunpack.c.l.b16 %v2947
        %v3078 = vunpack.c.l.b16 %v2948
        %v3079 = vunpack.c.l.b16 %v2949
        %v3080 = vunpack.c.l.b16 %v2950
        %v3081 = vunpack.c.l.b16 %v2951
        %v3082 = vunpack.c.l.b16 %v2952
        %v3083 = vunpack.c.l.b16 %v2953
        %v3084 = vunpack.c.l.b16 %v2954
        %v3085 = vunpack.c.l.b16 %v2955
        %v3086 = vunpack.c.l.b16 %v2956
        %v3087 = vunpack.c.l.b16 %v2957
        %v3088 = vunpack.c.l.b16 %v2958
        %v3089 = vunpack.c.l.b16 %v2959
        %v3090 = vunpack.c.l.b16 %v2960
        %v3091 = vunpack.c.l.b16 %v2961
        %v3092 = vunpack.c.l.b16 %v2962
        %v3093 = vunpack.c.l.b16 %v2963
        %v3094 = vunpack.c.l.b16 %v2964
        %v3095 = vunpack.c.l.b16 %v2965
        %v3096 = vunpack.c.l.b16 %v2966
        %v3097 = vunpack.c.l.b16 %v2967
        %v3098 = vunpack.c.l.b16 %v2968
        %v3099 = vunpack.c.l.b16 %v2969
        %v3100 = vunpack.c.l.b16 %v2970
        %v3101 = vunpack.c.l.b16 %v2971
        %v3102 = vpack.c.b16 %v3055, %v3054
        %v3103 = vpack.c.b16 %v3057, %v3056
        %v3104 = vpack.c.b16 %v3059, %v3058
        %v3105 = vpack.c.b16 %v3061, %v3060
        %v3106 = vpack.c.b16 %v3063, %v3062
        %v3107 = vpack.c.b16 %v3065, %v3064
        %v3108 = vpack.c.b16 %v3067, %v3066
        %v3109 = vpack.c.b16 %v3069, %v3068
        %v3110 = vpack.c.b16 %v3071, %v3070
        %v3111 = vpack.c.b16 %v3073, %v3072
        %v3112 = vpack.c.b16 %v3075, %v3074
        %v3113 = vpack.c.b16 %v3077, %v3076
        %v3114 = vpack.c.b16 %v3079, %v3078
        %v3115 = vpack.c.b16 %v3081, %v3080
        %v3116 = vpack.c.b16 %v3083, %v3082
        %v3117 = vpack.c.b16 %v3085, %v3084
        %v3118 = vpack.c.b16 %v3087, %v3086
        %v3119 = vpack.c.b16 %v3089, %v3088
        %v3120 = vpack.c.b16 %v3091, %v3090
        %v3121 = vpack.c.b16 %v3093, %v3092
        %v3122 = vpack.c.b16 %v3095, %v3094
        %v3123 = vpack.c.b16 %v3097, %v3096
        %v3124 = vpack.c.b16 %v3099, %v3098
        %v3125 = vpack.c.b16 %v3101, %v3100
        %3150 = vmatpush.bf16.msra.mxu0 %v3109
        %3151 = vmatpush.bf16.msra.mxu0 %v3108
        %3152 = vmatpush.bf16.msra.mxu0 %v3107
        %3153 = vmatpush.bf16.msra.mxu0 %v3106
        %3154 = vmatpush.bf16.msra.mxu0 %v3105
        %3155 = vmatpush.bf16.msra.mxu0 %v3104
        %3156 = vmatpush.bf16.msra.mxu0 %v3103
        %3157 = vmatpush.bf16.msra.mxu0 %v3102
        %3158 = vmatmul.bf16.gmra.mxu0 %v2996
        %v3159 = vpop.f32.mrf.mxu0
        %v3160 = vadd.f32 0.0, %v3159
        %v3161 = vpop.f32.mrf.mxu0
        %v3162 = vadd.f32 0.0, %v3161
        %3163 = vdwg.mxu0
        %3164 = vmatpush.bf16.msra.mxu0 %v3117
        %3165 = vmatpush.bf16.msra.mxu0 %v3116
        %3166 = vmatpush.bf16.msra.mxu0 %v3115
        %3167 = vmatpush.bf16.msra.mxu0 %v3114
        %3168 = vmatpush.bf16.msra.mxu0 %v3113
        %3169 = vmatpush.bf16.msra.mxu0 %v3112
        %3170 = vmatpush.bf16.msra.mxu0 %v3111
        %3171 = vmatpush.bf16.msra.mxu0 %v3110
        %3172 = vmatmul.bf16.gmra.mxu0 %v2999
        %v3173 = vpop.f32.mrf.mxu0
        %v3174 = vadd.f32 %v3160, %v3173
        %v3175 = vpop.f32.mrf.mxu0
        %v3176 = vadd.f32 %v3162, %v3175
        %3177 = vdwg.mxu0
        %3178 = vmatpush.bf16.msra.mxu0 %v3125
        %3179 = vmatpush.bf16.msra.mxu0 %v3124
        %3180 = vmatpush.bf16.msra.mxu0 %v3123
        %3181 = vmatpush.bf16.msra.mxu0 %v3122
        %3182 = vmatpush.bf16.msra.mxu0 %v3121
        %3183 = vmatpush.bf16.msra.mxu0 %v3120
        %3184 = vmatpush.bf16.msra.mxu0 %v3119
        %3185 = vmatpush.bf16.msra.mxu0 %v3118
        %3186 = vmatmul.bf16.gmra.mxu0 %v3002
        %v3187 = vpop.f32.mrf.mxu0
        %v3188 = vadd.f32 %v3174, %v3187
        %v3189 = vpop.f32.mrf.mxu0
        %v3190 = vadd.f32 %v3176, %v3189
        %3191 = vdwg.mxu0
        %v3196 = vunpack.c.l.b16 %v2866
        %v3197 = vunpack.c.h.b16 %v2866
        %v3198 = vunpack.c.l.b16 %v2867
        %v3199 = vunpack.c.l.b16 %v2868
        %v3200 = vunpack.c.h.b16 %v2868
        %v3201 = vunpack.c.l.b16 %v2869
        %v3202 = vpack.c.b16 %v3199, %v3196
        %v3203 = vpack.c.b16 %v3200, %v3197
        %v3204 = vpack.c.b16 %v3201, %v3198
        %v3256 = vunpack.c.l.b16 %v2870
        %v3257 = vunpack.c.l.b16 %v2871
        %v3258 = vunpack.c.l.b16 %v2872
        %v3259 = vunpack.c.l.b16 %v2873
        %v3260 = vunpack.c.l.b16 %v2874
        %v3261 = vunpack.c.l.b16 %v2875
        %v3262 = vunpack.c.l.b16 %v2876
        %v3263 = vunpack.c.l.b16 %v2877
        %v3264 = vunpack.c.l.b16 %v2878
        %v3265 = vunpack.c.l.b16 %v2879
        %v3266 = vunpack.c.l.b16 %v2880
        %v3267 = vunpack.c.l.b16 %v2881
        %v3268 = vunpack.c.l.b16 %v2882
        %v3269 = vunpack.c.l.b16 %v2883
        %v3270 = vunpack.c.l.b16 %v2884
        %v3271 = vunpack.c.l.b16 %v2885
        %v3272 = vunpack.c.l.b16 %v2886
        %v3273 = vunpack.c.l.b16 %v2887
        %v3274 = vunpack.c.l.b16 %v2888
        %v3275 = vunpack.c.l.b16 %v2889
        %v3276 = vunpack.c.l.b16 %v2890
        %v3277 = vunpack.c.l.b16 %v2891
        %v3278 = vunpack.c.l.b16 %v2892
        %v3279 = vunpack.c.l.b16 %v2893
        %v3280 = vunpack.c.l.b16 %v2894
        %v3281 = vunpack.c.l.b16 %v2895
        %v3282 = vunpack.c.l.b16 %v2896
        %v3283 = vunpack.c.l.b16 %v2897
        %v3284 = vunpack.c.l.b16 %v2898
        %v3285 = vunpack.c.l.b16 %v2899
        %v3286 = vunpack.c.l.b16 %v2900
        %v3287 = vunpack.c.l.b16 %v2901
        %v3288 = vunpack.c.l.b16 %v2902
        %v3289 = vunpack.c.l.b16 %v2903
        %v3290 = vunpack.c.l.b16 %v2904
        %v3291 = vunpack.c.l.b16 %v2905
        %v3292 = vunpack.c.l.b16 %v2906
        %v3293 = vunpack.c.l.b16 %v2907
        %v3294 = vunpack.c.l.b16 %v2908
        %v3295 = vunpack.c.l.b16 %v2909
        %v3296 = vunpack.c.l.b16 %v2910
        %v3297 = vunpack.c.l.b16 %v2911
        %v3298 = vunpack.c.l.b16 %v2912
        %v3299 = vunpack.c.l.b16 %v2913
        %v3300 = vunpack.c.l.b16 %v2914
        %v3301 = vunpack.c.l.b16 %v2915
        %v3302 = vunpack.c.l.b16 %v2916
        %v3303 = vunpack.c.l.b16 %v2917
        %v3304 = vpack.c.b16 %v3257, %v3256
        %v3305 = vpack.c.b16 %v3259, %v3258
        %v3306 = vpack.c.b16 %v3261, %v3260
        %v3307 = vpack.c.b16 %v3263, %v3262
        %v3308 = vpack.c.b16 %v3265, %v3264
        %v3309 = vpack.c.b16 %v3267, %v3266
        %v3310 = vpack.c.b16 %v3269, %v3268
        %v3311 = vpack.c.b16 %v3271, %v3270
        %v3312 = vpack.c.b16 %v3273, %v3272
        %v3313 = vpack.c.b16 %v3275, %v3274
        %v3314 = vpack.c.b16 %v3277, %v3276
        %v3315 = vpack.c.b16 %v3279, %v3278
        %v3316 = vpack.c.b16 %v3281, %v3280
        %v3317 = vpack.c.b16 %v3283, %v3282
        %v3318 = vpack.c.b16 %v3285, %v3284
        %v3319 = vpack.c.b16 %v3287, %v3286
        %v3320 = vpack.c.b16 %v3289, %v3288
        %v3321 = vpack.c.b16 %v3291, %v3290
        %v3322 = vpack.c.b16 %v3293, %v3292
        %v3323 = vpack.c.b16 %v3295, %v3294
        %v3324 = vpack.c.b16 %v3297, %v3296
        %v3325 = vpack.c.b16 %v3299, %v3298
        %v3326 = vpack.c.b16 %v3301, %v3300
        %v3327 = vpack.c.b16 %v3303, %v3302
        %3352 = vmatpush.bf16.msra.mxu0 %v3311
        %3353 = vmatpush.bf16.msra.mxu0 %v3310
        %3354 = vmatpush.bf16.msra.mxu0 %v3309
        %3355 = vmatpush.bf16.msra.mxu0 %v3308
        %3356 = vmatpush.bf16.msra.mxu0 %v3307
        %3357 = vmatpush.bf16.msra.mxu0 %v3306
        %3358 = vmatpush.bf16.msra.mxu0 %v3305
        %3359 = vmatpush.bf16.msra.mxu0 %v3304
        %3360 = vmatmul.bf16.gmra.mxu0 %v3202
        %v3361 = vpop.f32.mrf.mxu0
        %v3362 = vadd.f32 %v3188, %v3361
        %v3363 = vpop.f32.mrf.mxu0
        %v3364 = vadd.f32 %v3190, %v3363
        %3365 = vdwg.mxu0
        %3366 = vmatpush.bf16.msra.mxu0 %v3319
        %3367 = vmatpush.bf16.msra.mxu0 %v3318
        %3368 = vmatpush.bf16.msra.mxu0 %v3317
        %3369 = vmatpush.bf16.msra.mxu0 %v3316
        %3370 = vmatpush.bf16.msra.mxu0 %v3315
        %3371 = vmatpush.bf16.msra.mxu0 %v3314
        %3372 = vmatpush.bf16.msra.mxu0 %v3313
        %3373 = vmatpush.bf16.msra.mxu0 %v3312
        %3374 = vmatmul.bf16.gmra.mxu0 %v3203
        %v3375 = vpop.f32.mrf.mxu0
        %v3376 = vadd.f32 %v3362, %v3375
        %v3377 = vpop.f32.mrf.mxu0
        %v3378 = vadd.f32 %v3364, %v3377
        %3379 = vdwg.mxu0
        %3380 = vmatpush.bf16.msra.mxu0 %v3327
        %3381 = vmatpush.bf16.msra.mxu0 %v3326
        %3382 = vmatpush.bf16.msra.mxu0 %v3325
        %3383 = vmatpush.bf16.msra.mxu0 %v3324
        %3384 = vmatpush.bf16.msra.mxu0 %v3323
        %3385 = vmatpush.bf16.msra.mxu0 %v3322
        %3386 = vmatpush.bf16.msra.mxu0 %v3321
        %3387 = vmatpush.bf16.msra.mxu0 %v3320
        %3388 = vmatmul.bf16.gmra.mxu0 %v3204
        %v3389 = vpop.f32.mrf.mxu0
        %v3390 = vadd.f32 %v3376, %v3389
        %v3391 = vpop.f32.mrf.mxu0
        %v3392 = vadd.f32 %v3378, %v3391
        %3393 = vdwg.mxu0
        %v3394 = vld [vmem:[#allocation8 + $0x18] sm:$0xff]
        %v3395 = vld [vmem:[#allocation8 + $0x20] sm:$0xf]
        %v3396 = vld [vmem:[#allocation12 + $0x180] sm:$0xf]
        %v3397 = vld [vmem:[#allocation12 + $0x184] sm:$0xf]
        %v3398 = vld [vmem:[#allocation12 + $0x188] sm:$0xf]
        %v3399 = vld [vmem:[#allocation12 + $0x18c] sm:$0xf]
        %v3400 = vld [vmem:[#allocation12 + $0x190] sm:$0xf]
        %v3401 = vld [vmem:[#allocation12 + $0x194] sm:$0xf]
        %v3402 = vld [vmem:[#allocation12 + $0x198] sm:$0xf]
        %v3403 = vld [vmem:[#allocation12 + $0x19c] sm:$0xf]
        %v3404 = vld [vmem:[#allocation12 + $0x1a0] sm:$0xf]
        %v3405 = vld [vmem:[#allocation12 + $0x1a4] sm:$0xf]
        %v3406 = vld [vmem:[#allocation12 + $0x1a8] sm:$0xf]
        %v3407 = vld [vmem:[#allocation12 + $0x1ac] sm:$0xf]
        %v3408 = vld [vmem:[#allocation12 + $0x1b0] sm:$0xf]
        %v3409 = vld [vmem:[#allocation12 + $0x1b4] sm:$0xf]
        %v3410 = vld [vmem:[#allocation12 + $0x1b8] sm:$0xf]
        %v3411 = vld [vmem:[#allocation12 + $0x1bc] sm:$0xf]
        %v3412 = vld [vmem:[#allocation12 + $0x1c0] sm:$0xf]
        %v3413 = vld [vmem:[#allocation12 + $0x1c4] sm:$0xf]
        %v3414 = vld [vmem:[#allocation12 + $0x1c8] sm:$0xf]
        %v3415 = vld [vmem:[#allocation12 + $0x1cc] sm:$0xf]
        %v3416 = vld [vmem:[#allocation12 + $0x1d0] sm:$0xf]
        %v3417 = vld [vmem:[#allocation12 + $0x1d4] sm:$0xf]
        %v3418 = vld [vmem:[#allocation12 + $0x1d8] sm:$0xf]
        %v3419 = vld [vmem:[#allocation12 + $0x1dc] sm:$0xf]
        %v3420 = vld [vmem:[#allocation12 + $0x1e0] sm:$0xf]
        %v3421 = vld [vmem:[#allocation12 + $0x1e4] sm:$0xf]
        %v3422 = vld [vmem:[#allocation12 + $0x1e8] sm:$0xf]
        %v3423 = vld [vmem:[#allocation12 + $0x1ec] sm:$0xf]
        %v3424 = vld [vmem:[#allocation12 + $0x1f0] sm:$0xf]
        %v3425 = vld [vmem:[#allocation12 + $0x1f4] sm:$0xf]
        %v3426 = vld [vmem:[#allocation12 + $0x1f8] sm:$0xf]
        %v3427 = vld [vmem:[#allocation12 + $0x1fc] sm:$0xf]
        %v3428 = vld [vmem:[#allocation12 + $0x200] sm:$0xf]
        %v3429 = vld [vmem:[#allocation12 + $0x204] sm:$0xf]
        %v3430 = vld [vmem:[#allocation12 + $0x208] sm:$0xf]
        %v3431 = vld [vmem:[#allocation12 + $0x20c] sm:$0xf]
        %v3432 = vld [vmem:[#allocation12 + $0x210] sm:$0xf]
        %v3433 = vld [vmem:[#allocation12 + $0x214] sm:$0xf]
        %v3434 = vld [vmem:[#allocation12 + $0x218] sm:$0xf]
        %v3435 = vld [vmem:[#allocation12 + $0x21c] sm:$0xf]
        %v3436 = vld [vmem:[#allocation12 + $0x220] sm:$0xf]
        %v3437 = vld [vmem:[#allocation12 + $0x224] sm:$0xf]
        %v3438 = vld [vmem:[#allocation12 + $0x228] sm:$0xf]
        %v3439 = vld [vmem:[#allocation12 + $0x22c] sm:$0xf]
        %v3440 = vld [vmem:[#allocation12 + $0x230] sm:$0xf]
        %v3441 = vld [vmem:[#allocation12 + $0x234] sm:$0xf]
        %v3442 = vld [vmem:[#allocation12 + $0x238] sm:$0xf]
        %v3443 = vld [vmem:[#allocation12 + $0x23c] sm:$0xf]
        %v3446 = vunpack.c.l.b16 %v3394
        %v3447 = vunpack.c.h.b16 %v3394
        %v3448 = vunpack.c.l.b16 %v3395
        %v3449 = vpack.c.b16 %v3446, %v2981
        %v3450 = vpack.c.b16 %v3447, %v2982
        %v3451 = vpack.c.b16 %v3448, %v2983
        %v3503 = vunpack.c.l.b16 %v3396
        %v3504 = vunpack.c.l.b16 %v3397
        %v3505 = vunpack.c.l.b16 %v3398
        %v3506 = vunpack.c.l.b16 %v3399
        %v3507 = vunpack.c.l.b16 %v3400
        %v3508 = vunpack.c.l.b16 %v3401
        %v3509 = vunpack.c.l.b16 %v3402
        %v3510 = vunpack.c.l.b16 %v3403
        %v3511 = vunpack.c.l.b16 %v3404
        %v3512 = vunpack.c.l.b16 %v3405
        %v3513 = vunpack.c.l.b16 %v3406
        %v3514 = vunpack.c.l.b16 %v3407
        %v3515 = vunpack.c.l.b16 %v3408
        %v3516 = vunpack.c.l.b16 %v3409
        %v3517 = vunpack.c.l.b16 %v3410
        %v3518 = vunpack.c.l.b16 %v3411
        %v3519 = vunpack.c.l.b16 %v3412
        %v3520 = vunpack.c.l.b16 %v3413
        %v3521 = vunpack.c.l.b16 %v3414
        %v3522 = vunpack.c.l.b16 %v3415
        %v3523 = vunpack.c.l.b16 %v3416
        %v3524 = vunpack.c.l.b16 %v3417
        %v3525 = vunpack.c.l.b16 %v3418
        %v3526 = vunpack.c.l.b16 %v3419
        %v3527 = vunpack.c.l.b16 %v3420
        %v3528 = vunpack.c.l.b16 %v3421
        %v3529 = vunpack.c.l.b16 %v3422
        %v3530 = vunpack.c.l.b16 %v3423
        %v3531 = vunpack.c.l.b16 %v3424
        %v3532 = vunpack.c.l.b16 %v3425
        %v3533 = vunpack.c.l.b16 %v3426
        %v3534 = vunpack.c.l.b16 %v3427
        %v3535 = vunpack.c.l.b16 %v3428
        %v3536 = vunpack.c.l.b16 %v3429
        %v3537 = vunpack.c.l.b16 %v3430
        %v3538 = vunpack.c.l.b16 %v3431
        %v3539 = vunpack.c.l.b16 %v3432
        %v3540 = vunpack.c.l.b16 %v3433
        %v3541 = vunpack.c.l.b16 %v3434
        %v3542 = vunpack.c.l.b16 %v3435
        %v3543 = vunpack.c.l.b16 %v3436
        %v3544 = vunpack.c.l.b16 %v3437
        %v3545 = vunpack.c.l.b16 %v3438
        %v3546 = vunpack.c.l.b16 %v3439
        %v3547 = vunpack.c.l.b16 %v3440
        %v3548 = vunpack.c.l.b16 %v3441
        %v3549 = vunpack.c.l.b16 %v3442
        %v3550 = vunpack.c.l.b16 %v3443
        %v3551 = vpack.c.b16 %v3504, %v3503
        %v3552 = vpack.c.b16 %v3506, %v3505
        %v3553 = vpack.c.b16 %v3508, %v3507
        %v3554 = vpack.c.b16 %v3510, %v3509
        %v3555 = vpack.c.b16 %v3512, %v3511
        %v3556 = vpack.c.b16 %v3514, %v3513
        %v3557 = vpack.c.b16 %v3516, %v3515
        %v3558 = vpack.c.b16 %v3518, %v3517
        %v3559 = vpack.c.b16 %v3520, %v3519
        %v3560 = vpack.c.b16 %v3522, %v3521
        %v3561 = vpack.c.b16 %v3524, %v3523
        %v3562 = vpack.c.b16 %v3526, %v3525
        %v3563 = vpack.c.b16 %v3528, %v3527
        %v3564 = vpack.c.b16 %v3530, %v3529
        %v3565 = vpack.c.b16 %v3532, %v3531
        %v3566 = vpack.c.b16 %v3534, %v3533
        %v3567 = vpack.c.b16 %v3536, %v3535
        %v3568 = vpack.c.b16 %v3538, %v3537
        %v3569 = vpack.c.b16 %v3540, %v3539
        %v3570 = vpack.c.b16 %v3542, %v3541
        %v3571 = vpack.c.b16 %v3544, %v3543
        %v3572 = vpack.c.b16 %v3546, %v3545
        %v3573 = vpack.c.b16 %v3548, %v3547
        %v3574 = vpack.c.b16 %v3550, %v3549
        %3599 = vmatpush.bf16.msra.mxu0 %v3558
        %3600 = vmatpush.bf16.msra.mxu0 %v3557
        %3601 = vmatpush.bf16.msra.mxu0 %v3556
        %3602 = vmatpush.bf16.msra.mxu0 %v3555
        %3603 = vmatpush.bf16.msra.mxu0 %v3554
        %3604 = vmatpush.bf16.msra.mxu0 %v3553
        %3605 = vmatpush.bf16.msra.mxu0 %v3552
        %3606 = vmatpush.bf16.msra.mxu0 %v3551
        %3607 = vmatmul.bf16.gmra.mxu0 %v3449
        %v3608 = vpop.f32.mrf.mxu0
        %v3609 = vadd.f32 0.0, %v3608
        %v3610 = vpop.f32.mrf.mxu0
        %v3611 = vadd.f32 0.0, %v3610
        %3612 = vdwg.mxu0
        %3613 = vmatpush.bf16.msra.mxu0 %v3566
        %3614 = vmatpush.bf16.msra.mxu0 %v3565
        %3615 = vmatpush.bf16.msra.mxu0 %v3564
        %3616 = vmatpush.bf16.msra.mxu0 %v3563
        %3617 = vmatpush.bf16.msra.mxu0 %v3562
        %3618 = vmatpush.bf16.msra.mxu0 %v3561
        %3619 = vmatpush.bf16.msra.mxu0 %v3560
        %3620 = vmatpush.bf16.msra.mxu0 %v3559
        %3621 = vmatmul.bf16.gmra.mxu0 %v3450
        %v3622 = vpop.f32.mrf.mxu0
        %v3623 = vadd.f32 %v3609, %v3622
        %v3624 = vpop.f32.mrf.mxu0
        %v3625 = vadd.f32 %v3611, %v3624
        %3626 = vdwg.mxu0
        %3627 = vmatpush.bf16.msra.mxu0 %v3574
        %3628 = vmatpush.bf16.msra.mxu0 %v3573
        %3629 = vmatpush.bf16.msra.mxu0 %v3572
        %3630 = vmatpush.bf16.msra.mxu0 %v3571
        %3631 = vmatpush.bf16.msra.mxu0 %v3570
        %3632 = vmatpush.bf16.msra.mxu0 %v3569
        %3633 = vmatpush.bf16.msra.mxu0 %v3568
        %3634 = vmatpush.bf16.msra.mxu0 %v3567
        %3635 = vmatmul.bf16.gmra.mxu0 %v3451
        %v3636 = vpop.f32.mrf.mxu0
        %v3637 = vadd.f32 %v3623, %v3636
        %v3638 = vpop.f32.mrf.mxu0
        %v3639 = vadd.f32 %v3625, %v3638
        %3640 = vdwg.mxu0
        %v3641 = vadd.f32 %v3390, %v3637
        %v3642 = vadd.f32 %v3392, %v3639
        %v3643 = vld [vmem:[%s8] sm:$0x1]
        %v3645 = vperm.slane %v3643, 0
        %v3647 = vmul.f32 %v3641, %v3645
        %v3648 = vmul.f32 %v3642, %v3645
        %v3649 = vld [vmem:[%s9] sm:$0x1]
        %v3651 = vperm.slane %v3649, 0
        %v3653 = vadd.f32 %v3647, %v3651
        %v3654 = vadd.f32 %v3648, %v3651
        %v3655 = vmax.f32 %v3653, 0.0
        %v3656 = vmax.f32 %v3654, 0.0
        %3657 = vst [vmem:[#allocation9] sm:$0xff] %v3655
        %3658 = vst [vmem:[#allocation9 + $0x8] sm:$0xff] %v3656
        %v3659 = vld [vmem:[#allocation9] ss:$2 sm:$0xff]
        %s3660 = scalar_lea.vmem [#allocation9], 1
        %v3661 = vld [vmem:[%s3660] ss:$2 sm:$0xff]
        %v3662 = vmax.f32 %v3659, %v3661
        %3663 = vst [vmem:[#allocation10] sm:$0xff] %v3662
        %v3664 = vld [vmem:[#allocation10] sm:$0x3]
        %v3665 = vld [vmem:[#allocation10 + $0x2] sm:$0x3]
        %v3666 = vmax.f32 %v3664, %v3665
        %3667 = vst [vmem:[#allocation11] sm:$0x3] %v3666
        %v3668 = vld [vmem:[#allocation10 + $0x4] sm:$0x3]
        %v3669 = vld [vmem:[#allocation10 + $0x6] sm:$0x3]
        %v3670 = vmax.f32 %v3668, %v3669
        %3671 = vst [vmem:[#allocation11 + $0x2] sm:$0x3] %v3670
        %v3672 = vld [vmem:[#allocation11] sm:$0x1]
        %v3673 = vpack.c.bf16 %v3672, %v3672
        %v3674 = vld [vmem:[#allocation14] sm:$0xff]
        %v3675 = vld [vmem:[#allocation14 + $0x8] sm:$0xff]
        %v3676 = vld [vmem:[#allocation14 + $0x10] sm:$0xff]
        %v3677 = vld [vmem:[#allocation14 + $0x18] sm:$0xff]
        %v3678 = vld [vmem:[#allocation14 + $0x20] sm:$0xff]
        %v3679 = vld [vmem:[#allocation14 + $0x28] sm:$0xff]
        %v3680 = vld [vmem:[#allocation14 + $0x30] sm:$0xff]
        %v3681 = vld [vmem:[#allocation14 + $0x38] sm:$0xff]
        %v3682 = vld [vmem:[#allocation14 + $0x40] sm:$0xff]
        %v3683 = vld [vmem:[#allocation14 + $0x48] sm:$0xff]
        %v3684 = vld [vmem:[#allocation14 + $0x50] sm:$0xff]
        %v3685 = vld [vmem:[#allocation14 + $0x58] sm:$0xff]
        %v3686 = vld [vmem:[#allocation14 + $0x60] sm:$0xff]
        %v3687 = vld [vmem:[#allocation14 + $0x68] sm:$0xff]
        %v3688 = vld [vmem:[#allocation14 + $0x70] sm:$0xff]
        %v3689 = vld [vmem:[#allocation14 + $0x78] sm:$0xff]
        %v3690 = vld [vmem:[#allocation11 + $0x1] sm:$0x1]
        %v3691 = vpack.c.bf16 %v3690, %v3690
        %v3692 = vld [vmem:[#allocation14 + $0x80] sm:$0xff]
        %v3693 = vld [vmem:[#allocation14 + $0x88] sm:$0xff]
        %v3694 = vld [vmem:[#allocation14 + $0x90] sm:$0xff]
        %v3695 = vld [vmem:[#allocation14 + $0x98] sm:$0xff]
        %v3696 = vld [vmem:[#allocation14 + $0xa0] sm:$0xff]
        %v3697 = vld [vmem:[#allocation14 + $0xa8] sm:$0xff]
        %v3698 = vld [vmem:[#allocation14 + $0xb0] sm:$0xff]
        %v3699 = vld [vmem:[#allocation14 + $0xb8] sm:$0xff]
        %v3700 = vld [vmem:[#allocation14 + $0xc0] sm:$0xff]
        %v3701 = vld [vmem:[#allocation14 + $0xc8] sm:$0xff]
        %v3702 = vld [vmem:[#allocation14 + $0xd0] sm:$0xff]
        %v3703 = vld [vmem:[#allocation14 + $0xd8] sm:$0xff]
        %v3704 = vld [vmem:[#allocation14 + $0xe0] sm:$0xff]
        %v3705 = vld [vmem:[#allocation14 + $0xe8] sm:$0xff]
        %v3706 = vld [vmem:[#allocation14 + $0xf0] sm:$0xff]
        %v3707 = vld [vmem:[#allocation14 + $0xf8] sm:$0xff]
        %v3724 = vunpack.c.l.b16 %v3692
        %v3725 = vunpack.c.h.b16 %v3692
        %v3726 = vunpack.c.l.b16 %v3693
        %v3727 = vunpack.c.h.b16 %v3693
        %v3728 = vunpack.c.l.b16 %v3694
        %v3729 = vunpack.c.h.b16 %v3694
        %v3730 = vunpack.c.l.b16 %v3695
        %v3731 = vunpack.c.h.b16 %v3695
        %v3732 = vunpack.c.l.b16 %v3696
        %v3733 = vunpack.c.h.b16 %v3696
        %v3734 = vunpack.c.l.b16 %v3697
        %v3735 = vunpack.c.h.b16 %v3697
        %v3736 = vunpack.c.l.b16 %v3698
        %v3737 = vunpack.c.h.b16 %v3698
        %v3738 = vunpack.c.l.b16 %v3699
        %v3739 = vunpack.c.h.b16 %v3699
        %v3740 = vunpack.c.l.b16 %v3700
        %v3741 = vunpack.c.h.b16 %v3700
        %v3742 = vunpack.c.l.b16 %v3701
        %v3743 = vunpack.c.h.b16 %v3701
        %v3744 = vunpack.c.l.b16 %v3702
        %v3745 = vunpack.c.h.b16 %v3702
        %v3746 = vunpack.c.l.b16 %v3703
        %v3747 = vunpack.c.h.b16 %v3703
        %v3748 = vunpack.c.l.b16 %v3704
        %v3749 = vunpack.c.h.b16 %v3704
        %v3750 = vunpack.c.l.b16 %v3705
        %v3751 = vunpack.c.h.b16 %v3705
        %v3752 = vunpack.c.l.b16 %v3706
        %v3753 = vunpack.c.h.b16 %v3706
        %v3754 = vunpack.c.l.b16 %v3707
        %v3755 = vunpack.c.h.b16 %v3707
        %v3756 = vpack.c.b16 %v3726, %v3724
        %v3757 = vpack.c.b16 %v3727, %v3725
        %v3758 = vpack.c.b16 %v3730, %v3728
        %v3759 = vpack.c.b16 %v3731, %v3729
        %v3760 = vpack.c.b16 %v3734, %v3732
        %v3761 = vpack.c.b16 %v3735, %v3733
        %v3762 = vpack.c.b16 %v3738, %v3736
        %v3763 = vpack.c.b16 %v3739, %v3737
        %v3764 = vpack.c.b16 %v3742, %v3740
        %v3765 = vpack.c.b16 %v3743, %v3741
        %v3766 = vpack.c.b16 %v3746, %v3744
        %v3767 = vpack.c.b16 %v3747, %v3745
        %v3768 = vpack.c.b16 %v3750, %v3748
        %v3769 = vpack.c.b16 %v3751, %v3749
        %v3770 = vpack.c.b16 %v3754, %v3752
        %v3771 = vpack.c.b16 %v3755, %v3753
        %3788 = vmatpush.bf16.msra.mxu0 %v3770
        %3789 = vmatpush.bf16.msra.mxu0 %v3768
        %3790 = vmatpush.bf16.msra.mxu0 %v3766
        %3791 = vmatpush.bf16.msra.mxu0 %v3764
        %3792 = vmatpush.bf16.msra.mxu0 %v3762
        %3793 = vmatpush.bf16.msra.mxu0 %v3760
        %3794 = vmatpush.bf16.msra.mxu0 %v3758
        %3795 = vmatpush.bf16.msra.mxu0 %v3756
        %3796 = vmatmul.bf16.gmra.mxu0 %v3691
        %v3797 = vpop.f32.mrf.mxu0
        %v3798 = vadd.f32 0.0, %v3797
        %v3799 = vpop.f32.mrf.mxu0
        %3800 = vdwg.mxu0
        %3801 = vmatpush.bf16.msra.mxu0 %v3771
        %3802 = vmatpush.bf16.msra.mxu0 %v3769
        %3803 = vmatpush.bf16.msra.mxu0 %v3767
        %3804 = vmatpush.bf16.msra.mxu0 %v3765
        %3805 = vmatpush.bf16.msra.mxu0 %v3763
        %3806 = vmatpush.bf16.msra.mxu0 %v3761
        %3807 = vmatpush.bf16.msra.mxu0 %v3759
        %3808 = vmatpush.bf16.msra.mxu0 %v3757
        %3809 = vmatmul.bf16.gmra.mxu0 %v3691
        %v3810 = vpop.f32.mrf.mxu0
        %v3811 = vadd.f32 0.0, %v3810
        %v3812 = vpop.f32.mrf.mxu0
        %3813 = vdwg.mxu0
        %v3830 = vunpack.c.l.b16 %v3674
        %v3831 = vunpack.c.h.b16 %v3674
        %v3832 = vunpack.c.l.b16 %v3675
        %v3833 = vunpack.c.h.b16 %v3675
        %v3834 = vunpack.c.l.b16 %v3676
        %v3835 = vunpack.c.h.b16 %v3676
        %v3836 = vunpack.c.l.b16 %v3677
        %v3837 = vunpack.c.h.b16 %v3677
        %v3838 = vunpack.c.l.b16 %v3678
        %v3839 = vunpack.c.h.b16 %v3678
        %v3840 = vunpack.c.l.b16 %v3679
        %v3841 = vunpack.c.h.b16 %v3679
        %v3842 = vunpack.c.l.b16 %v3680
        %v3843 = vunpack.c.h.b16 %v3680
        %v3844 = vunpack.c.l.b16 %v3681
        %v3845 = vunpack.c.h.b16 %v3681
        %v3846 = vunpack.c.l.b16 %v3682
        %v3847 = vunpack.c.h.b16 %v3682
        %v3848 = vunpack.c.l.b16 %v3683
        %v3849 = vunpack.c.h.b16 %v3683
        %v3850 = vunpack.c.l.b16 %v3684
        %v3851 = vunpack.c.h.b16 %v3684
        %v3852 = vunpack.c.l.b16 %v3685
        %v3853 = vunpack.c.h.b16 %v3685
        %v3854 = vunpack.c.l.b16 %v3686
        %v3855 = vunpack.c.h.b16 %v3686
        %v3856 = vunpack.c.l.b16 %v3687
        %v3857 = vunpack.c.h.b16 %v3687
        %v3858 = vunpack.c.l.b16 %v3688
        %v3859 = vunpack.c.h.b16 %v3688
        %v3860 = vunpack.c.l.b16 %v3689
        %v3861 = vunpack.c.h.b16 %v3689
        %v3862 = vpack.c.b16 %v3832, %v3830
        %v3863 = vpack.c.b16 %v3833, %v3831
        %v3864 = vpack.c.b16 %v3836, %v3834
        %v3865 = vpack.c.b16 %v3837, %v3835
        %v3866 = vpack.c.b16 %v3840, %v3838
        %v3867 = vpack.c.b16 %v3841, %v3839
        %v3868 = vpack.c.b16 %v3844, %v3842
        %v3869 = vpack.c.b16 %v3845, %v3843
        %v3870 = vpack.c.b16 %v3848, %v3846
        %v3871 = vpack.c.b16 %v3849, %v3847
        %v3872 = vpack.c.b16 %v3852, %v3850
        %v3873 = vpack.c.b16 %v3853, %v3851
        %v3874 = vpack.c.b16 %v3856, %v3854
        %v3875 = vpack.c.b16 %v3857, %v3855
        %v3876 = vpack.c.b16 %v3860, %v3858
        %v3877 = vpack.c.b16 %v3861, %v3859
        %3894 = vmatpush.bf16.msra.mxu0 %v3876
        %3895 = vmatpush.bf16.msra.mxu0 %v3874
        %3896 = vmatpush.bf16.msra.mxu0 %v3872
        %3897 = vmatpush.bf16.msra.mxu0 %v3870
        %3898 = vmatpush.bf16.msra.mxu0 %v3868
        %3899 = vmatpush.bf16.msra.mxu0 %v3866
        %3900 = vmatpush.bf16.msra.mxu0 %v3864
        %3901 = vmatpush.bf16.msra.mxu0 %v3862
        %3902 = vmatmul.bf16.gmra.mxu0 %v3673
        %v3903 = vpop.f32.mrf.mxu0
        %v3904 = vadd.f32 %v3798, %v3903
        %v3905 = vpop.f32.mrf.mxu0
        %3906 = vdwg.mxu0
        %3907 = vmatpush.bf16.msra.mxu0 %v3877
        %3908 = vmatpush.bf16.msra.mxu0 %v3875
        %3909 = vmatpush.bf16.msra.mxu0 %v3873
        %3910 = vmatpush.bf16.msra.mxu0 %v3871
        %3911 = vmatpush.bf16.msra.mxu0 %v3869
        %3912 = vmatpush.bf16.msra.mxu0 %v3867
        %3913 = vmatpush.bf16.msra.mxu0 %v3865
        %3914 = vmatpush.bf16.msra.mxu0 %v3863
        %3915 = vmatmul.bf16.gmra.mxu0 %v3673
        %v3916 = vpop.f32.mrf.mxu0
        %v3917 = vadd.f32 %v3811, %v3916
        %v3918 = vpop.f32.mrf.mxu0
        %3919 = vdwg.mxu0
        %v3920 = vld [vmem:[#allocation11 + $0x2] sm:$0x1]
        %v3921 = vpack.c.bf16 %v3920, %v3920
        %v3922 = vld [vmem:[#allocation14 + $0x100] sm:$0xff]
        %v3923 = vld [vmem:[#allocation14 + $0x108] sm:$0xff]
        %v3924 = vld [vmem:[#allocation14 + $0x110] sm:$0xff]
        %v3925 = vld [vmem:[#allocation14 + $0x118] sm:$0xff]
        %v3926 = vld [vmem:[#allocation14 + $0x120] sm:$0xff]
        %v3927 = vld [vmem:[#allocation14 + $0x128] sm:$0xff]
        %v3928 = vld [vmem:[#allocation14 + $0x130] sm:$0xff]
        %v3929 = vld [vmem:[#allocation14 + $0x138] sm:$0xff]
        %v3930 = vld [vmem:[#allocation14 + $0x140] sm:$0xff]
        %v3931 = vld [vmem:[#allocation14 + $0x148] sm:$0xff]
        %v3932 = vld [vmem:[#allocation14 + $0x150] sm:$0xff]
        %v3933 = vld [vmem:[#allocation14 + $0x158] sm:$0xff]
        %v3934 = vld [vmem:[#allocation14 + $0x160] sm:$0xff]
        %v3935 = vld [vmem:[#allocation14 + $0x168] sm:$0xff]
        %v3936 = vld [vmem:[#allocation14 + $0x170] sm:$0xff]
        %v3937 = vld [vmem:[#allocation14 + $0x178] sm:$0xff]
        %v3954 = vunpack.c.l.b16 %v3922
        %v3955 = vunpack.c.h.b16 %v3922
        %v3956 = vunpack.c.l.b16 %v3923
        %v3957 = vunpack.c.h.b16 %v3923
        %v3958 = vunpack.c.l.b16 %v3924
        %v3959 = vunpack.c.h.b16 %v3924
        %v3960 = vunpack.c.l.b16 %v3925
        %v3961 = vunpack.c.h.b16 %v3925
        %v3962 = vunpack.c.l.b16 %v3926
        %v3963 = vunpack.c.h.b16 %v3926
        %v3964 = vunpack.c.l.b16 %v3927
        %v3965 = vunpack.c.h.b16 %v3927
        %v3966 = vunpack.c.l.b16 %v3928
        %v3967 = vunpack.c.h.b16 %v3928
        %v3968 = vunpack.c.l.b16 %v3929
        %v3969 = vunpack.c.h.b16 %v3929
        %v3970 = vunpack.c.l.b16 %v3930
        %v3971 = vunpack.c.h.b16 %v3930
        %v3972 = vunpack.c.l.b16 %v3931
        %v3973 = vunpack.c.h.b16 %v3931
        %v3974 = vunpack.c.l.b16 %v3932
        %v3975 = vunpack.c.h.b16 %v3932
        %v3976 = vunpack.c.l.b16 %v3933
        %v3977 = vunpack.c.h.b16 %v3933
        %v3978 = vunpack.c.l.b16 %v3934
        %v3979 = vunpack.c.h.b16 %v3934
        %v3980 = vunpack.c.l.b16 %v3935
        %v3981 = vunpack.c.h.b16 %v3935
        %v3982 = vunpack.c.l.b16 %v3936
        %v3983 = vunpack.c.h.b16 %v3936
        %v3984 = vunpack.c.l.b16 %v3937
        %v3985 = vunpack.c.h.b16 %v3937
        %v3986 = vpack.c.b16 %v3956, %v3954
        %v3987 = vpack.c.b16 %v3957, %v3955
        %v3988 = vpack.c.b16 %v3960, %v3958
        %v3989 = vpack.c.b16 %v3961, %v3959
        %v3990 = vpack.c.b16 %v3964, %v3962
        %v3991 = vpack.c.b16 %v3965, %v3963
        %v3992 = vpack.c.b16 %v3968, %v3966
        %v3993 = vpack.c.b16 %v3969, %v3967
        %v3994 = vpack.c.b16 %v3972, %v3970
        %v3995 = vpack.c.b16 %v3973, %v3971
        %v3996 = vpack.c.b16 %v3976, %v3974
        %v3997 = vpack.c.b16 %v3977, %v3975
        %v3998 = vpack.c.b16 %v3980, %v3978
        %v3999 = vpack.c.b16 %v3981, %v3979
        %v4000 = vpack.c.b16 %v3984, %v3982
        %v4001 = vpack.c.b16 %v3985, %v3983
        %4018 = vmatpush.bf16.msra.mxu0 %v4000
        %4019 = vmatpush.bf16.msra.mxu0 %v3998
        %4020 = vmatpush.bf16.msra.mxu0 %v3996
        %4021 = vmatpush.bf16.msra.mxu0 %v3994
        %4022 = vmatpush.bf16.msra.mxu0 %v3992
        %4023 = vmatpush.bf16.msra.mxu0 %v3990
        %4024 = vmatpush.bf16.msra.mxu0 %v3988
        %4025 = vmatpush.bf16.msra.mxu0 %v3986
        %4026 = vmatmul.bf16.gmra.mxu0 %v3921
        %v4027 = vpop.f32.mrf.mxu0
        %v4028 = vadd.f32 0.0, %v4027
        %v4029 = vpop.f32.mrf.mxu0
        %4030 = vdwg.mxu0
        %4031 = vmatpush.bf16.msra.mxu0 %v4001
        %4032 = vmatpush.bf16.msra.mxu0 %v3999
        %4033 = vmatpush.bf16.msra.mxu0 %v3997
        %4034 = vmatpush.bf16.msra.mxu0 %v3995
        %4035 = vmatpush.bf16.msra.mxu0 %v3993
        %4036 = vmatpush.bf16.msra.mxu0 %v3991
        %4037 = vmatpush.bf16.msra.mxu0 %v3989
        %4038 = vmatpush.bf16.msra.mxu0 %v3987
        %4039 = vmatmul.bf16.gmra.mxu0 %v3921
        %v4040 = vpop.f32.mrf.mxu0
        %v4041 = vadd.f32 0.0, %v4040
        %v4042 = vpop.f32.mrf.mxu0
        %4043 = vdwg.mxu0
        %v4044 = vadd.f32 %v3904, %v4028
        %v4045 = vadd.f32 %v3917, %v4041
        %v4046 = vld [vmem:[#allocation11 + $0x3] sm:$0x1]
        %v4047 = vpack.c.bf16 %v4046, %v4046
        %v4048 = vld [vmem:[#allocation14 + $0x180] sm:$0xff]
        %v4049 = vld [vmem:[#allocation14 + $0x188] sm:$0xff]
        %v4050 = vld [vmem:[#allocation14 + $0x190] sm:$0xff]
        %v4051 = vld [vmem:[#allocation14 + $0x198] sm:$0xff]
        %v4052 = vld [vmem:[#allocation14 + $0x1a0] sm:$0xff]
        %v4053 = vld [vmem:[#allocation14 + $0x1a8] sm:$0xff]
        %v4054 = vld [vmem:[#allocation14 + $0x1b0] sm:$0xff]
        %v4055 = vld [vmem:[#allocation14 + $0x1b8] sm:$0xff]
        %v4056 = vld [vmem:[#allocation14 + $0x1c0] sm:$0xff]
        %v4057 = vld [vmem:[#allocation14 + $0x1c8] sm:$0xff]
        %v4058 = vld [vmem:[#allocation14 + $0x1d0] sm:$0xff]
        %v4059 = vld [vmem:[#allocation14 + $0x1d8] sm:$0xff]
        %v4060 = vld [vmem:[#allocation14 + $0x1e0] sm:$0xff]
        %v4061 = vld [vmem:[#allocation14 + $0x1e8] sm:$0xff]
        %v4062 = vld [vmem:[#allocation14 + $0x1f0] sm:$0xff]
        %v4063 = vld [vmem:[#allocation14 + $0x1f8] sm:$0xff]
        %v4080 = vunpack.c.l.b16 %v4048
        %v4081 = vunpack.c.h.b16 %v4048
        %v4082 = vunpack.c.l.b16 %v4049
        %v4083 = vunpack.c.h.b16 %v4049
        %v4084 = vunpack.c.l.b16 %v4050
        %v4085 = vunpack.c.h.b16 %v4050
        %v4086 = vunpack.c.l.b16 %v4051
        %v4087 = vunpack.c.h.b16 %v4051
        %v4088 = vunpack.c.l.b16 %v4052
        %v4089 = vunpack.c.h.b16 %v4052
        %v4090 = vunpack.c.l.b16 %v4053
        %v4091 = vunpack.c.h.b16 %v4053
        %v4092 = vunpack.c.l.b16 %v4054
        %v4093 = vunpack.c.h.b16 %v4054
        %v4094 = vunpack.c.l.b16 %v4055
        %v4095 = vunpack.c.h.b16 %v4055
        %v4096 = vunpack.c.l.b16 %v4056
        %v4097 = vunpack.c.h.b16 %v4056
        %v4098 = vunpack.c.l.b16 %v4057
        %v4099 = vunpack.c.h.b16 %v4057
        %v4100 = vunpack.c.l.b16 %v4058
        %v4101 = vunpack.c.h.b16 %v4058
        %v4102 = vunpack.c.l.b16 %v4059
        %v4103 = vunpack.c.h.b16 %v4059
        %v4104 = vunpack.c.l.b16 %v4060
        %v4105 = vunpack.c.h.b16 %v4060
        %v4106 = vunpack.c.l.b16 %v4061
        %v4107 = vunpack.c.h.b16 %v4061
        %v4108 = vunpack.c.l.b16 %v4062
        %v4109 = vunpack.c.h.b16 %v4062
        %v4110 = vunpack.c.l.b16 %v4063
        %v4111 = vunpack.c.h.b16 %v4063
        %v4112 = vpack.c.b16 %v4082, %v4080
        %v4113 = vpack.c.b16 %v4083, %v4081
        %v4114 = vpack.c.b16 %v4086, %v4084
        %v4115 = vpack.c.b16 %v4087, %v4085
        %v4116 = vpack.c.b16 %v4090, %v4088
        %v4117 = vpack.c.b16 %v4091, %v4089
        %v4118 = vpack.c.b16 %v4094, %v4092
        %v4119 = vpack.c.b16 %v4095, %v4093
        %v4120 = vpack.c.b16 %v4098, %v4096
        %v4121 = vpack.c.b16 %v4099, %v4097
        %v4122 = vpack.c.b16 %v4102, %v4100
        %v4123 = vpack.c.b16 %v4103, %v4101
        %v4124 = vpack.c.b16 %v4106, %v4104
        %v4125 = vpack.c.b16 %v4107, %v4105
        %v4126 = vpack.c.b16 %v4110, %v4108
        %v4127 = vpack.c.b16 %v4111, %v4109
        %4144 = vmatpush.bf16.msra.mxu0 %v4126
        %4145 = vmatpush.bf16.msra.mxu0 %v4124
        %4146 = vmatpush.bf16.msra.mxu0 %v4122
        %4147 = vmatpush.bf16.msra.mxu0 %v4120
        %4148 = vmatpush.bf16.msra.mxu0 %v4118
        %4149 = vmatpush.bf16.msra.mxu0 %v4116
        %4150 = vmatpush.bf16.msra.mxu0 %v4114
        %4151 = vmatpush.bf16.msra.mxu0 %v4112
        %4152 = vmatmul.bf16.gmra.mxu0 %v4047
        %v4153 = vpop.f32.mrf.mxu0
        %v4154 = vadd.f32 0.0, %v4153
        %v4155 = vpop.f32.mrf.mxu0
        %4156 = vdwg.mxu0
        %4157 = vmatpush.bf16.msra.mxu0 %v4127
        %4158 = vmatpush.bf16.msra.mxu0 %v4125
        %4159 = vmatpush.bf16.msra.mxu0 %v4123
        %4160 = vmatpush.bf16.msra.mxu0 %v4121
        %4161 = vmatpush.bf16.msra.mxu0 %v4119
        %4162 = vmatpush.bf16.msra.mxu0 %v4117
        %4163 = vmatpush.bf16.msra.mxu0 %v4115
        %4164 = vmatpush.bf16.msra.mxu0 %v4113
        %4165 = vmatmul.bf16.gmra.mxu0 %v4047
        %v4166 = vpop.f32.mrf.mxu0
        %v4167 = vadd.f32 0.0, %v4166
        %v4168 = vpop.f32.mrf.mxu0
        %4169 = vdwg.mxu0
        %v4170 = vadd.f32 %v4044, %v4154
        %v4171 = vadd.f32 %v4045, %v4167
        %v4172 = vld [vmem:[%s11] sm:$0x3]
        %v4174 = vperm.slane %v4172, 0
        %v4175 = vperm.slane %v4172, 1
        %v4178 = vmul.f32 %v4170, %v4174
        %v4179 = vmul.f32 %v4171, %v4175
        %v4180 = vld [vmem:[%s12] sm:$0x3]
        %v4182 = vperm.slane %v4180, 0
        %v4183 = vperm.slane %v4180, 1
        %v4186 = vadd.f32 %v4178, %v4182
        %v4187 = vadd.f32 %v4179, %v4183
        %v4188 = vmax.f32 %v4186, 0.0
        %v4189 = vmax.f32 %v4187, 0.0
        %v4190 = vld [vmem:[%s13] sm:$0xff]
        %v4191 = vld [vmem:[%s13 + $0x8] sm:$0xff]
        %v4192 = vld [vmem:[%s13 + $0x10] sm:$0xff]
        %v4193 = vld [vmem:[%s13 + $0x18] sm:$0xff]
        %v4194 = vld [vmem:[%s13 + $0x20] sm:$0xff]
        %v4195 = vld [vmem:[%s13 + $0x28] sm:$0xff]
        %v4196 = vld [vmem:[%s13 + $0x30] sm:$0xff]
        %v4197 = vld [vmem:[%s13 + $0x38] sm:$0xff]
        %v4198 = vld [vmem:[%s13 + $0x40] sm:$0xff]
        %v4199 = vld [vmem:[%s13 + $0x48] sm:$0xff]
        %v4200 = vld [vmem:[%s13 + $0x50] sm:$0xff]
        %v4201 = vld [vmem:[%s13 + $0x58] sm:$0xff]
        %v4202 = vld [vmem:[%s13 + $0x60] sm:$0xff]
        %v4203 = vld [vmem:[%s13 + $0x68] sm:$0xff]
        %v4204 = vld [vmem:[%s13 + $0x70] sm:$0xff]
        %v4205 = vld [vmem:[%s13 + $0x78] sm:$0xff]
        %v4206 = vld [vmem:[%s13 + $0x80] sm:$0xff]
        %v4207 = vld [vmem:[%s13 + $0x88] sm:$0xff]
        %v4208 = vld [vmem:[%s13 + $0x90] sm:$0xff]
        %v4209 = vld [vmem:[%s13 + $0x98] sm:$0xff]
        %v4210 = vld [vmem:[%s13 + $0xa0] sm:$0xff]
        %v4211 = vld [vmem:[%s13 + $0xa8] sm:$0xff]
        %v4212 = vld [vmem:[%s13 + $0xb0] sm:$0xff]
        %v4213 = vld [vmem:[%s13 + $0xb8] sm:$0xff]
        %v4214 = vld [vmem:[%s13 + $0xc0] sm:$0xff]
        %v4215 = vld [vmem:[%s13 + $0xc8] sm:$0xff]
        %v4216 = vld [vmem:[%s13 + $0xd0] sm:$0xff]
        %v4217 = vld [vmem:[%s13 + $0xd8] sm:$0xff]
        %v4218 = vld [vmem:[%s13 + $0xe0] sm:$0xff]
        %v4219 = vld [vmem:[%s13 + $0xe8] sm:$0xff]
        %v4220 = vld [vmem:[%s13 + $0xf0] sm:$0xff]
        %v4221 = vld [vmem:[%s13 + $0xf8] sm:$0xff]
        %4222 = vmatpush.msra.mxu0 %v4205
        %4223 = vmatpush.msra.mxu0 %v4204
        %4224 = vmatpush.msra.mxu0 %v4203
        %4225 = vmatpush.msra.mxu0 %v4202
        %4226 = vmatpush.msra.mxu0 %v4201
        %4227 = vmatpush.msra.mxu0 %v4200
        %4228 = vmatpush.msra.mxu0 %v4199
        %4229 = vmatpush.msra.mxu0 %v4198
        %4230 = vmatpush.msra.mxu0 %v4197
        %4231 = vmatpush.msra.mxu0 %v4196
        %4232 = vmatpush.msra.mxu0 %v4195
        %4233 = vmatpush.msra.mxu0 %v4194
        %4234 = vmatpush.msra.mxu0 %v4193
        %4235 = vmatpush.msra.mxu0 %v4192
        %4236 = vmatpush.msra.mxu0 %v4191
        %4237 = vmatpush.msra.mxu0 %v4190
        %4238 = vmatmul.f32.gmra.mxu0 %v4188
        %v4239 = vpop.f32.mrf.mxu0
        %v4240 = vadd.f32 0.0, %v4239
        %4241 = vdwg.mxu0
        %4242 = vmatpush.msra.mxu0 %v4221
        %4243 = vmatpush.msra.mxu0 %v4220
        %4244 = vmatpush.msra.mxu0 %v4219
        %4245 = vmatpush.msra.mxu0 %v4218
        %4246 = vmatpush.msra.mxu0 %v4217
        %4247 = vmatpush.msra.mxu0 %v4216
        %4248 = vmatpush.msra.mxu0 %v4215
        %4249 = vmatpush.msra.mxu0 %v4214
        %4250 = vmatpush.msra.mxu0 %v4213
        %4251 = vmatpush.msra.mxu0 %v4212
        %4252 = vmatpush.msra.mxu0 %v4211
        %4253 = vmatpush.msra.mxu0 %v4210
        %4254 = vmatpush.msra.mxu0 %v4209
        %4255 = vmatpush.msra.mxu0 %v4208
        %4256 = vmatpush.msra.mxu0 %v4207
        %4257 = vmatpush.msra.mxu0 %v4206
        %4258 = vmatmul.f32.gmra.mxu0 %v4189
        %v4259 = vpop.f32.mrf.mxu0
        %v4260 = vadd.f32 %v4240, %v4259
        %4261 = vdwg.mxu0
        %v4262 = vlaneseq
        %v4263 = vand.u32 %v4262, 127
        %vm4264 = vcmp.lt.s32.totalorder %v4263, 4
        %v4265 = vsel %vm4264, %v4260, -1e+30
        %vm4266 = vcmask 1040384
        %v4267 = vsel %vm4266, %v4265, -inf
        %4268 = vmax.xlane.f32.xlu0 %v4267
        %v4269 = vpop.xlane.xlu0 %4268
        %v4270 = vsub.f32 %v4265, %v4269
        %v4271 = vmul.f32 %v4270, 1.442695
        %v4272 = vpow.pop %v4271
        %v4273 = vsel %vm4266, %v4272, 0.0
        %4274 = vadd.xlane.f32.xlu0 %v4273
        %v4275 = vpop.xlane.xlu0 %4274
        %v4276 = vrcp.pop %v4275
        %v4277 = vmul.f32 %v4275, %v4276
        %v4278 = vsub.f32 1.0, %v4277
        %v4279 = vmul.f32 %v4276, %v4278
        %v4280 = vadd.f32 %v4276, %v4279
        %vm4281 = vweird.f32 %v4275
        %vm4282 = vweird.f32 %v4276
        %vm4283 = vmor %vm4281, %vm4282
        %v4284 = vsel %vm4283, %v4276, %v4280
        %v4285 = vand.u32 2147483647, %v4275
        %vm4286 = vcmp.eq.f32.partialorder %v4285, 8.507059e+37
        %v4287 = vand.u32 %v4275, 2147483648
        %v4288 = vor.u32 1.1754944e-38, %v4287
        %v4289 = vsel %vm4286, %v4288, %v4284
        %v4290 = vmul.f32 %v4272, %v4289
        %v4291 = vperm.slane %v4290, 0
        %4292 = vst [vmem:[%s499] sm:$0xff] %v4291
        %p4293 = scmp.lt.s32.totalorder %s27, 1
        %s4294 = scalar_select %p4293, %s27, 1
        %s4295 = smul.addr %s4294, 8
        %s4296 = scalar_lea.vmem %s14, %s4295
        // Predicated region
        $region85: #{forward.1} parent=75 // pred_check
          %p4297 = pneg %p344
        $region86: #{forward.1} parent=75 // pred_check_branch
          %4299 = sbr.rel (%p4297) target = $region88
        $region87: #{forward.1} parent=75 // pred_region
          _
        $region88: #{forward.1} parent=75 // pred_fallthru
          _
      $region76: #{forward.1} parent=5 // pred_fallthru
        _
      %p4300 = scmp.le.s32.totalorder 2, %s22
      // Predicated region
      $region89: #{forward.1} parent=5 // pred_check
        %p4301 = pneg %p4300
      $region90: #{forward.1} parent=5 // pred_check_branch
        %4303 = sbr.rel (%p4301) target = $region92
      $region91: #{forward.1} parent=5 // pred_region
        %s4304 = ssub.s32 %s22, 2
        // Predicated region
        $region93: #{forward.1} parent=91 // pred_check
          %p4305 = pneg %p350
        $region94: #{forward.1} parent=91 // pred_check_branch
          %4307 = sbr.rel (%p4305) target = $region96
        $region95: #{forward.1} parent=91 // pred_region
          %p4308 = scmp.lt.s32.totalorder %s28, 1
          %s4309 = scalar_select %p4308, %s28, 1
          %s4310 = smul.addr %s4309, 8
          %s4311 = scalar_lea.vmem %s14, %s4310
        $region96: #{forward.1} parent=91 // pred_fallthru
          _
      $region92: #{forward.1} parent=5 // pred_fallthru
        _
    $region6: #{forward.1} parent=1 // loop_footer
      %s26 = sadd.s32 1, %s22
    $region7: #{forward.1} parent=1 // loop_footer_branch
      %21 = sbr.rel target = $region3
    $region8: #{forward.1} parent=1 // loop_exit
      _
    %4312 = vsyncpa [#allocation13], 1
    %s4313 = scalar_lea.sflag [#allocation13], 1
    %4314 = vsyncpa %s4313, 1
    %4315 = vsyncpa [#allocation15], 1

</llo_original>
